<compile_context>
chip_gen: v5e
topology: v5e:2x2
jax: 0.10.0
libtpu: 0.0.40
codegen_flags: <defaults>
</compile_context>

<pallas_src>
import jax
import jax.numpy as jnp
from jax import lax
from jax.experimental import pallas as pl
from jax.experimental.pallas import tpu as pltpu


_LN_EPS = 1e-7     # DeBERTa-v2/v3 layer_norm_eps (torch.nn.LayerNorm default would be 1e-5)
_NEG_INF = -1e9


def _gelu(x):
    # tanh approximation -> transcendental goes to the EUP slot.
    # (HF DeBERTa uses erf-based gelu; small numeric deviation, documented.)
    c = jnp.float32(0.7978845608028654)  # sqrt(2/pi)
    return 0.5 * x * (1.0 + jnp.tanh(c * (x + 0.044715 * x * x * x)))


def _layernorm(x, gamma, beta, eps=_LN_EPS):
    mu = jnp.mean(x, axis=-1, keepdims=True)
    var = jnp.mean((x - mu) ** 2, axis=-1, keepdims=True)
    return (x - mu) * lax.rsqrt(var + eps) * gamma + beta


# ------------------- fused encoder-stack + classifier kernel ------------------- #
def fused_model_kernel(x_ref, maskb_ref,
                       wqkv_ref, bqkv_ref, wo_ref, bo_ref, ln1_ref,
                       w1_ref, b1_ref, w2_ref, b2_ref, ln2_ref,
                       fcw_ref, fcb_ref,
                       o_ref,
                       act_ref):
    """Grid = (B, num_layers).  act_ref (VMEM, f32) carries the activation across layers."""
    layer = pl.program_id(1)
    n_layers = pl.num_programs(1)
    H = x_ref.shape[-1]

    # Load the embedding block into the resident activation only on the first layer step.
    @pl.when(layer == 0)
    def _():
        act_ref[...] = x_ref[0].astype(jnp.float32)

    x_f32 = act_ref[...]                               # (S, H) f32 resident activation
    x_bf = x_f32.astype(jnp.bfloat16)
    mask_bias = maskb_ref[0]                           # (1, S) additive key-mask bias (f32)

    # Fused QKV projection: bf16 operands, f32 accumulation. The 1/sqrt(H) attention scale was
    # folded into the Q columns of wqkv/bqkv at parameter-init time.
    qkv = jnp.dot(x_bf, wqkv_ref[0], preferred_element_type=jnp.float32) + bqkv_ref[0]
    # H is a multiple of 128, so these lane slices are 128-aligned (no relayout copies).
    q = qkv[:, :H].astype(jnp.bfloat16)
    k = qkv[:, H:2 * H].astype(jnp.bfloat16)
    v = qkv[:, 2 * H:].astype(jnp.bfloat16)

    # scores = q @ k^T without materializing a transpose (contract last dims of both).
    scores = lax.dot_general(q, k, (((1,), (1,)), ((), ())),
                             preferred_element_type=jnp.float32)           # (S, S)
    # Additive key masking ((1-mask)*-1e9 precomputed in the wrapper). If an entire row of the
    # mask is zero the softmax degenerates to uniform attention over that row (documented).
    scores = scores + mask_bias
    scores = scores - jnp.max(scores, axis=-1, keepdims=True)
    p = jnp.exp(scores)
    p = p * pl.reciprocal(jnp.sum(p, axis=-1, keepdims=True), approx=True)  # EUP reciprocal

    attn = jnp.dot(p.astype(jnp.bfloat16), v, preferred_element_type=jnp.float32)   # (S, H)
    attn = jnp.dot(attn.astype(jnp.bfloat16), wo_ref[0],
                   preferred_element_type=jnp.float32) + bo_ref[0]

    # residual + LayerNorm 1 (f32)
    ln1 = ln1_ref[0]                                   # (2, H): [gamma; beta]
    h1 = _layernorm(x_f32 + attn, ln1[0:1, :], ln1[1:2, :])

    # GELU FFN (bf16 matmuls, f32 accumulation)
    ff = jnp.dot(h1.astype(jnp.bfloat16), w1_ref[0],
                 preferred_element_type=jnp.float32) + b1_ref[0]
    ff = _gelu(ff)
    ff = jnp.dot(ff.astype(jnp.bfloat16), w2_ref[0],
                 preferred_element_type=jnp.float32) + b2_ref[0]

    # residual + LayerNorm 2 (f32) -> new resident activation
    out = _layernorm(h1 + ff, ln2_ref[0][0:1, :], ln2_ref[0][1:2, :])
    act_ref[...] = out

    # Classifier + softmax fused into the last layer: only the CLS row is consumed, only a
    # (1, L_pad) probability row is written.  nn.Dropout in eval mode == identity.
    @pl.when(layer == n_layers - 1)
    def _():
        cls = out[0:1, :].astype(jnp.bfloat16)                             # (1, H) CLS token
        logits = jnp.dot(cls, fcw_ref[...],
                         preferred_element_type=jnp.float32) + fcb_ref[...]  # (1, L_pad)
        logits = logits - jnp.max(logits, axis=-1, keepdims=True)
        e = jnp.exp(logits)
        # Exact normalization so output probabilities sum to 1 (padded lanes underflow to 0).
        o_ref[0] = (e / jnp.sum(e, axis=-1, keepdims=True)).astype(o_ref.dtype)


def fused_model(x, mask_bias, params):
    """x: (B, S, H) bf16 embeddings; mask_bias: (B, 1, S) f32 additive attention bias."""
    B, S, H = x.shape
    NL = params["wqkv"].shape[0]
    Lp = params["fc_w"].shape[-1]

    def layer_spec(arr):
        n = len(arr.shape)
        return pl.BlockSpec((1,) + arr.shape[1:],
                            lambda b, l, _n=n: (l,) + (0,) * (_n - 1))

    grid_spec = pltpu.PrefetchScalarGridSpec(
        num_scalar_prefetch=0,
        grid=(B, NL),
        in_specs=[
            pl.BlockSpec((1, S, H), lambda b, l: (b, 0, 0)),     # x (only read at layer 0)
            pl.BlockSpec((1, 1, S), lambda b, l: (b, 0, 0)),     # additive mask bias
            layer_spec(params["wqkv"]), layer_spec(params["bqkv"]),
            layer_spec(params["wo"]), layer_spec(params["bo"]),
            layer_spec(params["ln1"]),
            layer_spec(params["w1"]), layer_spec(params["b1"]),
            layer_spec(params["w2"]), layer_spec(params["b2"]),
            layer_spec(params["ln2"]),
            pl.BlockSpec((H, Lp), lambda b, l: (0, 0)),          # classifier weight (constant)
            pl.BlockSpec((1, Lp), lambda b, l: (0, 0)),          # classifier bias   (constant)
        ],
        # Output block index depends only on b -> resident across the layer ("arbitrary") axis;
        # written once at layer == num_layers - 1.
        out_specs=pl.BlockSpec((1, 1, Lp), lambda b, l: (b, 0, 0)),
        scratch_shapes=[pltpu.VMEM((S, H), jnp.float32)],        # activation, persists over layers
    )

    out = pl.pallas_call(
        fused_model_kernel,
        out_shape=jax.ShapeDtypeStruct((B, 1, Lp), jnp.float32),
        grid_spec=grid_spec,
        compiler_params=pltpu.CompilerParams(
            dimension_semantics=("parallel", "arbitrary"),       # B rows -> both v7x TensorCores
        ),
    )(x, mask_bias,
      params["wqkv"], params["bqkv"], params["wo"], params["bo"], params["ln1"],
      params["w1"], params["b1"], params["w2"], params["b2"], params["ln2"],
      params["fc_w"], params["fc_b"])
    return out[:, 0, :]                                          # (B, L_pad) probabilities


# ----------------------------- full forward ----------------------------- #
def custom_model_forward(input_ids, attention_mask, params):
    # Embedding lookup is glue (gather) in plain JAX; activations carried in bf16.
    x = params["embedding"][input_ids]                                   # (B, S, H) bf16
    # Additive attention bias precomputed once in the wrapper (saves a compare/select in-kernel).
    mask_bias = (1.0 - attention_mask.astype(jnp.float32))[:, None, :] * _NEG_INF  # (B, 1, S)
    return fused_model(x, mask_bias, params)                             # (B, L_pad)


def init_params(key, vocab, H, F, L, num_layers, l_pad=128):
    scale = 0.02
    keys = iter(jax.random.split(key, 1 + num_layers * 4 + 1))
    params = {
        "embedding": (scale * jax.random.normal(next(keys), (vocab, H), jnp.float32)
                      ).astype(jnp.bfloat16),
    }
    attn_scale = 1.0 / jnp.sqrt(jnp.float32(H))
    wqkv_l, bqkv_l, wo_l, bo_l, ln1_l = [], [], [], [], []
    w1_l, b1_l, w2_l, b2_l, ln2_l = [], [], [], [], []
    for _ in range(num_layers):
        wqkv = scale * jax.random.normal(next(keys), (H, 3 * H), jnp.float32)
        bqkv = jnp.zeros((1, 3 * H), jnp.float32)
        # Fold the 1/sqrt(H) attention scale into the Q projection (drops one vector mul / tile).
        wqkv = wqkv.at[:, :H].multiply(attn_scale)
        bqkv = bqkv.at[:, :H].multiply(attn_scale)
        wo = scale * jax.random.normal(next(keys), (H, H), jnp.float32)
        bo = jnp.zeros((1, H), jnp.float32)
        ln1 = jnp.stack([jnp.ones((H,), jnp.float32), jnp.zeros((H,), jnp.float32)])
        w1 = scale * jax.random.normal(next(keys), (H, F), jnp.float32)
        b1 = jnp.zeros((1, F), jnp.float32)
        w2 = scale * jax.random.normal(next(keys), (F, H), jnp.float32)
        b2 = jnp.zeros((1, H), jnp.float32)
        ln2 = jnp.stack([jnp.ones((H,), jnp.float32), jnp.zeros((H,), jnp.float32)])
        wqkv_l.append(wqkv.astype(jnp.bfloat16)); bqkv_l.append(bqkv)
        wo_l.append(wo.astype(jnp.bfloat16));     bo_l.append(bo)
        ln1_l.append(ln1)
        w1_l.append(w1.astype(jnp.bfloat16));     b1_l.append(b1)
        w2_l.append(w2.astype(jnp.bfloat16));     b2_l.append(b2)
        ln2_l.append(ln2)

    # Per-layer weights stacked along a leading layer axis (indexed by the layer grid coordinate).
    params["wqkv"] = jnp.stack(wqkv_l); params["bqkv"] = jnp.stack(bqkv_l)
    params["wo"] = jnp.stack(wo_l);     params["bo"] = jnp.stack(bo_l)
    params["ln1"] = jnp.stack(ln1_l)
    params["w1"] = jnp.stack(w1_l);     params["b1"] = jnp.stack(b1_l)
    params["w2"] = jnp.stack(w2_l);     params["b2"] = jnp.stack(b2_l)
    params["ln2"] = jnp.stack(ln2_l)

    # 26-label head zero-padded to 128 output lanes; padded columns get a -1e9 bias so their
    # softmax probabilities underflow to exactly 0 and the first L probabilities still sum to 1.
    fc_w = scale * jax.random.normal(next(keys), (H, L), jnp.float32)
    fc_b = jnp.zeros((1, L), jnp.float32)
    fc_w_p = jnp.zeros((H, l_pad), jnp.float32).at[:, :L].set(fc_w)
    fc_b_p = jnp.full((1, l_pad), _NEG_INF, jnp.float32).at[:, :L].set(fc_b)
    params["fc_w"] = fc_w_p.astype(jnp.bfloat16)
    params["fc_b"] = fc_b_p
    return params


if __name__ == "__main__":
    # Lane-aligned stand-in dims: H, F, S are multiples of 128; 26 labels as in the real head.
    B, S, H, F, V, L = 2, 128, 128, 512, 1000, 26
    NUM_LAYERS = 2
    key = jax.random.PRNGKey(0)
    k_ids, k_params = jax.random.split(key)

    input_ids = jax.random.randint(k_ids, (B, S), 0, V, dtype=jnp.int32)
    attention_mask = jnp.ones((B, S), dtype=jnp.int32).at[1, 96:].set(0)  # second row padded

    params = init_params(k_params, V, H, F, L, num_layers=NUM_LAYERS)

    fwd = jax.jit(custom_model_forward)
    probs_padded = jax.block_until_ready(fwd(input_ids, attention_mask, params))  # (B, 128)
    probs = probs_padded[:, :L]                                                   # (B, 26)

    assert probs.shape == (B, L)
    assert bool(jnp.all(jnp.isfinite(probs)))
    assert bool(jnp.allclose(jnp.sum(probs, axis=-1), 1.0, atol=1e-4))
    print("KERNEL_OK")
</pallas_src>

<mosaic_0001>
module attributes {stable_mosaic.version = 11 : i64} {
  func.func @fused_model_kernel(%arg0: i32, %arg1: i32, %arg2: memref<1x128x128xbf16, #tpu.memory_space<vmem>>, %arg3: memref<1x1x128xf32, #tpu.memory_space<vmem>>, %arg4: memref<1x128x384xbf16, #tpu.memory_space<vmem>>, %arg5: memref<1x1x384xf32, #tpu.memory_space<vmem>>, %arg6: memref<1x128x128xbf16, #tpu.memory_space<vmem>>, %arg7: memref<1x1x128xf32, #tpu.memory_space<vmem>>, %arg8: memref<1x2x128xf32, #tpu.memory_space<vmem>>, %arg9: memref<1x128x512xbf16, #tpu.memory_space<vmem>>, %arg10: memref<1x1x512xf32, #tpu.memory_space<vmem>>, %arg11: memref<1x512x128xbf16, #tpu.memory_space<vmem>>, %arg12: memref<1x1x128xf32, #tpu.memory_space<vmem>>, %arg13: memref<1x2x128xf32, #tpu.memory_space<vmem>>, %arg14: memref<128x128xbf16, #tpu.memory_space<vmem>>, %arg15: memref<1x128xf32, #tpu.memory_space<vmem>>, %arg16: memref<1x1x128xf32, #tpu.memory_space<vmem>>, %arg17: memref<128x128xf32, #tpu.memory_space<vmem>>) attributes {dimension_semantics = [#tpu.dimension_semantics<parallel>, #tpu.dimension_semantics<arbitrary>], iteration_bounds = array<i64: 2, 2>, scalar_prefetch = 0 : i64, scratch_operands = 1 : i64, tpu.core_type = #tpu.core_type<tc>, window_params = [{transform_indices = @transform_0, window_bounds = array<i64: 1, 128, 128>}, {transform_indices = @transform_1, window_bounds = array<i64: 1, 1, 128>}, {transform_indices = @transform_2, window_bounds = array<i64: 1, 128, 384>}, {transform_indices = @transform_3, window_bounds = array<i64: 1, 1, 384>}, {transform_indices = @transform_4, window_bounds = array<i64: 1, 128, 128>}, {transform_indices = @transform_5, window_bounds = array<i64: 1, 1, 128>}, {transform_indices = @transform_6, window_bounds = array<i64: 1, 2, 128>}, {transform_indices = @transform_7, window_bounds = array<i64: 1, 128, 512>}, {transform_indices = @transform_8, window_bounds = array<i64: 1, 1, 512>}, {transform_indices = @transform_9, window_bounds = array<i64: 1, 512, 128>}, {transform_indices = @transform_10, window_bounds = array<i64: 1, 1, 128>}, {transform_indices = @transform_11, window_bounds = array<i64: 1, 2, 128>}, {pipeline_mode = #tpu.pipeline_mode<synchronous>, transform_indices = @transform_12, window_bounds = array<i64: 128, 128>}, {pipeline_mode = #tpu.pipeline_mode<synchronous>, transform_indices = @transform_13, window_bounds = array<i64: 1, 128>}, {transform_indices = @transform_14, window_bounds = array<i64: 1, 1, 128>}]} {
    %c0_i32 = arith.constant 0 : i32
    %0 = arith.cmpi eq, %arg1, %c0_i32 : i32
    %1 = arith.extui %0 : i1 to i32
    %c0_i32_0 = arith.constant 0 : i32
    %2 = arith.cmpi ne, %1, %c0_i32_0 : i32
    scf.if %2 {
      %c0_62 = arith.constant 0 : index
      %c0_63 = arith.constant 0 : index
      %c0_64 = arith.constant 0 : index
      %132 = vector.load %arg2[%c0_62, %c0_63, %c0_64] : memref<1x128x128xbf16, #tpu.memory_space<vmem>>, vector<1x128x128xbf16>
      %133 = vector.shape_cast %132 : vector<1x128x128xbf16> to vector<128x128xbf16>
      %134 = arith.extf %133 : vector<128x128xbf16> to vector<128x128xf32>
      %c0_65 = arith.constant 0 : index
      %c0_66 = arith.constant 0 : index
      %135 = vector.load %arg17[%c0_65, %c0_66] : memref<128x128xf32, #tpu.memory_space<vmem>>, vector<128x128xf32>
      tpu.vector_store %arg17[%c0_65, %c0_66], %134 {strides = array<i32>} : memref<128x128xf32, #tpu.memory_space<vmem>>, vector<128x128xf32>,
    } else {
    }
    %c0 = arith.constant 0 : index
    %c0_1 = arith.constant 0 : index
    %3 = vector.load %arg17[%c0, %c0_1] : memref<128x128xf32, #tpu.memory_space<vmem>>, vector<128x128xf32>
    %4 = arith.truncf %3 : vector<128x128xf32> to vector<128x128xbf16>
    %c0_2 = arith.constant 0 : index
    %c0_3 = arith.constant 0 : index
    %c0_4 = arith.constant 0 : index
    %5 = vector.load %arg3[%c0_2, %c0_3, %c0_4] : memref<1x1x128xf32, #tpu.memory_space<vmem>>, vector<1x1x128xf32>
    %6 = vector.shape_cast %5 : vector<1x1x128xf32> to vector<1x128xf32>
    %c0_5 = arith.constant 0 : index
    %c0_6 = arith.constant 0 : index
    %c0_7 = arith.constant 0 : index
    %7 = vector.load %arg4[%c0_5, %c0_6, %c0_7] : memref<1x128x384xbf16, #tpu.memory_space<vmem>>, vector<1x128x384xbf16>
    %8 = vector.shape_cast %7 : vector<1x128x384xbf16> to vector<128x384xbf16>
    %cst = arith.constant dense<0.000000e+00> : vector<128x384xf32>
    %9 = tpu.matmul %4, %8, %cst {dimension_numbers = #tpu.dot_dimension_numbers<[1], [0], [0], [1], [0, 0, 1, 1], [], []>} : vector<128x128xbf16>, vector<128x384xbf16>, vector<128x384xf32> -> vector<128x384xf32>
    %c0_8 = arith.constant 0 : index
    %c0_9 = arith.constant 0 : index
    %c0_10 = arith.constant 0 : index
    %10 = vector.load %arg5[%c0_8, %c0_9, %c0_10] : memref<1x1x384xf32, #tpu.memory_space<vmem>>, vector<1x1x384xf32>
    %11 = vector.shape_cast %10 : vector<1x1x384xf32> to vector<1x384xf32>
    %12 = vector.broadcast %11 : vector<1x384xf32> to vector<128x384xf32>
    %13 = arith.addf %9, %12 : vector<128x384xf32>
    %14 = vector.extract_strided_slice %13 {offsets = [0, 0], sizes = [128, 128], strides = [1, 1]} : vector<128x384xf32> to vector<128x128xf32>
    %15 = arith.truncf %14 : vector<128x128xf32> to vector<128x128xbf16>
    %16 = vector.extract_strided_slice %13 {offsets = [0, 128], sizes = [128, 128], strides = [1, 1]} : vector<128x384xf32> to vector<128x128xf32>
    %17 = arith.truncf %16 : vector<128x128xf32> to vector<128x128xbf16>
    %18 = vector.extract_strided_slice %13 {offsets = [0, 256], sizes = [128, 128], strides = [1, 1]} : vector<128x384xf32> to vector<128x128xf32>
    %19 = arith.truncf %18 : vector<128x128xf32> to vector<128x128xbf16>
    %cst_11 = arith.constant dense<0.000000e+00> : vector<128x128xf32>
    %20 = tpu.matmul %15, %17, %cst_11 {dimension_numbers = #tpu.dot_dimension_numbers<[1], [1], [0], [0], [0, 0, 1, 0], [], []>} : vector<128x128xbf16>, vector<128x128xbf16>, vector<128x128xf32> -> vector<128x128xf32>
    %21 = vector.broadcast %6 : vector<1x128xf32> to vector<128x128xf32>
    %22 = arith.addf %20, %21 : vector<128x128xf32>
    %cst_12 = arith.constant dense<0xFF800000> : vector<128xf32>
    %23 = vector.multi_reduction <maximumf>, %22, %cst_12 [1] : vector<128x128xf32> to vector<128xf32>
    %24 = vector.shape_cast %23 : vector<128xf32> to vector<128x1xf32>
    %25 = vector.broadcast %24 : vector<128x1xf32> to vector<128x128xf32>
    %26 = arith.subf %22, %25 : vector<128x128xf32>
    %27 = math.exp %26 : vector<128x128xf32>
    %cst_13 = arith.constant dense<0.000000e+00> : vector<128xf32>
    %28 = vector.multi_reduction <add>, %27, %cst_13 [1] : vector<128x128xf32> to vector<128xf32>
    %29 = vector.shape_cast %28 : vector<128xf32> to vector<128x1xf32>
    %30 = tpu.reciprocal %29 {approx = true} : vector<128x1xf32> -> vector<128x1xf32>
    %31 = vector.broadcast %30 : vector<128x1xf32> to vector<128x128xf32>
    %32 = arith.mulf %27, %31 : vector<128x128xf32>
    %33 = arith.truncf %32 : vector<128x128xf32> to vector<128x128xbf16>
    %cst_14 = arith.constant dense<0.000000e+00> : vector<128x128xf32>
    %34 = tpu.matmul %33, %19, %cst_14 {dimension_numbers = #tpu.dot_dimension_numbers<[1], [0], [0], [1], [0, 0, 1, 1], [], []>} : vector<128x128xbf16>, vector<128x128xbf16>, vector<128x128xf32> -> vector<128x128xf32>
    %35 = arith.truncf %34 : vector<128x128xf32> to vector<128x128xbf16>
    %c0_15 = arith.constant 0 : index
    %c0_16 = arith.constant 0 : index
    %c0_17 = arith.constant 0 : index
    %36 = vector.load %arg6[%c0_15, %c0_16, %c0_17] : memref<1x128x128xbf16, #tpu.memory_space<vmem>>, vector<1x128x128xbf16>
    %37 = vector.shape_cast %36 : vector<1x128x128xbf16> to vector<128x128xbf16>
    %cst_18 = arith.constant dense<0.000000e+00> : vector<128x128xf32>
    %38 = tpu.matmul %35, %37, %cst_18 {dimension_numbers = #tpu.dot_dimension_numbers<[1], [0], [0], [1], [0, 0, 1, 1], [], []>} : vector<128x128xbf16>, vector<128x128xbf16>, vector<128x128xf32> -> vector<128x128xf32>
    %c0_19 = arith.constant 0 : index
    %c0_20 = arith.constant 0 : index
    %c0_21 = arith.constant 0 : index
    %39 = vector.load %arg7[%c0_19, %c0_20, %c0_21] : memref<1x1x128xf32, #tpu.memory_space<vmem>>, vector<1x1x128xf32>
    %40 = vector.shape_cast %39 : vector<1x1x128xf32> to vector<1x128xf32>
    %41 = vector.broadcast %40 : vector<1x128xf32> to vector<128x128xf32>
    %42 = arith.addf %38, %41 : vector<128x128xf32>
    %c0_22 = arith.constant 0 : index
    %c0_23 = arith.constant 0 : index
    %c0_24 = arith.constant 0 : index
    %43 = vector.load %arg8[%c0_22, %c0_23, %c0_24] : memref<1x2x128xf32, #tpu.memory_space<vmem>>, vector<1x2x128xf32>
    %44 = vector.shape_cast %43 : vector<1x2x128xf32> to vector<2x128xf32>
    %45 = arith.addf %3, %42 : vector<128x128xf32>
    %46 = vector.extract_strided_slice %44 {offsets = [0, 0], sizes = [1, 128], strides = [1, 1]} : vector<2x128xf32> to vector<1x128xf32>
    %47 = vector.extract_strided_slice %44 {offsets = [1, 0], sizes = [1, 128], strides = [1, 1]} : vector<2x128xf32> to vector<1x128xf32>
    %cst_25 = arith.constant dense<0.000000e+00> : vector<128xf32>
    %48 = vector.multi_reduction <add>, %45, %cst_25 [1] : vector<128x128xf32> to vector<128xf32>
    %49 = vector.shape_cast %48 : vector<128xf32> to vector<128x1xf32>
    %cst_26 = arith.constant 1.280000e+02 : f32
    %50 = vector.broadcast %cst_26 : f32 to vector<128x1xf32>
    %51 = arith.divf %49, %50 : vector<128x1xf32>
    %52 = vector.broadcast %51 : vector<128x1xf32> to vector<128x128xf32>
    %53 = arith.subf %45, %52 : vector<128x128xf32>
    %54 = arith.mulf %53, %53 : vector<128x128xf32>
    %cst_27 = arith.constant dense<0.000000e+00> : vector<128xf32>
    %55 = vector.multi_reduction <add>, %54, %cst_27 [1] : vector<128x128xf32> to vector<128xf32>
    %56 = vector.shape_cast %55 : vector<128xf32> to vector<128x1xf32>
    %cst_28 = arith.constant 1.280000e+02 : f32
    %57 = vector.broadcast %cst_28 : f32 to vector<128x1xf32>
    %58 = arith.divf %56, %57 : vector<128x1xf32>
    %59 = vector.broadcast %51 : vector<128x1xf32> to vector<128x128xf32>
    %60 = arith.subf %45, %59 : vector<128x128xf32>
    %cst_29 = arith.constant 1.000000e-07 : f32
    %61 = vector.broadcast %cst_29 : f32 to vector<128x1xf32>
    %62 = arith.addf %58, %61 : vector<128x1xf32>
    %63 = math.rsqrt %62 : vector<128x1xf32>
    %64 = vector.broadcast %63 : vector<128x1xf32> to vector<128x128xf32>
    %65 = arith.mulf %60, %64 : vector<128x128xf32>
    %66 = vector.broadcast %46 : vector<1x128xf32> to vector<128x128xf32>
    %67 = arith.mulf %65, %66 : vector<128x128xf32>
    %68 = vector.broadcast %47 : vector<1x128xf32> to vector<128x128xf32>
    %69 = arith.addf %67, %68 : vector<128x128xf32>
    %70 = arith.truncf %69 : vector<128x128xf32> to vector<128x128xbf16>
    %c0_30 = arith.constant 0 : index
    %c0_31 = arith.constant 0 : index
    %c0_32 = arith.constant 0 : index
    %71 = vector.load %arg9[%c0_30, %c0_31, %c0_32] : memref<1x128x512xbf16, #tpu.memory_space<vmem>>, vector<1x128x512xbf16>
    %72 = vector.shape_cast %71 : vector<1x128x512xbf16> to vector<128x512xbf16>
    %cst_33 = arith.constant dense<0.000000e+00> : vector<128x512xf32>
    %73 = tpu.matmul %70, %72, %cst_33 {dimension_numbers = #tpu.dot_dimension_numbers<[1], [0], [0], [1], [0, 0, 1, 1], [], []>} : vector<128x128xbf16>, vector<128x512xbf16>, vector<128x512xf32> -> vector<128x512xf32>
    %c0_34 = arith.constant 0 : index
    %c0_35 = arith.constant 0 : index
    %c0_36 = arith.constant 0 : index
    %74 = vector.load %arg10[%c0_34, %c0_35, %c0_36] : memref<1x1x512xf32, #tpu.memory_space<vmem>>, vector<1x1x512xf32>
    %75 = vector.shape_cast %74 : vector<1x1x512xf32> to vector<1x512xf32>
    %76 = vector.broadcast %75 : vector<1x512xf32> to vector<128x512xf32>
    %77 = arith.addf %73, %76 : vector<128x512xf32>
    %cst_37 = arith.constant 5.000000e-01 : f32
    %78 = vector.broadcast %cst_37 : f32 to vector<128x512xf32>
    %79 = arith.mulf %78, %77 : vector<128x512xf32>
    %cst_38 = arith.constant 4.471500e-02 : f32
    %80 = vector.broadcast %cst_38 : f32 to vector<128x512xf32>
    %81 = arith.mulf %80, %77 : vector<128x512xf32>
    %82 = arith.mulf %81, %77 : vector<128x512xf32>
    %83 = arith.mulf %82, %77 : vector<128x512xf32>
    %84 = arith.addf %77, %83 : vector<128x512xf32>
    %cst_39 = arith.constant 0.797884583 : f32
    %85 = vector.broadcast %cst_39 : f32 to vector<128x512xf32>
    %86 = arith.mulf %85, %84 : vector<128x512xf32>
    %87 = math.tanh %86 : vector<128x512xf32>
    %cst_40 = arith.constant 1.000000e+00 : f32
    %88 = vector.broadcast %cst_40 : f32 to vector<128x512xf32>
    %89 = arith.addf %88, %87 : vector<128x512xf32>
    %90 = arith.mulf %79, %89 : vector<128x512xf32>
    %91 = arith.truncf %90 : vector<128x512xf32> to vector<128x512xbf16>
    %c0_41 = arith.constant 0 : index
    %c0_42 = arith.constant 0 : index
    %c0_43 = arith.constant 0 : index
    %92 = vector.load %arg11[%c0_41, %c0_42, %c0_43] : memref<1x512x128xbf16, #tpu.memory_space<vmem>>, vector<1x512x128xbf16>
    %93 = vector.shape_cast %92 : vector<1x512x128xbf16> to vector<512x128xbf16>
    %cst_44 = arith.constant dense<0.000000e+00> : vector<128x128xf32>
    %94 = tpu.matmul %91, %93, %cst_44 {dimension_numbers = #tpu.dot_dimension_numbers<[1], [0], [0], [1], [0, 0, 1, 1], [], []>} : vector<128x512xbf16>, vector<512x128xbf16>, vector<128x128xf32> -> vector<128x128xf32>
    %c0_45 = arith.constant 0 : index
    %c0_46 = arith.constant 0 : index
    %c0_47 = arith.constant 0 : index
    %95 = vector.load %arg12[%c0_45, %c0_46, %c0_47] : memref<1x1x128xf32, #tpu.memory_space<vmem>>, vector<1x1x128xf32>
    %96 = vector.shape_cast %95 : vector<1x1x128xf32> to vector<1x128xf32>
    %97 = vector.broadcast %96 : vector<1x128xf32> to vector<128x128xf32>
    %98 = arith.addf %94, %97 : vector<128x128xf32>
    %99 = arith.addf %69, %98 : vector<128x128xf32>
    %c0_48 = arith.constant 0 : index
    %c0_49 = arith.constant 0 : index
    %c0_50 = arith.constant 0 : index
    %100 = vector.load %arg13[%c0_48, %c0_49, %c0_50] : memref<1x2x128xf32, #tpu.memory_space<vmem>>, vector<1x2x128xf32>
    %101 = vector.shape_cast %100 : vector<1x2x128xf32> to vector<2x128xf32>
    %102 = vector.extract_strided_slice %101 {offsets = [0, 0], sizes = [1, 128], strides = [1, 1]} : vector<2x128xf32> to vector<1x128xf32>
    %c0_51 = arith.constant 0 : index
    %c0_52 = arith.constant 0 : index
    %c0_53 = arith.constant 0 : index
    %103 = vector.load %arg13[%c0_51, %c0_52, %c0_53] : memref<1x2x128xf32, #tpu.memory_space<vmem>>, vector<1x2x128xf32>
    %104 = vector.shape_cast %103 : vector<1x2x128xf32> to vector<2x128xf32>
    %105 = vector.extract_strided_slice %104 {offsets = [1, 0], sizes = [1, 128], strides = [1, 1]} : vector<2x128xf32> to vector<1x128xf32>
    %cst_54 = arith.constant dense<0.000000e+00> : vector<128xf32>
    %106 = vector.multi_reduction <add>, %99, %cst_54 [1] : vector<128x128xf32> to vector<128xf32>
    %107 = vector.shape_cast %106 : vector<128xf32> to vector<128x1xf32>
    %cst_55 = arith.constant 1.280000e+02 : f32
    %108 = vector.broadcast %cst_55 : f32 to vector<128x1xf32>
    %109 = arith.divf %107, %108 : vector<128x1xf32>
    %110 = vector.broadcast %109 : vector<128x1xf32> to vector<128x128xf32>
    %111 = arith.subf %99, %110 : vector<128x128xf32>
    %112 = arith.mulf %111, %111 : vector<128x128xf32>
    %cst_56 = arith.constant dense<0.000000e+00> : vector<128xf32>
    %113 = vector.multi_reduction <add>, %112, %cst_56 [1] : vector<128x128xf32> to vector<128xf32>
    %114 = vector.shape_cast %113 : vector<128xf32> to vector<128x1xf32>
    %cst_57 = arith.constant 1.280000e+02 : f32
    %115 = vector.broadcast %cst_57 : f32 to vector<128x1xf32>
    %116 = arith.divf %114, %115 : vector<128x1xf32>
    %117 = vector.broadcast %109 : vector<128x1xf32> to vector<128x128xf32>
    %118 = arith.subf %99, %117 : vector<128x128xf32>
    %cst_58 = arith.constant 1.000000e-07 : f32
    %119 = vector.broadcast %cst_58 : f32 to vector<128x1xf32>
    %120 = arith.addf %116, %119 : vector<128x1xf32>
    %121 = math.rsqrt %120 : vector<128x1xf32>
    %122 = vector.broadcast %121 : vector<128x1xf32> to vector<128x128xf32>
    %123 = arith.mulf %118, %122 : vector<128x128xf32>
    %124 = vector.broadcast %102 : vector<1x128xf32> to vector<128x128xf32>
    %125 = arith.mulf %123, %124 : vector<128x128xf32>
    %126 = vector.broadcast %105 : vector<1x128xf32> to vector<128x128xf32>
    %127 = arith.addf %125, %126 : vector<128x128xf32>
    %c0_59 = arith.constant 0 : index
    %c0_60 = arith.constant 0 : index
    %128 = vector.load %arg17[%c0_59, %c0_60] : memref<128x128xf32, #tpu.memory_space<vmem>>, vector<128x128xf32>
    tpu.vector_store %arg17[%c0_59, %c0_60], %127 {strides = array<i32>} : memref<128x128xf32, #tpu.memory_space<vmem>>, vector<128x128xf32>,
    %c1_i32 = arith.constant 1 : i32
    %129 = arith.cmpi eq, %arg1, %c1_i32 : i32
    %130 = arith.extui %129 : i1 to i32
    %c0_i32_61 = arith.constant 0 : i32
    %131 = arith.cmpi ne, %130, %c0_i32_61 : i32
    scf.if %131 {
      %132 = vector.extract_strided_slice %127 {offsets = [0, 0], sizes = [1, 128], strides = [1, 1]} : vector<128x128xf32> to vector<1x128xf32>
      %133 = arith.truncf %132 : vector<1x128xf32> to vector<1x128xbf16>
      %c0_62 = arith.constant 0 : index
      %c0_63 = arith.constant 0 : index
      %134 = vector.load %arg14[%c0_62, %c0_63] : memref<128x128xbf16, #tpu.memory_space<vmem>>, vector<128x128xbf16>
      %cst_64 = arith.constant dense<0.000000e+00> : vector<1x128xf32>
      %135 = tpu.matmul %133, %134, %cst_64 {dimension_numbers = #tpu.dot_dimension_numbers<[1], [0], [0], [1], [0, 0, 1, 1], [], []>} : vector<1x128xbf16>, vector<128x128xbf16>, vector<1x128xf32> -> vector<1x128xf32>
      %c0_65 = arith.constant 0 : index
      %c0_66 = arith.constant 0 : index
      %136 = vector.load %arg15[%c0_65, %c0_66] : memref<1x128xf32, #tpu.memory_space<vmem>>, vector<1x128xf32>
      %137 = arith.addf %135, %136 : vector<1x128xf32>
      %cst_67 = arith.constant dense<0xFF800000> : vector<1xf32>
      %138 = vector.multi_reduction <maximumf>, %137, %cst_67 [1] : vector<1x128xf32> to vector<1xf32>
      %139 = vector.shape_cast %138 : vector<1xf32> to vector<1x1xf32>
      %140 = vector.broadcast %139 : vector<1x1xf32> to vector<1x128xf32>
      %141 = arith.subf %137, %140 : vector<1x128xf32>
      %142 = math.exp %141 : vector<1x128xf32>
      %cst_68 = arith.constant dense<0.000000e+00> : vector<1xf32>
      %143 = vector.multi_reduction <add>, %142, %cst_68 [1] : vector<1x128xf32> to vector<1xf32>
      %144 = vector.shape_cast %143 : vector<1xf32> to vector<1x1xf32>
      %145 = vector.broadcast %144 : vector<1x1xf32> to vector<1x128xf32>
      %146 = arith.divf %142, %145 : vector<1x128xf32>
      %c0_69 = arith.constant 0 : index
      %c0_70 = arith.constant 0 : index
      %c0_71 = arith.constant 0 : index
      %147 = vector.load %arg16[%c0_69, %c0_70, %c0_71] : memref<1x1x128xf32, #tpu.memory_space<vmem>>, vector<1x1x128xf32>
      %148 = vector.shape_cast %147 : vector<1x1x128xf32> to vector<1x128xf32>
      %149 = vector.shape_cast %146 : vector<1x128xf32> to vector<1x1x128xf32>
      tpu.vector_store %arg16[%c0_69, %c0_70, %c0_71], %149 {strides = array<i32>} : memref<1x1x128xf32, #tpu.memory_space<vmem>>, vector<1x1x128xf32>,
    } else {
    }
    return
  }
  func.func @transform_0(%arg0: i32, %arg1: i32) -> (i32, i32, i32) {
    %c0_i32 = arith.constant 0 : i32
    %c0_i32_0 = arith.constant 0 : i32
    %c0_i32_1 = arith.constant 0 : i32
    return %arg0, %c0_i32, %c0_i32_0 : i32, i32, i32
  }
  func.func @transform_1(%arg0: i32, %arg1: i32) -> (i32, i32, i32) {
    %c0_i32 = arith.constant 0 : i32
    %c0_i32_0 = arith.constant 0 : i32
    %c0_i32_1 = arith.constant 0 : i32
    return %arg0, %c0_i32, %c0_i32_0 : i32, i32, i32
  }
  func.func @transform_2(%arg0: i32, %arg1: i32) -> (i32, i32, i32) {
    %c0_i32 = arith.constant 0 : i32
    %c0_i32_0 = arith.constant 0 : i32
    %c0_i32_1 = arith.constant 0 : i32
    return %arg1, %c0_i32, %c0_i32_0 : i32, i32, i32
  }
  func.func @transform_3(%arg0: i32, %arg1: i32) -> (i32, i32, i32) {
    %c0_i32 = arith.constant 0 : i32
    %c0_i32_0 = arith.constant 0 : i32
    %c0_i32_1 = arith.constant 0 : i32
    return %arg1, %c0_i32, %c0_i32_0 : i32, i32, i32
  }
  func.func @transform_4(%arg0: i32, %arg1: i32) -> (i32, i32, i32) {
    %c0_i32 = arith.constant 0 : i32
    %c0_i32_0 = arith.constant 0 : i32
    %c0_i32_1 = arith.constant 0 : i32
    return %arg1, %c0_i32, %c0_i32_0 : i32, i32, i32
  }
  func.func @transform_5(%arg0: i32, %arg1: i32) -> (i32, i32, i32) {
    %c0_i32 = arith.constant 0 : i32
    %c0_i32_0 = arith.constant 0 : i32
    %c0_i32_1 = arith.constant 0 : i32
    return %arg1, %c0_i32, %c0_i32_0 : i32, i32, i32
  }
  func.func @transform_6(%arg0: i32, %arg1: i32) -> (i32, i32, i32) {
    %c0_i32 = arith.constant 0 : i32
    %c0_i32_0 = arith.constant 0 : i32
    %c0_i32_1 = arith.constant 0 : i32
    return %arg1, %c0_i32, %c0_i32_0 : i32, i32, i32
  }
  func.func @transform_7(%arg0: i32, %arg1: i32) -> (i32, i32, i32) {
    %c0_i32 = arith.constant 0 : i32
    %c0_i32_0 = arith.constant 0 : i32
    %c0_i32_1 = arith.constant 0 : i32
    return %arg1, %c0_i32, %c0_i32_0 : i32, i32, i32
  }
  func.func @transform_8(%arg0: i32, %arg1: i32) -> (i32, i32, i32) {
    %c0_i32 = arith.constant 0 : i32
    %c0_i32_0 = arith.constant 0 : i32
    %c0_i32_1 = arith.constant 0 : i32
    return %arg1, %c0_i32, %c0_i32_0 : i32, i32, i32
  }
  func.func @transform_9(%arg0: i32, %arg1: i32) -> (i32, i32, i32) {
    %c0_i32 = arith.constant 0 : i32
    %c0_i32_0 = arith.constant 0 : i32
    %c0_i32_1 = arith.constant 0 : i32
    return %arg1, %c0_i32, %c0_i32_0 : i32, i32, i32
  }
  func.func @transform_10(%arg0: i32, %arg1: i32) -> (i32, i32, i32) {
    %c0_i32 = arith.constant 0 : i32
    %c0_i32_0 = arith.constant 0 : i32
    %c0_i32_1 = arith.constant 0 : i32
    return %arg1, %c0_i32, %c0_i32_0 : i32, i32, i32
  }
  func.func @transform_11(%arg0: i32, %arg1: i32) -> (i32, i32, i32) {
    %c0_i32 = arith.constant 0 : i32
    %c0_i32_0 = arith.constant 0 : i32
    %c0_i32_1 = arith.constant 0 : i32
    return %arg1, %c0_i32, %c0_i32_0 : i32, i32, i32
  }
  func.func @transform_12(%arg0: i32, %arg1: i32) -> (i32, i32) {
    %c0_i32 = arith.constant 0 : i32
    %c0_i32_0 = arith.constant 0 : i32
    %c0_i32_1 = arith.constant 0 : i32
    return %c0_i32, %c0_i32_0 : i32, i32
  }
  func.func @transform_13(%arg0: i32, %arg1: i32) -> (i32, i32) {
    %c0_i32 = arith.constant 0 : i32
    %c0_i32_0 = arith.constant 0 : i32
    %c0_i32_1 = arith.constant 0 : i32
    return %c0_i32, %c0_i32_0 : i32, i32
  }
  func.func @transform_14(%arg0: i32, %arg1: i32) -> (i32, i32, i32) {
    %c0_i32 = arith.constant 0 : i32
    %c0_i32_0 = arith.constant 0 : i32
    %c0_i32_1 = arith.constant 0 : i32
    return %arg0, %c0_i32, %c0_i32_0 : i32, i32, i32
  }
}

</mosaic_0001>

<llo_original>
// kernel: custom_model_forward.1
$region0: #{custom_model_forward.1}
  #allocation0 [shape = 'u32[]', space=smem, size = 0x4, offset = 0x4, fixed_abs, tag = 'smem constant byte address 0x4 - core index']
  #allocation1 [shape = 'u32[72,128]{1,0:T(1,128)}', space=vmem, size = 0x9000, scoped, tag = 'internal scratch']
  #allocation2 [shape = 'f32[128,128]{1,0:T(8,128)}', space=vmem, size = 0x10000, scoped, tag = 'scratch operand']
  %s0 = inlined_call_operand.vmem [shape: bf16[2,128,128], index: 0, kind: input, shape index: {}]
  %s1 = inlined_call_operand.vmem [shape: f32[2,1,128], index: 1, kind: input, shape index: {}]
  %s2 = inlined_call_operand.hbm [shape: bf16[2,128,384], index: 2, kind: input, shape index: {}]
  %s3 = inlined_call_operand.vmem [shape: f32[2,1,384], index: 3, kind: input, shape index: {}]
  %s4 = inlined_call_operand.vmem [shape: bf16[2,128,128], index: 4, kind: input, shape index: {}]
  %s5 = inlined_call_operand.hbm [shape: f32[2,1,128], index: 5, kind: input, shape index: {}]
  %s6 = inlined_call_operand.vmem [shape: f32[2,2,128], index: 6, kind: input, shape index: {}]
  %s7 = inlined_call_operand.vmem [shape: bf16[2,128,512], index: 7, kind: input, shape index: {}]
  %s8 = inlined_call_operand.vmem [shape: f32[2,1,512], index: 8, kind: input, shape index: {}]
  %s9 = inlined_call_operand.vmem [shape: bf16[2,512,128], index: 9, kind: input, shape index: {}]
  %s10 = inlined_call_operand.hbm [shape: f32[2,1,128], index: 10, kind: input, shape index: {}]
  %s11 = inlined_call_operand.hbm [shape: f32[2,2,128], index: 11, kind: input, shape index: {}]
  %s12 = inlined_call_operand.hbm [shape: bf16[128,128], index: 12, kind: input, shape index: {}]
  %s13 = inlined_call_operand.vmem [shape: f32[1,128], index: 13, kind: input, shape index: {}]
  %s14 = inlined_call_operand.hbm [shape: f32[2,1,128], index: 14, kind: output, shape index: {}]
  %s15 = sld [smem:[#allocation0]]
  $region117: #{custom_model_forward.1} parent=0
    _
  %s17 = ssub.s32 1, %s15
  %s18 = scalar_select 0, %s17, %s15
  $region1: #{custom_model_forward.1} parent=0
    #allocation3 [shape = 'u8[196608]{0}', space=vmem, size = 0x30000, scoped, tag = 'input window, operand 2']
    #allocation4 [shape = 's32[2]{0}', space=sflag, size = 0x8, scoped, tag = 'scoped memory for custom_model_forward.1']
    #allocation5 [shape = 's32[2]{0}', space=sflag, size = 0x8, scoped, tag = 'scoped memory for custom_model_forward.1']
    #allocation6 [shape = 'u8[1024]{0}', space=vmem, size = 0x400, scoped, tag = 'input window, operand 5']
    #allocation7 [shape = 's32[2]{0}', space=sflag, size = 0x8, scoped, tag = 'scoped memory for custom_model_forward.1']
    #allocation8 [shape = 'u8[1024]{0}', space=vmem, size = 0x400, scoped, tag = 'input window, operand 10']
    #allocation9 [shape = 'u8[2048]{0}', space=vmem, size = 0x800, scoped, tag = 'input window, operand 11']
    #allocation10 [shape = 's32[2]{0}', space=sflag, size = 0x8, scoped, tag = 'scoped memory for custom_model_forward.1']
    #allocation11 [shape = 'u8[32768]{0}', space=vmem, size = 0x8000, scoped, tag = 'input window, operand 12, single buffered']
    #allocation12 [shape = 'u8[1024]{0}', space=vmem, size = 0x400, scoped, tag = 'output window, operand 0']
    %19 = vsyncpa [#allocation4], 0
    %s20 = scalar_lea.sflag [#allocation4], 1
    %21 = vsyncpa %s20, 0
    %22 = vsyncpa [#allocation7], 0
    %s23 = scalar_lea.sflag [#allocation7], 1
    %24 = vsyncpa %s23, 0
    %25 = vsyncpa [#allocation10], 0
    %s26 = scalar_lea.sflag [#allocation10], 1
    %27 = vsyncpa %s26, 0
    %28 = vsyncpa [#allocation5], 0
    %s29 = scalar_lea.sflag [#allocation5], 1
    %30 = vsyncpa %s29, 0
    loop: start=0, step=1, limit=6
    $region2: #{custom_model_forward.1} parent=1 // loop_pre_header
      _
    $region3: #{custom_model_forward.1} parent=1 // loop_header
      %s32 = sphi 0, %s36
      %p33 = scmp.ge.s32.totalorder %s32, 6
      %s39 = sphi 0, %s51
      %s40 = sphi 0, %s47
      %s41 = sphi 0, %s39
      %s42 = sphi 0, %s40
      %s43 = sphi 0, %s41
      %s44 = sphi 0, %s42
      %s54 = sphi 0, %s56
      %s57 = sphi 0, %s54
      %s58 = sphi 0, %s57
      %s74 = sphi 0, %s58
      %s80 = sphi 0, %s82
      %s83 = sphi 0, %s80
      %s84 = sphi 0, %s83
      %s100 = sphi 0, %s84
      %s106 = sphi 0, %s108
      %s109 = sphi 0, %s106
      %s110 = sphi 0, %s109
      %s126 = sphi 0, %s110
      %s132 = sphi 0, %s134
      %s135 = sphi 0, %s132
      %s136 = sphi 0, %s135
      %s152 = sphi 0, %s136
      %s158 = sphi 0, %s160
      %s161 = sphi 0, %s158
      %s162 = sphi 0, %s161
      %s178 = sphi 0, %s162
      %s184 = sphi 0, %s186
      %s187 = sphi 0, %s184
      %s188 = sphi 0, %s187
      %s204 = sphi 0, %s188
      %s210 = sphi 0, %s212
      %s213 = sphi 0, %s210
      %s214 = sphi 0, %s213
      %s230 = sphi 0, %s214
      %s236 = sphi 0, %s238
      %s239 = sphi 0, %s236
      %s240 = sphi 0, %s239
      %s256 = sphi 0, %s240
      %s262 = sphi 0, %s264
      %s265 = sphi 0, %s262
      %s266 = sphi 0, %s265
      %s282 = sphi 0, %s266
      %s288 = sphi 0, %s290
      %s291 = sphi 0, %s288
      %s292 = sphi 0, %s291
      %s308 = sphi 0, %s292
      %s314 = sphi 0, %s316
      %s317 = sphi 0, %s314
      %s318 = sphi 0, %s317
      %s334 = sphi 0, %s318
      %s340 = sphi 0, %s342
      %s343 = sphi 0, %s340
      %s344 = sphi 0, %s343
      %s360 = sphi 0, %s344
      %s364 = sphi 0, %s364
      %s366 = sphi 0, %s364
      %s367 = sphi 0, %s366
      %s381 = sphi 0, %s367
      %s385 = sphi 0, %s385
      %s387 = sphi 0, %s385
      %s388 = sphi 0, %s387
      %s402 = sphi 0, %s388
      %s408 = sphi 0, %s410
      %s411 = sphi 0, %s408
      %s412 = sphi 0, %s411
      %s428 = sphi 0, %s412
    $region4: #{custom_model_forward.1} parent=1 // loop_header_branch
      %35 = sbr.rel (%p33) target = $region8
    $region5: #{custom_model_forward.1} parent=1 // loop_body
      %s37 = ssub.s32 %s32, 1
      %s38 = ssub.s32 %s32, 2
      %s45 = sadd.s32 1, %s40
      %p46 = scmp.ge.s32.totalorder %s45, 2
      %s47 = scalar_select %p46, 0, %s45
      %s48 = sadd.s32 1, %s39
      %s49 = scalar_select %p46, %s48, %s39
      %p50 = scmp.ge.s32.totalorder %s49, 2
      %s51 = scalar_select %p50, 0, %s49
      %s52 = ssub.s32 %s39, %s51
      %p53 = scmp.eq.s32.totalorder %s52, 0
      %s55 = sadd.s32 %s54, 1
      %s56 = scalar_select %p53, %s54, %s55
      %p59 = pneg %p53
      %p60 = scmp.eq.s32.totalorder %s32, 3
      %p61 = por %p59, %p60
      %p62 = scmp.ne.s32.totalorder %s54, %s57
      %p63 = scmp.eq.s32.totalorder %s32, 0
      %p64 = por %p62, %p63
      %p65 = scmp.ne.s32.totalorder %s54, %s57
      %p66 = scmp.eq.s32.totalorder %s37, 3
      %p67 = por %p65, %p66
      %p68 = scmp.ne.s32.totalorder %s57, %s58
      %p69 = scmp.eq.s32.totalorder %s37, 0
      %p70 = por %p68, %p69
      %p71 = scmp.ne.s32.totalorder %s57, %s58
      %p72 = scmp.eq.s32.totalorder %s38, 3
      %p73 = por %p71, %p72
      %p75 = scmp.ne.s32.totalorder %s58, %s74
      %p76 = scmp.eq.s32.totalorder %s38, 0
      %p77 = por %p75, %p76
      %s78 = ssub.s32 %s39, %s51
      %p79 = scmp.eq.s32.totalorder %s78, 0
      %s81 = sadd.s32 %s80, 1
      %s82 = scalar_select %p79, %s80, %s81
      %p85 = pneg %p79
      %p86 = scmp.eq.s32.totalorder %s32, 3
      %p87 = por %p85, %p86
      %p88 = scmp.ne.s32.totalorder %s80, %s83
      %p89 = scmp.eq.s32.totalorder %s32, 0
      %p90 = por %p88, %p89
      %p91 = scmp.ne.s32.totalorder %s80, %s83
      %p92 = scmp.eq.s32.totalorder %s37, 3
      %p93 = por %p91, %p92
      %p94 = scmp.ne.s32.totalorder %s83, %s84
      %p95 = scmp.eq.s32.totalorder %s37, 0
      %p96 = por %p94, %p95
      %p97 = scmp.ne.s32.totalorder %s83, %s84
      %p98 = scmp.eq.s32.totalorder %s38, 3
      %p99 = por %p97, %p98
      %p101 = scmp.ne.s32.totalorder %s84, %s100
      %p102 = scmp.eq.s32.totalorder %s38, 0
      %p103 = por %p101, %p102
      %s104 = ssub.s32 %s40, %s47
      %p105 = scmp.eq.s32.totalorder %s104, 0
      %s107 = sadd.s32 %s106, 1
      %s108 = scalar_select %p105, %s106, %s107
      %p111 = pneg %p105
      %p112 = scmp.eq.s32.totalorder %s32, 3
      %p113 = por %p111, %p112
      %p114 = scmp.ne.s32.totalorder %s106, %s109
      %p115 = scmp.eq.s32.totalorder %s32, 0
      %p116 = por %p114, %p115
      %p117 = scmp.ne.s32.totalorder %s106, %s109
      %p118 = scmp.eq.s32.totalorder %s37, 3
      %p119 = por %p117, %p118
      %p120 = scmp.ne.s32.totalorder %s109, %s110
      %p121 = scmp.eq.s32.totalorder %s37, 0
      %p122 = por %p120, %p121
      %p123 = scmp.ne.s32.totalorder %s109, %s110
      %p124 = scmp.eq.s32.totalorder %s38, 3
      %p125 = por %p123, %p124
      %p127 = scmp.ne.s32.totalorder %s110, %s126
      %p128 = scmp.eq.s32.totalorder %s38, 0
      %p129 = por %p127, %p128
      %s130 = ssub.s32 %s40, %s47
      %p131 = scmp.eq.s32.totalorder %s130, 0
      %s133 = sadd.s32 %s132, 1
      %s134 = scalar_select %p131, %s132, %s133
      %p137 = pneg %p131
      %p138 = scmp.eq.s32.totalorder %s32, 3
      %p139 = por %p137, %p138
      %p140 = scmp.ne.s32.totalorder %s132, %s135
      %p141 = scmp.eq.s32.totalorder %s32, 0
      %p142 = por %p140, %p141
      %p143 = scmp.ne.s32.totalorder %s132, %s135
      %p144 = scmp.eq.s32.totalorder %s37, 3
      %p145 = por %p143, %p144
      %p146 = scmp.ne.s32.totalorder %s135, %s136
      %p147 = scmp.eq.s32.totalorder %s37, 0
      %p148 = por %p146, %p147
      %p149 = scmp.ne.s32.totalorder %s135, %s136
      %p150 = scmp.eq.s32.totalorder %s38, 3
      %p151 = por %p149, %p150
      %p153 = scmp.ne.s32.totalorder %s136, %s152
      %p154 = scmp.eq.s32.totalorder %s38, 0
      %p155 = por %p153, %p154
      %s156 = ssub.s32 %s40, %s47
      %p157 = scmp.eq.s32.totalorder %s156, 0
      %s159 = sadd.s32 %s158, 1
      %s160 = scalar_select %p157, %s158, %s159
      %p163 = pneg %p157
      %p164 = scmp.eq.s32.totalorder %s32, 3
      %p165 = por %p163, %p164
      %p166 = scmp.ne.s32.totalorder %s158, %s161
      %p167 = scmp.eq.s32.totalorder %s32, 0
      %p168 = por %p166, %p167
      %p169 = scmp.ne.s32.totalorder %s158, %s161
      %p170 = scmp.eq.s32.totalorder %s37, 3
      %p171 = por %p169, %p170
      %p172 = scmp.ne.s32.totalorder %s161, %s162
      %p173 = scmp.eq.s32.totalorder %s37, 0
      %p174 = por %p172, %p173
      %p175 = scmp.ne.s32.totalorder %s161, %s162
      %p176 = scmp.eq.s32.totalorder %s38, 3
      %p177 = por %p175, %p176
      %p179 = scmp.ne.s32.totalorder %s162, %s178
      %p180 = scmp.eq.s32.totalorder %s38, 0
      %p181 = por %p179, %p180
      %s182 = ssub.s32 %s40, %s47
      %p183 = scmp.eq.s32.totalorder %s182, 0
      %s185 = sadd.s32 %s184, 1
      %s186 = scalar_select %p183, %s184, %s185
      %p189 = pneg %p183
      %p190 = scmp.eq.s32.totalorder %s32, 3
      %p191 = por %p189, %p190
      %p192 = scmp.ne.s32.totalorder %s184, %s187
      %p193 = scmp.eq.s32.totalorder %s32, 0
      %p194 = por %p192, %p193
      %p195 = scmp.ne.s32.totalorder %s184, %s187
      %p196 = scmp.eq.s32.totalorder %s37, 3
      %p197 = por %p195, %p196
      %p198 = scmp.ne.s32.totalorder %s187, %s188
      %p199 = scmp.eq.s32.totalorder %s37, 0
      %p200 = por %p198, %p199
      %p201 = scmp.ne.s32.totalorder %s187, %s188
      %p202 = scmp.eq.s32.totalorder %s38, 3
      %p203 = por %p201, %p202
      %p205 = scmp.ne.s32.totalorder %s188, %s204
      %p206 = scmp.eq.s32.totalorder %s38, 0
      %p207 = por %p205, %p206
      %s208 = ssub.s32 %s40, %s47
      %p209 = scmp.eq.s32.totalorder %s208, 0
      %s211 = sadd.s32 %s210, 1
      %s212 = scalar_select %p209, %s210, %s211
      %p215 = pneg %p209
      %p216 = scmp.eq.s32.totalorder %s32, 3
      %p217 = por %p215, %p216
      %p218 = scmp.ne.s32.totalorder %s210, %s213
      %p219 = scmp.eq.s32.totalorder %s32, 0
      %p220 = por %p218, %p219
      %p221 = scmp.ne.s32.totalorder %s210, %s213
      %p222 = scmp.eq.s32.totalorder %s37, 3
      %p223 = por %p221, %p222
      %p224 = scmp.ne.s32.totalorder %s213, %s214
      %p225 = scmp.eq.s32.totalorder %s37, 0
      %p226 = por %p224, %p225
      %p227 = scmp.ne.s32.totalorder %s213, %s214
      %p228 = scmp.eq.s32.totalorder %s38, 3
      %p229 = por %p227, %p228
      %p231 = scmp.ne.s32.totalorder %s214, %s230
      %p232 = scmp.eq.s32.totalorder %s38, 0
      %p233 = por %p231, %p232
      %s234 = ssub.s32 %s40, %s47
      %p235 = scmp.eq.s32.totalorder %s234, 0
      %s237 = sadd.s32 %s236, 1
      %s238 = scalar_select %p235, %s236, %s237
      %p241 = pneg %p235
      %p242 = scmp.eq.s32.totalorder %s32, 3
      %p243 = por %p241, %p242
      %p244 = scmp.ne.s32.totalorder %s236, %s239
      %p245 = scmp.eq.s32.totalorder %s32, 0
      %p246 = por %p244, %p245
      %p247 = scmp.ne.s32.totalorder %s236, %s239
      %p248 = scmp.eq.s32.totalorder %s37, 3
      %p249 = por %p247, %p248
      %p250 = scmp.ne.s32.totalorder %s239, %s240
      %p251 = scmp.eq.s32.totalorder %s37, 0
      %p252 = por %p250, %p251
      %p253 = scmp.ne.s32.totalorder %s239, %s240
      %p254 = scmp.eq.s32.totalorder %s38, 3
      %p255 = por %p253, %p254
      %p257 = scmp.ne.s32.totalorder %s240, %s256
      %p258 = scmp.eq.s32.totalorder %s38, 0
      %p259 = por %p257, %p258
      %s260 = ssub.s32 %s40, %s47
      %p261 = scmp.eq.s32.totalorder %s260, 0
      %s263 = sadd.s32 %s262, 1
      %s264 = scalar_select %p261, %s262, %s263
      %p267 = pneg %p261
      %p268 = scmp.eq.s32.totalorder %s32, 3
      %p269 = por %p267, %p268
      %p270 = scmp.ne.s32.totalorder %s262, %s265
      %p271 = scmp.eq.s32.totalorder %s32, 0
      %p272 = por %p270, %p271
      %p273 = scmp.ne.s32.totalorder %s262, %s265
      %p274 = scmp.eq.s32.totalorder %s37, 3
      %p275 = por %p273, %p274
      %p276 = scmp.ne.s32.totalorder %s265, %s266
      %p277 = scmp.eq.s32.totalorder %s37, 0
      %p278 = por %p276, %p277
      %p279 = scmp.ne.s32.totalorder %s265, %s266
      %p280 = scmp.eq.s32.totalorder %s38, 3
      %p281 = por %p279, %p280
      %p283 = scmp.ne.s32.totalorder %s266, %s282
      %p284 = scmp.eq.s32.totalorder %s38, 0
      %p285 = por %p283, %p284
      %s286 = ssub.s32 %s40, %s47
      %p287 = scmp.eq.s32.totalorder %s286, 0
      %s289 = sadd.s32 %s288, 1
      %s290 = scalar_select %p287, %s288, %s289
      %p293 = pneg %p287
      %p294 = scmp.eq.s32.totalorder %s32, 3
      %p295 = por %p293, %p294
      %p296 = scmp.ne.s32.totalorder %s288, %s291
      %p297 = scmp.eq.s32.totalorder %s32, 0
      %p298 = por %p296, %p297
      %p299 = scmp.ne.s32.totalorder %s288, %s291
      %p300 = scmp.eq.s32.totalorder %s37, 3
      %p301 = por %p299, %p300
      %p302 = scmp.ne.s32.totalorder %s291, %s292
      %p303 = scmp.eq.s32.totalorder %s37, 0
      %p304 = por %p302, %p303
      %p305 = scmp.ne.s32.totalorder %s291, %s292
      %p306 = scmp.eq.s32.totalorder %s38, 3
      %p307 = por %p305, %p306
      %p309 = scmp.ne.s32.totalorder %s292, %s308
      %p310 = scmp.eq.s32.totalorder %s38, 0
      %p311 = por %p309, %p310
      %s312 = ssub.s32 %s40, %s47
      %p313 = scmp.eq.s32.totalorder %s312, 0
      %s315 = sadd.s32 %s314, 1
      %s316 = scalar_select %p313, %s314, %s315
      %p319 = pneg %p313
      %p320 = scmp.eq.s32.totalorder %s32, 3
      %p321 = por %p319, %p320
      %p322 = scmp.ne.s32.totalorder %s314, %s317
      %p323 = scmp.eq.s32.totalorder %s32, 0
      %p324 = por %p322, %p323
      %p325 = scmp.ne.s32.totalorder %s314, %s317
      %p326 = scmp.eq.s32.totalorder %s37, 3
      %p327 = por %p325, %p326
      %p328 = scmp.ne.s32.totalorder %s317, %s318
      %p329 = scmp.eq.s32.totalorder %s37, 0
      %p330 = por %p328, %p329
      %p331 = scmp.ne.s32.totalorder %s317, %s318
      %p332 = scmp.eq.s32.totalorder %s38, 3
      %p333 = por %p331, %p332
      %p335 = scmp.ne.s32.totalorder %s318, %s334
      %p336 = scmp.eq.s32.totalorder %s38, 0
      %p337 = por %p335, %p336
      %s338 = ssub.s32 %s40, %s47
      %p339 = scmp.eq.s32.totalorder %s338, 0
      %s341 = sadd.s32 %s340, 1
      %s342 = scalar_select %p339, %s340, %s341
      %p345 = pneg %p339
      %p346 = scmp.eq.s32.totalorder %s32, 3
      %p347 = por %p345, %p346
      %p348 = scmp.ne.s32.totalorder %s340, %s343
      %p349 = scmp.eq.s32.totalorder %s32, 0
      %p350 = por %p348, %p349
      %p351 = scmp.ne.s32.totalorder %s340, %s343
      %p352 = scmp.eq.s32.totalorder %s37, 3
      %p353 = por %p351, %p352
      %p354 = scmp.ne.s32.totalorder %s343, %s344
      %p355 = scmp.eq.s32.totalorder %s37, 0
      %p356 = por %p354, %p355
      %p357 = scmp.ne.s32.totalorder %s343, %s344
      %p358 = scmp.eq.s32.totalorder %s38, 3
      %p359 = por %p357, %p358
      %p361 = scmp.ne.s32.totalorder %s344, %s360
      %p362 = scmp.eq.s32.totalorder %s38, 0
      %p363 = por %p361, %p362
      %s365 = sadd.s32 %s364, 1
      %p368 = scmp.eq.s32.totalorder %s32, 3
      %p369 = scmp.ne.s32.totalorder %s364, %s366
      %p370 = scmp.eq.s32.totalorder %s32, 0
      %p371 = por %p369, %p370
      %p372 = scmp.ne.s32.totalorder %s364, %s366
      %p373 = scmp.eq.s32.totalorder %s37, 3
      %p374 = por %p372, %p373
      %p375 = scmp.ne.s32.totalorder %s366, %s367
      %p376 = scmp.eq.s32.totalorder %s37, 0
      %p377 = por %p375, %p376
      %p378 = scmp.ne.s32.totalorder %s366, %s367
      %p379 = scmp.eq.s32.totalorder %s38, 3
      %p380 = por %p378, %p379
      %p382 = scmp.ne.s32.totalorder %s367, %s381
      %p383 = scmp.eq.s32.totalorder %s38, 0
      %p384 = por %p382, %p383
      %s386 = sadd.s32 %s385, 1
      %p389 = scmp.eq.s32.totalorder %s32, 3
      %p390 = scmp.ne.s32.totalorder %s385, %s387
      %p391 = scmp.eq.s32.totalorder %s32, 0
      %p392 = por %p390, %p391
      %p393 = scmp.ne.s32.totalorder %s385, %s387
      %p394 = scmp.eq.s32.totalorder %s37, 3
      %p395 = por %p393, %p394
      %p396 = scmp.ne.s32.totalorder %s387, %s388
      %p397 = scmp.eq.s32.totalorder %s37, 0
      %p398 = por %p396, %p397
      %p399 = scmp.ne.s32.totalorder %s387, %s388
      %p400 = scmp.eq.s32.totalorder %s38, 3
      %p401 = por %p399, %p400
      %p403 = scmp.ne.s32.totalorder %s388, %s402
      %p404 = scmp.eq.s32.totalorder %s38, 0
      %p405 = por %p403, %p404
      %s406 = ssub.s32 %s39, %s51
      %p407 = scmp.eq.s32.totalorder %s406, 0
      %s409 = sadd.s32 %s408, 1
      %s410 = scalar_select %p407, %s408, %s409
      %p413 = pneg %p407
      %p414 = scmp.eq.s32.totalorder %s32, 3
      %p415 = por %p413, %p414
      %p416 = scmp.ne.s32.totalorder %s408, %s411
      %p417 = scmp.eq.s32.totalorder %s32, 0
      %p418 = por %p416, %p417
      %p419 = scmp.ne.s32.totalorder %s408, %s411
      %p420 = scmp.eq.s32.totalorder %s37, 3
      %p421 = por %p419, %p420
      %p422 = scmp.ne.s32.totalorder %s411, %s412
      %p423 = scmp.eq.s32.totalorder %s37, 0
      %p424 = por %p422, %p423
      %p425 = scmp.ne.s32.totalorder %s411, %s412
      %p426 = scmp.eq.s32.totalorder %s38, 3
      %p427 = por %p425, %p426
      %p429 = scmp.ne.s32.totalorder %s412, %s428
      %p430 = scmp.eq.s32.totalorder %s38, 0
      %p431 = por %p429, %p430
      %p432 = scmp.le.s32.totalorder 1, %s32
      %p433 = scmp.lt.s32.totalorder %s32, 5
      %p434 = pnand %p432, %p433
      %p435 = pneg %p434
      // Predicated region
      $region9: #{custom_model_forward.1} parent=5 // pred_check
        _
      $region10: #{custom_model_forward.1} parent=5 // pred_check_branch
        %437 = sbr.rel (%p434) target = $region12
      $region11: #{custom_model_forward.1} parent=5 // pred_region
        %s438 = ssub.s32 %s32, 1
        // Predicated region
        $region13: #{custom_model_forward.1} parent=11 // pred_check
          %p439 = pneg %p377
        $region14: #{custom_model_forward.1} parent=11 // pred_check_branch
          %441 = sbr.rel (%p439) target = $region16
        $region15: #{custom_model_forward.1} parent=11 // pred_region
          %443 = vsyncadd [#allocation10], 0
          %s444 = sshll.u32 %s12, 4
          %s445 = int_to_ptr.hbm [resolvable:$true] %s444
          %s446 = sshll.u32 [#allocation11], 4
          %s447 = int_to_ptr.vmem [resolvable:$true] %s446
          %452 = dma.hbm_to_vmem [thread:$0]  %s445, 1024, %s447, [#allocation10], 64, 64, 4
        $region16: #{custom_model_forward.1} parent=11 // pred_fallthru
          _
        // Predicated region
        $region17: #{custom_model_forward.1} parent=11 // pred_check
          %p453 = pneg %p398
        $region18: #{custom_model_forward.1} parent=11 // pred_check_branch
          %455 = sbr.rel (%p453) target = $region20
        $region19: #{custom_model_forward.1} parent=11 // pred_region
          _
        $region20: #{custom_model_forward.1} parent=11 // pred_fallthru
          _
      $region12: #{custom_model_forward.1} parent=5 // pred_fallthru
        _
      %p456 = scmp.lt.s32.totalorder %s32, 4
      // Predicated region
      $region21: #{custom_model_forward.1} parent=5 // pred_check
        %p457 = pneg %p456
      $region22: #{custom_model_forward.1} parent=5 // pred_check_branch
        %459 = sbr.rel (%p457) target = $region24
      $region23: #{custom_model_forward.1} parent=5 // pred_region
        // Predicated region
        $region25: #{custom_model_forward.1} parent=23 // pred_check
          %p460 = pneg %p64
        $region26: #{custom_model_forward.1} parent=23 // pred_check_branch
          %462 = sbr.rel (%p460) target = $region28
        $region27: #{custom_model_forward.1} parent=23 // pred_region
          %p463 = scmp.lt.s32.totalorder %s39, 1
          %s464 = scalar_select %p463, %s39, 1
          %s465 = smul.addr %s464, 16
          %s466 = smul.addr %s465, 4
          %s467 = scalar_lea.vmem %s0, %s466
        $region28: #{custom_model_forward.1} parent=23 // pred_fallthru
          _
        // Predicated region
        $region29: #{custom_model_forward.1} parent=23 // pred_check
          %p468 = pneg %p90
        $region30: #{custom_model_forward.1} parent=23 // pred_check_branch
          %470 = sbr.rel (%p468) target = $region32
        $region31: #{custom_model_forward.1} parent=23 // pred_region
          %p471 = scmp.lt.s32.totalorder %s39, 1
          %s472 = scalar_select %p471, %s39, 1
          %s473 = scalar_lea.vmem %s1, %s472
        $region32: #{custom_model_forward.1} parent=23 // pred_fallthru
          _
        // Predicated region
        $region33: #{custom_model_forward.1} parent=23 // pred_check
          %p474 = pneg %p116
        $region34: #{custom_model_forward.1} parent=23 // pred_check_branch
          %476 = sbr.rel (%p474) target = $region36
        $region35: #{custom_model_forward.1} parent=23 // pred_region
          %s477 = sand.u32 %s106, 1
          %s478 = scalar_lea.sflag [#allocation4], %s477
          %s479 = sand.u32 %s106, 1
          %s480 = smul.addr %s479, 192
          %s481 = scalar_lea.vmem [#allocation3], %s480
          %483 = vsyncadd %s478, 0
          %s484 = smul.addr %s40, 48
          %s485 = smul.addr %s484, 4
          %s486 = scalar_lea.hbm %s2, %s485
          %s487 = sshll.u32 %s486, 4
          %s488 = int_to_ptr.hbm [resolvable:$true] %s487
          %s489 = sshll.u32 %s481, 4
          %s490 = int_to_ptr.vmem [resolvable:$true] %s489
          %495 = dma.hbm_to_vmem [thread:$0]  %s488, 3072, %s490, %s478, 192, 192, 12
        $region36: #{custom_model_forward.1} parent=23 // pred_fallthru
          _
        // Predicated region
        $region37: #{custom_model_forward.1} parent=23 // pred_check
          %p496 = pneg %p142
        $region38: #{custom_model_forward.1} parent=23 // pred_check_branch
          %498 = sbr.rel (%p496) target = $region40
        $region39: #{custom_model_forward.1} parent=23 // pred_region
          %p499 = scmp.lt.s32.totalorder %s40, 1
          %s500 = scalar_select %p499, %s40, 1
          %s501 = smul.addr %s500, 3
          %s502 = scalar_lea.vmem %s3, %s501
        $region40: #{custom_model_forward.1} parent=23 // pred_fallthru
          _
        // Predicated region
        $region41: #{custom_model_forward.1} parent=23 // pred_check
          %p503 = pneg %p168
        $region42: #{custom_model_forward.1} parent=23 // pred_check_branch
          %505 = sbr.rel (%p503) target = $region44
        $region43: #{custom_model_forward.1} parent=23 // pred_region
          %p506 = scmp.lt.s32.totalorder %s40, 1
          %s507 = scalar_select %p506, %s40, 1
          %s508 = smul.addr %s507, 16
          %s509 = smul.addr %s508, 4
          %s510 = scalar_lea.vmem %s4, %s509
        $region44: #{custom_model_forward.1} parent=23 // pred_fallthru
          _
        // Predicated region
        $region45: #{custom_model_forward.1} parent=23 // pred_check
          %p511 = pneg %p194
        $region46: #{custom_model_forward.1} parent=23 // pred_check_branch
          %513 = sbr.rel (%p511) target = $region48
        $region47: #{custom_model_forward.1} parent=23 // pred_region
          %s514 = sand.u32 %s32, 1
          %s515 = scalar_lea.sflag [#allocation7], %s514
          %s516 = sand.u32 %s184, 1
          %s517 = scalar_lea.vmem [#allocation6], %s516
          %519 = vsyncadd %s515, 0
          %s520 = scalar_lea.hbm %s5, %s40
          %s522 = sshll.u32 %s520, 4
          %s523 = int_to_ptr.hbm [resolvable:$true] %s522
          %s524 = sshll.u32 %s517, 4
          %s525 = int_to_ptr.vmem [resolvable:$true] %s524
          %527 = dma.hbm_to_vmem [thread:$0]  %s523, 16, %s525, %s515
        $region48: #{custom_model_forward.1} parent=23 // pred_fallthru
          _
        // Predicated region
        $region49: #{custom_model_forward.1} parent=23 // pred_check
          %p528 = pneg %p220
        $region50: #{custom_model_forward.1} parent=23 // pred_check_branch
          %530 = sbr.rel (%p528) target = $region52
        $region51: #{custom_model_forward.1} parent=23 // pred_region
          %p531 = scmp.lt.s32.totalorder %s40, 1
          %s532 = scalar_select %p531, %s40, 1
          %s533 = smul.addr %s532, 2
          %s534 = scalar_lea.vmem %s6, %s533
        $region52: #{custom_model_forward.1} parent=23 // pred_fallthru
          _
        // Predicated region
        $region53: #{custom_model_forward.1} parent=23 // pred_check
          %p535 = pneg %p246
        $region54: #{custom_model_forward.1} parent=23 // pred_check_branch
          %537 = sbr.rel (%p535) target = $region56
        $region55: #{custom_model_forward.1} parent=23 // pred_region
          %p538 = scmp.lt.s32.totalorder %s40, 1
          %s539 = scalar_select %p538, %s40, 1
          %s540 = smul.addr %s539, 64
          %s541 = smul.addr %s540, 4
          %s542 = scalar_lea.vmem %s7, %s541
        $region56: #{custom_model_forward.1} parent=23 // pred_fallthru
          _
        // Predicated region
        $region57: #{custom_model_forward.1} parent=23 // pred_check
          %p543 = pneg %p272
        $region58: #{custom_model_forward.1} parent=23 // pred_check_branch
          %545 = sbr.rel (%p543) target = $region60
        $region59: #{custom_model_forward.1} parent=23 // pred_region
          %p546 = scmp.lt.s32.totalorder %s40, 1
          %s547 = scalar_select %p546, %s40, 1
          %s548 = smul.addr %s547, 4
          %s549 = scalar_lea.vmem %s8, %s548
        $region60: #{custom_model_forward.1} parent=23 // pred_fallthru
          _
        // Predicated region
        $region61: #{custom_model_forward.1} parent=23 // pred_check
          %p550 = pneg %p298
        $region62: #{custom_model_forward.1} parent=23 // pred_check_branch
          %552 = sbr.rel (%p550) target = $region64
        $region63: #{custom_model_forward.1} parent=23 // pred_region
          %p553 = scmp.lt.s32.totalorder %s40, 1
          %s554 = scalar_select %p553, %s40, 1
          %s555 = smul.addr %s554, 64
          %s556 = smul.addr %s555, 4
          %s557 = scalar_lea.vmem %s9, %s556
        $region64: #{custom_model_forward.1} parent=23 // pred_fallthru
          _
        // Predicated region
        $region65: #{custom_model_forward.1} parent=23 // pred_check
          %p558 = pneg %p324
        $region66: #{custom_model_forward.1} parent=23 // pred_check_branch
          %560 = sbr.rel (%p558) target = $region68
        $region67: #{custom_model_forward.1} parent=23 // pred_region
          %s561 = sand.u32 %s32, 1
          %s562 = scalar_lea.sflag [#allocation7], %s561
          %s563 = sand.u32 %s314, 1
          %s564 = scalar_lea.vmem [#allocation8], %s563
          %566 = vsyncadd %s562, 0
          %s567 = scalar_lea.hbm %s10, %s40
          %s569 = sshll.u32 %s567, 4
          %s570 = int_to_ptr.hbm [resolvable:$true] %s569
          %s571 = sshll.u32 %s564, 4
          %s572 = int_to_ptr.vmem [resolvable:$true] %s571
          %574 = dma.hbm_to_vmem [thread:$0]  %s570, 16, %s572, %s562
        $region68: #{custom_model_forward.1} parent=23 // pred_fallthru
          _
        // Predicated region
        $region69: #{custom_model_forward.1} parent=23 // pred_check
          %p575 = pneg %p350
        $region70: #{custom_model_forward.1} parent=23 // pred_check_branch
          %577 = sbr.rel (%p575) target = $region72
        $region71: #{custom_model_forward.1} parent=23 // pred_region
          %s578 = sand.u32 %s32, 1
          %s579 = scalar_lea.sflag [#allocation10], %s578
          %s580 = sand.u32 %s340, 1
          %s581 = smul.addr %s580, 2
          %s582 = scalar_lea.vmem [#allocation9], %s581
          %584 = vsyncadd %s579, 0
          %s585 = smul.addr %s40, 2
          %s586 = scalar_lea.hbm %s11, %s585
          %s588 = sshll.u32 %s586, 4
          %s589 = int_to_ptr.hbm [resolvable:$true] %s588
          %s590 = sshll.u32 %s582, 4
          %s591 = int_to_ptr.vmem [resolvable:$true] %s590
          %593 = dma.hbm_to_vmem [thread:$0]  %s589, 32, %s591, %s579
        $region72: #{custom_model_forward.1} parent=23 // pred_fallthru
          _
      $region24: #{custom_model_forward.1} parent=5 // pred_fallthru
        _
      %p594 = scmp.le.s32.totalorder 1, %s32
      %p595 = scmp.lt.s32.totalorder %s32, 5
      %p596 = pnand %p594, %p595
      %p597 = pneg %p596
      // Predicated region
      $region73: #{custom_model_forward.1} parent=5 // pred_check
        _
      $region74: #{custom_model_forward.1} parent=5 // pred_check_branch
        %599 = sbr.rel (%p596) target = $region76
      $region75: #{custom_model_forward.1} parent=5 // pred_region
        %s600 = ssub.s32 %s32, 1
        %s601 = sand.u32 %s109, 1
        %s602 = scalar_lea.sflag [#allocation4], %s601
        %s603 = sand.u32 %s109, 1
        %s604 = smul.addr %s603, 192
        %s605 = scalar_lea.vmem [#allocation3], %s604
        // Predicated region
        $region77: #{custom_model_forward.1} parent=75 // pred_check
          %p606 = pneg %p122
        $region78: #{custom_model_forward.1} parent=75 // pred_check_branch
          %608 = sbr.rel (%p606) target = $region80
        $region79: #{custom_model_forward.1} parent=75 // pred_region
          %610 = dma.done %s602, 3072
        $region80: #{custom_model_forward.1} parent=75 // pred_fallthru
          _
        %s611 = sand.u32 %s37, 1
        %s612 = scalar_lea.sflag [#allocation7], %s611
        %s613 = sand.u32 %s187, 1
        %s614 = scalar_lea.vmem [#allocation6], %s613
        // Predicated region
        $region81: #{custom_model_forward.1} parent=75 // pred_check
          %p615 = pneg %p200
        $region82: #{custom_model_forward.1} parent=75 // pred_check_branch
          %617 = sbr.rel (%p615) target = $region84
        $region83: #{custom_model_forward.1} parent=75 // pred_region
          %619 = dma.done %s612, 16
        $region84: #{custom_model_forward.1} parent=75 // pred_fallthru
          _
        %s620 = sand.u32 %s37, 1
        %s621 = scalar_lea.sflag [#allocation7], %s620
        %s622 = sand.u32 %s317, 1
        %s623 = scalar_lea.vmem [#allocation8], %s622
        // Predicated region
        $region85: #{custom_model_forward.1} parent=75 // pred_check
          %p624 = pneg %p330
        $region86: #{custom_model_forward.1} parent=75 // pred_check_branch
          %626 = sbr.rel (%p624) target = $region88
        $region87: #{custom_model_forward.1} parent=75 // pred_region
          %628 = dma.done %s621, 16
        $region88: #{custom_model_forward.1} parent=75 // pred_fallthru
          _
        %s629 = sand.u32 %s37, 1
        %s630 = scalar_lea.sflag [#allocation10], %s629
        %s631 = sand.u32 %s343, 1
        %s632 = smul.addr %s631, 2
        %s633 = scalar_lea.vmem [#allocation9], %s632
        // Predicated region
        $region89: #{custom_model_forward.1} parent=75 // pred_check
          %p634 = pneg %p356
        $region90: #{custom_model_forward.1} parent=75 // pred_check_branch
          %636 = sbr.rel (%p634) target = $region92
        $region91: #{custom_model_forward.1} parent=75 // pred_region
          %638 = dma.done %s630, 32
        $region92: #{custom_model_forward.1} parent=75 // pred_fallthru
          _
        // Predicated region
        $region93: #{custom_model_forward.1} parent=75 // pred_check
          %p639 = pneg %p377
        $region94: #{custom_model_forward.1} parent=75 // pred_check_branch
          %641 = sbr.rel (%p639) target = $region96
        $region95: #{custom_model_forward.1} parent=75 // pred_region
          %643 = dma.done [#allocation10], 1024
        $region96: #{custom_model_forward.1} parent=75 // pred_fallthru
          _
        %p644 = scmp.lt.s32.totalorder %s41, 1
        %s645 = scalar_select %p644, %s41, 1
        %s646 = smul.addr %s645, 16
        %s647 = smul.addr %s646, 4
        %s648 = scalar_lea.vmem %s0, %s647
        %p649 = pneg %p70
        %p650 = pneg %p67
        %p651 = scmp.lt.s32.totalorder %s41, 1
        %s652 = scalar_select %p651, %s41, 1
        %s653 = scalar_lea.vmem %s1, %s652
        %p654 = pneg %p96
        %p655 = pneg %p93
        %s656 = sand.u32 %s109, 1
        %s657 = scalar_lea.sflag [#allocation4], %s656
        %s658 = sand.u32 %s109, 1
        %s659 = smul.addr %s658, 192
        %s660 = scalar_lea.vmem [#allocation3], %s659
        %p661 = pneg %p122
        %p662 = pneg %p119
        %p663 = scmp.lt.s32.totalorder %s42, 1
        %s664 = scalar_select %p663, %s42, 1
        %s665 = smul.addr %s664, 3
        %s666 = scalar_lea.vmem %s3, %s665
        %p667 = pneg %p148
        %p668 = pneg %p145
        %p669 = scmp.lt.s32.totalorder %s42, 1
        %s670 = scalar_select %p669, %s42, 1
        %s671 = smul.addr %s670, 16
        %s672 = smul.addr %s671, 4
        %s673 = scalar_lea.vmem %s4, %s672
        %p674 = pneg %p174
        %p675 = pneg %p171
        %s676 = sand.u32 %s37, 1
        %s677 = scalar_lea.sflag [#allocation7], %s676
        %s678 = sand.u32 %s187, 1
        %s679 = scalar_lea.vmem [#allocation6], %s678
        %p680 = pneg %p200
        %p681 = pneg %p197
        %p682 = scmp.lt.s32.totalorder %s42, 1
        %s683 = scalar_select %p682, %s42, 1
        %s684 = smul.addr %s683, 2
        %s685 = scalar_lea.vmem %s6, %s684
        %p686 = pneg %p226
        %p687 = pneg %p223
        %p688 = scmp.lt.s32.totalorder %s42, 1
        %s689 = scalar_select %p688, %s42, 1
        %s690 = smul.addr %s689, 64
        %s691 = smul.addr %s690, 4
        %s692 = scalar_lea.vmem %s7, %s691
        %p693 = pneg %p252
        %p694 = pneg %p249
        %p695 = scmp.lt.s32.totalorder %s42, 1
        %s696 = scalar_select %p695, %s42, 1
        %s697 = smul.addr %s696, 4
        %s698 = scalar_lea.vmem %s8, %s697
        %p699 = pneg %p278
        %p700 = pneg %p275
        %p701 = scmp.lt.s32.totalorder %s42, 1
        %s702 = scalar_select %p701, %s42, 1
        %s703 = smul.addr %s702, 64
        %s704 = smul.addr %s703, 4
        %s705 = scalar_lea.vmem %s9, %s704
        %p706 = pneg %p304
        %p707 = pneg %p301
        %s708 = sand.u32 %s37, 1
        %s709 = scalar_lea.sflag [#allocation7], %s708
        %s710 = sand.u32 %s317, 1
        %s711 = scalar_lea.vmem [#allocation8], %s710
        %p712 = pneg %p330
        %p713 = pneg %p327
        %s714 = sand.u32 %s37, 1
        %s715 = scalar_lea.sflag [#allocation10], %s714
        %s716 = sand.u32 %s343, 1
        %s717 = smul.addr %s716, 2
        %s718 = scalar_lea.vmem [#allocation9], %s717
        %p719 = pneg %p356
        %p720 = pneg %p353
        %p721 = pneg %p377
        %p722 = pneg %p374
        %p723 = pneg %p398
        %p724 = pneg %p395
        %p725 = pneg %p424
        %p726 = pneg %p421
        %s727 = sand.u32 %s411, 1
        %s728 = scalar_lea.sflag [#allocation5], %s727
        %s729 = sand.u32 %s411, 1
        %s730 = scalar_lea.vmem [#allocation12], %s729
        %p731 = scmp.lt.s32.totalorder %s41, 1
        %s732 = scalar_select %p731, %s41, 1
        %s733 = smul.addr %s732, 16
        %s734 = smul.addr %s733, 4
        %s735 = scalar_lea.vmem %s0, %s734
        %p736 = scmp.lt.s32.totalorder %s41, 1
        %s737 = scalar_select %p736, %s41, 1
        %s738 = scalar_lea.vmem %s1, %s737
        %p739 = scmp.lt.s32.totalorder %s42, 1
        %s740 = scalar_select %p739, %s42, 1
        %s741 = smul.addr %s740, 3
        %s742 = scalar_lea.vmem %s3, %s741
        %p743 = scmp.lt.s32.totalorder %s42, 1
        %s744 = scalar_select %p743, %s42, 1
        %s745 = smul.addr %s744, 16
        %s746 = smul.addr %s745, 4
        %s747 = scalar_lea.vmem %s4, %s746
        %p748 = scmp.lt.s32.totalorder %s42, 1
        %s749 = scalar_select %p748, %s42, 1
        %s750 = smul.addr %s749, 2
        %s751 = scalar_lea.vmem %s6, %s750
        %p752 = scmp.lt.s32.totalorder %s42, 1
        %s753 = scalar_select %p752, %s42, 1
        %s754 = smul.addr %s753, 64
        %s755 = smul.addr %s754, 4
        %s756 = scalar_lea.vmem %s7, %s755
        %p757 = scmp.lt.s32.totalorder %s42, 1
        %s758 = scalar_select %p757, %s42, 1
        %s759 = smul.addr %s758, 4
        %s760 = scalar_lea.vmem %s8, %s759
        %p761 = scmp.lt.s32.totalorder %s42, 1
        %s762 = scalar_select %p761, %s42, 1
        %s763 = smul.addr %s762, 64
        %s764 = smul.addr %s763, 4
        %s765 = scalar_lea.vmem %s9, %s764
        %p766 = scmp.eq.s32.totalorder %s42, 0
        // Predicated region
        $region97: #{custom_model_forward.1} parent=75 // pred_check
          %p767 = pneg %p766
        $region98: #{custom_model_forward.1} parent=75 // pred_check_branch
          %769 = sbr.rel (%p767) target = $region100
        $region99: #{custom_model_forward.1} parent=75 // pred_region
          %v770 = vld [vmem:[%s735] sm:$0xf]
          %v771 = vld [vmem:[%s735 + $0x4] sm:$0xf]
          %v772 = vld [vmem:[%s735 + $0x8] sm:$0xf]
          %v773 = vld [vmem:[%s735 + $0xc] sm:$0xf]
          %v774 = vld [vmem:[%s735 + $0x10] sm:$0xf]
          %v775 = vld [vmem:[%s735 + $0x14] sm:$0xf]
          %v776 = vld [vmem:[%s735 + $0x18] sm:$0xf]
          %v777 = vld [vmem:[%s735 + $0x1c] sm:$0xf]
          %v778 = vld [vmem:[%s735 + $0x20] sm:$0xf]
          %v779 = vld [vmem:[%s735 + $0x24] sm:$0xf]
          %v780 = vld [vmem:[%s735 + $0x28] sm:$0xf]
          %v781 = vld [vmem:[%s735 + $0x2c] sm:$0xf]
          %v782 = vld [vmem:[%s735 + $0x30] sm:$0xf]
          %v783 = vld [vmem:[%s735 + $0x34] sm:$0xf]
          %v784 = vld [vmem:[%s735 + $0x38] sm:$0xf]
          %v785 = vld [vmem:[%s735 + $0x3c] sm:$0xf]
          %v786 = vunpack.c.l.bf16 %v770
          %v787 = vunpack.c.l.bf16 %v771
          %v788 = vunpack.c.l.bf16 %v772
          %v789 = vunpack.c.l.bf16 %v773
          %v790 = vunpack.c.l.bf16 %v774
          %v791 = vunpack.c.l.bf16 %v775
          %v792 = vunpack.c.l.bf16 %v776
          %v793 = vunpack.c.l.bf16 %v777
          %v794 = vunpack.c.l.bf16 %v778
          %v795 = vunpack.c.l.bf16 %v779
          %v796 = vunpack.c.l.bf16 %v780
          %v797 = vunpack.c.l.bf16 %v781
          %v798 = vunpack.c.l.bf16 %v782
          %v799 = vunpack.c.l.bf16 %v783
          %v800 = vunpack.c.l.bf16 %v784
          %v801 = vunpack.c.l.bf16 %v785
          %802 = vst [vmem:[#allocation2] sm:$0xff] %v786
          %803 = vst [vmem:[#allocation2 + $0x8] sm:$0xff] %v787
          %804 = vst [vmem:[#allocation2 + $0x10] sm:$0xff] %v788
          %805 = vst [vmem:[#allocation2 + $0x18] sm:$0xff] %v789
          %806 = vst [vmem:[#allocation2 + $0x20] sm:$0xff] %v790
          %807 = vst [vmem:[#allocation2 + $0x28] sm:$0xff] %v791
          %808 = vst [vmem:[#allocation2 + $0x30] sm:$0xff] %v792
          %809 = vst [vmem:[#allocation2 + $0x38] sm:$0xff] %v793
          %810 = vst [vmem:[#allocation2 + $0x40] sm:$0xff] %v794
          %811 = vst [vmem:[#allocation2 + $0x48] sm:$0xff] %v795
          %812 = vst [vmem:[#allocation2 + $0x50] sm:$0xff] %v796
          %813 = vst [vmem:[#allocation2 + $0x58] sm:$0xff] %v797
          %814 = vst [vmem:[#allocation2 + $0x60] sm:$0xff] %v798
          %815 = vst [vmem:[#allocation2 + $0x68] sm:$0xff] %v799
          %816 = vst [vmem:[#allocation2 + $0x70] sm:$0xff] %v800
          %817 = vst [vmem:[#allocation2 + $0x78] sm:$0xff] %v801
        $region100: #{custom_model_forward.1} parent=75 // pred_fallthru
          _
        %v818 = vld [vmem:[#allocation2] sm:$0xff]
        %v819 = vld [vmem:[#allocation2 + $0x8] sm:$0xff]
        %v820 = vld [vmem:[#allocation2 + $0x10] sm:$0xff]
        %v821 = vld [vmem:[#allocation2 + $0x18] sm:$0xff]
        %v822 = vld [vmem:[#allocation2 + $0x20] sm:$0xff]
        %v823 = vld [vmem:[#allocation2 + $0x28] sm:$0xff]
        %v824 = vld [vmem:[#allocation2 + $0x30] sm:$0xff]
        %v825 = vld [vmem:[#allocation2 + $0x38] sm:$0xff]
        %v826 = vld [vmem:[#allocation2 + $0x40] sm:$0xff]
        %v827 = vld [vmem:[#allocation2 + $0x48] sm:$0xff]
        %v828 = vld [vmem:[#allocation2 + $0x50] sm:$0xff]
        %v829 = vld [vmem:[#allocation2 + $0x58] sm:$0xff]
        %v830 = vld [vmem:[#allocation2 + $0x60] sm:$0xff]
        %v831 = vld [vmem:[#allocation2 + $0x68] sm:$0xff]
        %v832 = vld [vmem:[#allocation2 + $0x70] sm:$0xff]
        %v833 = vld [vmem:[#allocation2 + $0x78] sm:$0xff]
        %v834 = vpack.c.bf16 %v819, %v818
        %v835 = vpack.c.bf16 %v821, %v820
        %v836 = vpack.c.bf16 %v823, %v822
        %v837 = vpack.c.bf16 %v825, %v824
        %v838 = vpack.c.bf16 %v827, %v826
        %v839 = vpack.c.bf16 %v829, %v828
        %v840 = vpack.c.bf16 %v831, %v830
        %v841 = vpack.c.bf16 %v833, %v832
        %v842 = vld [vmem:[%s738] sm:$0x1]
        %v843 = vld [vmem:[%s605] sm:$0xff]
        %v844 = vld [vmem:[%s605 + $0x8] sm:$0xf]
        %v845 = vld [vmem:[%s605 + $0xc] sm:$0xff]
        %v846 = vld [vmem:[%s605 + $0x14] sm:$0xf]
        %v847 = vld [vmem:[%s605 + $0x18] sm:$0xff]
        %v848 = vld [vmem:[%s605 + $0x20] sm:$0xf]
        %v849 = vld [vmem:[%s605 + $0x24] sm:$0xff]
        %v850 = vld [vmem:[%s605 + $0x2c] sm:$0xf]
        %v851 = vld [vmem:[%s605 + $0x30] sm:$0xff]
        %v852 = vld [vmem:[%s605 + $0x38] sm:$0xf]
        %v853 = vld [vmem:[%s605 + $0x3c] sm:$0xff]
        %v854 = vld [vmem:[%s605 + $0x44] sm:$0xf]
        %v855 = vld [vmem:[%s605 + $0x48] sm:$0xff]
        %v856 = vld [vmem:[%s605 + $0x50] sm:$0xf]
        %v857 = vld [vmem:[%s605 + $0x54] sm:$0xff]
        %v858 = vld [vmem:[%s605 + $0x5c] sm:$0xf]
        %v859 = vld [vmem:[%s605 + $0x60] sm:$0xff]
        %v860 = vld [vmem:[%s605 + $0x68] sm:$0xf]
        %v861 = vld [vmem:[%s605 + $0x6c] sm:$0xff]
        %v862 = vld [vmem:[%s605 + $0x74] sm:$0xf]
        %v863 = vld [vmem:[%s605 + $0x78] sm:$0xff]
        %v864 = vld [vmem:[%s605 + $0x80] sm:$0xf]
        %v865 = vld [vmem:[%s605 + $0x84] sm:$0xff]
        %v866 = vld [vmem:[%s605 + $0x8c] sm:$0xf]
        %v867 = vld [vmem:[%s605 + $0x90] sm:$0xff]
        %v868 = vld [vmem:[%s605 + $0x98] sm:$0xf]
        %v869 = vld [vmem:[%s605 + $0x9c] sm:$0xff]
        %v870 = vld [vmem:[%s605 + $0xa4] sm:$0xf]
        %v871 = vld [vmem:[%s605 + $0xa8] sm:$0xff]
        %v872 = vld [vmem:[%s605 + $0xb0] sm:$0xf]
        %v873 = vld [vmem:[%s605 + $0xb4] sm:$0xff]
        %v874 = vld [vmem:[%s605 + $0xbc] sm:$0xf]
        %v875 = vld [vmem:[%s742] sm:$0x7]
        %v877 = vperm.slane %v875, 0
        %v878 = vperm.slane %v875, 1
        %v879 = vperm.slane %v875, 2
        %v915 = vunpack.c.l.b16 %v843
        %v916 = vunpack.c.h.b16 %v843
        %v917 = vunpack.c.l.b16 %v844
        %v918 = vunpack.c.l.b16 %v845
        %v919 = vunpack.c.h.b16 %v845
        %v920 = vunpack.c.l.b16 %v846
        %v921 = vunpack.c.l.b16 %v847
        %v922 = vunpack.c.h.b16 %v847
        %v923 = vunpack.c.l.b16 %v848
        %v924 = vunpack.c.l.b16 %v849
        %v925 = vunpack.c.h.b16 %v849
        %v926 = vunpack.c.l.b16 %v850
        %v927 = vunpack.c.l.b16 %v851
        %v928 = vunpack.c.h.b16 %v851
        %v929 = vunpack.c.l.b16 %v852
        %v930 = vunpack.c.l.b16 %v853
        %v931 = vunpack.c.h.b16 %v853
        %v932 = vunpack.c.l.b16 %v854
        %v933 = vunpack.c.l.b16 %v855
        %v934 = vunpack.c.h.b16 %v855
        %v935 = vunpack.c.l.b16 %v856
        %v936 = vunpack.c.l.b16 %v857
        %v937 = vunpack.c.h.b16 %v857
        %v938 = vunpack.c.l.b16 %v858
        %v939 = vunpack.c.l.b16 %v859
        %v940 = vunpack.c.h.b16 %v859
        %v941 = vunpack.c.l.b16 %v860
        %v942 = vunpack.c.l.b16 %v861
        %v943 = vunpack.c.h.b16 %v861
        %v944 = vunpack.c.l.b16 %v862
        %v945 = vunpack.c.l.b16 %v863
        %v946 = vunpack.c.h.b16 %v863
        %v947 = vunpack.c.l.b16 %v864
        %v948 = vunpack.c.l.b16 %v865
        %v949 = vunpack.c.h.b16 %v865
        %v950 = vunpack.c.l.b16 %v866
        %v951 = vunpack.c.l.b16 %v867
        %v952 = vunpack.c.h.b16 %v867
        %v953 = vunpack.c.l.b16 %v868
        %v954 = vunpack.c.l.b16 %v869
        %v955 = vunpack.c.h.b16 %v869
        %v956 = vunpack.c.l.b16 %v870
        %v957 = vunpack.c.l.b16 %v871
        %v958 = vunpack.c.h.b16 %v871
        %v959 = vunpack.c.l.b16 %v872
        %v960 = vunpack.c.l.b16 %v873
        %v961 = vunpack.c.h.b16 %v873
        %v962 = vunpack.c.l.b16 %v874
        %v963 = vpack.c.b16 %v918, %v915
        %v964 = vpack.c.b16 %v919, %v916
        %v965 = vpack.c.b16 %v920, %v917
        %v966 = vpack.c.b16 %v924, %v921
        %v967 = vpack.c.b16 %v925, %v922
        %v968 = vpack.c.b16 %v926, %v923
        %v969 = vpack.c.b16 %v930, %v927
        %v970 = vpack.c.b16 %v931, %v928
        %v971 = vpack.c.b16 %v932, %v929
        %v972 = vpack.c.b16 %v936, %v933
        %v973 = vpack.c.b16 %v937, %v934
        %v974 = vpack.c.b16 %v938, %v935
        %v975 = vpack.c.b16 %v942, %v939
        %v976 = vpack.c.b16 %v943, %v940
        %v977 = vpack.c.b16 %v944, %v941
        %v978 = vpack.c.b16 %v948, %v945
        %v979 = vpack.c.b16 %v949, %v946
        %v980 = vpack.c.b16 %v950, %v947
        %v981 = vpack.c.b16 %v954, %v951
        %v982 = vpack.c.b16 %v955, %v952
        %v983 = vpack.c.b16 %v956, %v953
        %v984 = vpack.c.b16 %v960, %v957
        %v985 = vpack.c.b16 %v961, %v958
        %v986 = vpack.c.b16 %v962, %v959
        %1011 = vmatpush.bf16.msra.mxu0 %v984
        %1012 = vmatpush.bf16.msra.mxu0 %v981
        %1013 = vmatpush.bf16.msra.mxu0 %v978
        %1014 = vmatpush.bf16.msra.mxu0 %v975
        %1015 = vmatpush.bf16.msra.mxu0 %v972
        %1016 = vmatpush.bf16.msra.mxu0 %v969
        %1017 = vmatpush.bf16.msra.mxu0 %v966
        %1018 = vmatpush.bf16.msra.mxu0 %v963
        %1019 = vmatmul.bf16.gmra.mxu0 %v834
        %v1020 = vpop.f32.mrf.mxu0
        %v1021 = vadd.f32 %v877, %v1020
        %v1022 = vpop.f32.mrf.mxu0
        %v1023 = vadd.f32 %v877, %v1022
        %1024 = vmatmul.bf16.gmra.mxu0 %v835
        %v1025 = vpop.f32.mrf.mxu0
        %v1026 = vadd.f32 %v877, %v1025
        %v1027 = vpop.f32.mrf.mxu0
        %v1028 = vadd.f32 %v877, %v1027
        %1029 = vmatmul.bf16.gmra.mxu0 %v836
        %v1030 = vpop.f32.mrf.mxu0
        %v1031 = vadd.f32 %v877, %v1030
        %v1032 = vpop.f32.mrf.mxu0
        %v1033 = vadd.f32 %v877, %v1032
        %1034 = vmatmul.bf16.gmra.mxu0 %v837
        %v1035 = vpop.f32.mrf.mxu0
        %v1036 = vadd.f32 %v877, %v1035
        %v1037 = vpop.f32.mrf.mxu0
        %v1038 = vadd.f32 %v877, %v1037
        %1039 = vmatmul.bf16.gmra.mxu0 %v838
        %v1040 = vpop.f32.mrf.mxu0
        %v1041 = vadd.f32 %v877, %v1040
        %v1042 = vpop.f32.mrf.mxu0
        %v1043 = vadd.f32 %v877, %v1042
        %1044 = vmatmul.bf16.gmra.mxu0 %v839
        %v1045 = vpop.f32.mrf.mxu0
        %v1046 = vadd.f32 %v877, %v1045
        %v1047 = vpop.f32.mrf.mxu0
        %v1048 = vadd.f32 %v877, %v1047
        %1049 = vmatmul.bf16.gmra.mxu0 %v840
        %v1050 = vpop.f32.mrf.mxu0
        %v1051 = vadd.f32 %v877, %v1050
        %v1052 = vpop.f32.mrf.mxu0
        %v1053 = vadd.f32 %v877, %v1052
        %1054 = vmatmul.bf16.gmra.mxu0 %v841
        %v1055 = vpop.f32.mrf.mxu0
        %v1056 = vadd.f32 %v877, %v1055
        %v1057 = vpop.f32.mrf.mxu0
        %v1058 = vadd.f32 %v877, %v1057
        %1059 = vdwg.mxu0
        %1060 = vmatpush.bf16.msra.mxu0 %v985
        %1061 = vmatpush.bf16.msra.mxu0 %v982
        %1062 = vmatpush.bf16.msra.mxu0 %v979
        %1063 = vmatpush.bf16.msra.mxu0 %v976
        %1064 = vmatpush.bf16.msra.mxu0 %v973
        %1065 = vmatpush.bf16.msra.mxu0 %v970
        %1066 = vmatpush.bf16.msra.mxu0 %v967
        %1067 = vmatpush.bf16.msra.mxu0 %v964
        %1068 = vmatmul.bf16.gmra.mxu0 %v834
        %v1069 = vpop.f32.mrf.mxu0
        %v1070 = vadd.f32 %v878, %v1069
        %v1071 = vpop.f32.mrf.mxu0
        %v1072 = vadd.f32 %v878, %v1071
        %1073 = vmatmul.bf16.gmra.mxu0 %v835
        %v1074 = vpop.f32.mrf.mxu0
        %v1075 = vadd.f32 %v878, %v1074
        %v1076 = vpop.f32.mrf.mxu0
        %v1077 = vadd.f32 %v878, %v1076
        %1078 = vmatmul.bf16.gmra.mxu0 %v836
        %v1079 = vpop.f32.mrf.mxu0
        %v1080 = vadd.f32 %v878, %v1079
        %v1081 = vpop.f32.mrf.mxu0
        %v1082 = vadd.f32 %v878, %v1081
        %1083 = vmatmul.bf16.gmra.mxu0 %v837
        %v1084 = vpop.f32.mrf.mxu0
        %v1085 = vadd.f32 %v878, %v1084
        %v1086 = vpop.f32.mrf.mxu0
        %v1087 = vadd.f32 %v878, %v1086
        %1088 = vmatmul.bf16.gmra.mxu0 %v838
        %v1089 = vpop.f32.mrf.mxu0
        %v1090 = vadd.f32 %v878, %v1089
        %v1091 = vpop.f32.mrf.mxu0
        %v1092 = vadd.f32 %v878, %v1091
        %1093 = vmatmul.bf16.gmra.mxu0 %v839
        %v1094 = vpop.f32.mrf.mxu0
        %v1095 = vadd.f32 %v878, %v1094
        %v1096 = vpop.f32.mrf.mxu0
        %v1097 = vadd.f32 %v878, %v1096
        %1098 = vmatmul.bf16.gmra.mxu0 %v840
        %v1099 = vpop.f32.mrf.mxu0
        %v1100 = vadd.f32 %v878, %v1099
        %v1101 = vpop.f32.mrf.mxu0
        %v1102 = vadd.f32 %v878, %v1101
        %1103 = vmatmul.bf16.gmra.mxu0 %v841
        %v1104 = vpop.f32.mrf.mxu0
        %v1105 = vadd.f32 %v878, %v1104
        %v1106 = vpop.f32.mrf.mxu0
        %v1107 = vadd.f32 %v878, %v1106
        %1108 = vdwg.mxu0
        %1109 = vmatpush.bf16.msra.mxu0 %v986
        %1110 = vmatpush.bf16.msra.mxu0 %v983
        %1111 = vmatpush.bf16.msra.mxu0 %v980
        %1112 = vmatpush.bf16.msra.mxu0 %v977
        %1113 = vmatpush.bf16.msra.mxu0 %v974
        %1114 = vmatpush.bf16.msra.mxu0 %v971
        %1115 = vmatpush.bf16.msra.mxu0 %v968
        %1116 = vmatpush.bf16.msra.mxu0 %v965
        %1117 = vmatmul.bf16.gmra.mxu0 %v834
        %v1118 = vpop.f32.mrf.mxu0
        %v1119 = vadd.f32 %v879, %v1118
        %v1120 = vpop.f32.mrf.mxu0
        %v1121 = vadd.f32 %v879, %v1120
        %1122 = vmatmul.bf16.gmra.mxu0 %v835
        %v1123 = vpop.f32.mrf.mxu0
        %v1124 = vadd.f32 %v879, %v1123
        %v1125 = vpop.f32.mrf.mxu0
        %v1126 = vadd.f32 %v879, %v1125
        %1127 = vmatmul.bf16.gmra.mxu0 %v836
        %v1128 = vpop.f32.mrf.mxu0
        %v1129 = vadd.f32 %v879, %v1128
        %v1130 = vpop.f32.mrf.mxu0
        %v1131 = vadd.f32 %v879, %v1130
        %1132 = vmatmul.bf16.gmra.mxu0 %v837
        %v1133 = vpop.f32.mrf.mxu0
        %v1134 = vadd.f32 %v879, %v1133
        %v1135 = vpop.f32.mrf.mxu0
        %v1136 = vadd.f32 %v879, %v1135
        %1137 = vmatmul.bf16.gmra.mxu0 %v838
        %v1138 = vpop.f32.mrf.mxu0
        %v1139 = vadd.f32 %v879, %v1138
        %v1140 = vpop.f32.mrf.mxu0
        %v1141 = vadd.f32 %v879, %v1140
        %1142 = vmatmul.bf16.gmra.mxu0 %v839
        %v1143 = vpop.f32.mrf.mxu0
        %v1144 = vadd.f32 %v879, %v1143
        %v1145 = vpop.f32.mrf.mxu0
        %v1146 = vadd.f32 %v879, %v1145
        %1147 = vmatmul.bf16.gmra.mxu0 %v840
        %v1148 = vpop.f32.mrf.mxu0
        %v1149 = vadd.f32 %v879, %v1148
        %v1150 = vpop.f32.mrf.mxu0
        %v1151 = vadd.f32 %v879, %v1150
        %1152 = vmatmul.bf16.gmra.mxu0 %v841
        %v1153 = vpop.f32.mrf.mxu0
        %v1154 = vadd.f32 %v879, %v1153
        %v1155 = vpop.f32.mrf.mxu0
        %v1156 = vadd.f32 %v879, %v1155
        %1157 = vdwg.mxu0
        %v1158 = vpack.c.bf16 %v1023, %v1021
        %v1159 = vpack.c.bf16 %v1028, %v1026
        %v1160 = vpack.c.bf16 %v1033, %v1031
        %v1161 = vpack.c.bf16 %v1038, %v1036
        %v1162 = vpack.c.bf16 %v1043, %v1041
        %v1163 = vpack.c.bf16 %v1048, %v1046
        %v1164 = vpack.c.bf16 %v1053, %v1051
        %v1165 = vpack.c.bf16 %v1058, %v1056
        %v1166 = vpack.c.bf16 %v1072, %v1070
        %v1167 = vpack.c.bf16 %v1077, %v1075
        %v1168 = vpack.c.bf16 %v1082, %v1080
        %v1169 = vpack.c.bf16 %v1087, %v1085
        %v1170 = vpack.c.bf16 %v1092, %v1090
        %v1171 = vpack.c.bf16 %v1097, %v1095
        %v1172 = vpack.c.bf16 %v1102, %v1100
        %v1173 = vpack.c.bf16 %v1107, %v1105
        %v1174 = vpack.c.bf16 %v1121, %v1119
        %v1175 = vpack.c.bf16 %v1126, %v1124
        %v1176 = vpack.c.bf16 %v1131, %v1129
        %v1177 = vpack.c.bf16 %v1136, %v1134
        %v1178 = vpack.c.bf16 %v1141, %v1139
        %v1179 = vpack.c.bf16 %v1146, %v1144
        %v1180 = vpack.c.bf16 %v1151, %v1149
        %v1181 = vpack.c.bf16 %v1156, %v1154
        %v1183 = vperm.slane %v842, 0
        %1185 = vmatpush.bf16.xpose.msra.mxu0 %v1173
        %1186 = vmatpush.bf16.xpose.msra.mxu0 %v1172
        %1187 = vmatpush.bf16.xpose.msra.mxu0 %v1171
        %1188 = vmatpush.bf16.xpose.msra.mxu0 %v1170
        %1189 = vmatpush.bf16.xpose.msra.mxu0 %v1169
        %1190 = vmatpush.bf16.xpose.msra.mxu0 %v1168
        %1191 = vmatpush.bf16.xpose.msra.mxu0 %v1167
        %1192 = vmatpush.bf16.xpose.msra.mxu0 %v1166
        %1193 = vmatmul.bf16.gmra.mxu0 %v1158
        %v1194 = vpop.f32.mrf.mxu0
        %v1195 = vadd.f32 %v1183, %v1194
        %v1196 = vpop.f32.mrf.mxu0
        %v1197 = vadd.f32 %v1183, %v1196
        %1198 = vmatmul.bf16.gmra.mxu0 %v1159
        %v1199 = vpop.f32.mrf.mxu0
        %v1200 = vadd.f32 %v1183, %v1199
        %v1201 = vpop.f32.mrf.mxu0
        %v1202 = vadd.f32 %v1183, %v1201
        %1203 = vmatmul.bf16.gmra.mxu0 %v1160
        %v1204 = vpop.f32.mrf.mxu0
        %v1205 = vadd.f32 %v1183, %v1204
        %v1206 = vpop.f32.mrf.mxu0
        %v1207 = vadd.f32 %v1183, %v1206
        %1208 = vmatmul.bf16.gmra.mxu0 %v1161
        %v1209 = vpop.f32.mrf.mxu0
        %v1210 = vadd.f32 %v1183, %v1209
        %v1211 = vpop.f32.mrf.mxu0
        %v1212 = vadd.f32 %v1183, %v1211
        %1213 = vmatmul.bf16.gmra.mxu0 %v1162
        %v1214 = vpop.f32.mrf.mxu0
        %v1215 = vadd.f32 %v1183, %v1214
        %v1216 = vpop.f32.mrf.mxu0
        %v1217 = vadd.f32 %v1183, %v1216
        %1218 = vmatmul.bf16.gmra.mxu0 %v1163
        %v1219 = vpop.f32.mrf.mxu0
        %v1220 = vadd.f32 %v1183, %v1219
        %v1221 = vpop.f32.mrf.mxu0
        %v1222 = vadd.f32 %v1183, %v1221
        %1223 = vmatmul.bf16.gmra.mxu0 %v1164
        %v1224 = vpop.f32.mrf.mxu0
        %v1225 = vadd.f32 %v1183, %v1224
        %v1226 = vpop.f32.mrf.mxu0
        %v1227 = vadd.f32 %v1183, %v1226
        %1228 = vmatmul.bf16.gmra.mxu0 %v1165
        %v1229 = vpop.f32.mrf.mxu0
        %v1230 = vadd.f32 %v1183, %v1229
        %v1231 = vpop.f32.mrf.mxu0
        %v1232 = vadd.f32 %v1183, %v1231
        %1233 = vdwg.mxu0
        %1234 = vmax.xlane.f32.xlu0 %v1195
        %v1235 = vpop.xlane.xlu0 %1234
        %1236 = vmax.xlane.f32.xlu0 %v1197
        %v1237 = vpop.xlane.xlu0 %1236
        %1238 = vmax.xlane.f32.xlu0 %v1200
        %v1239 = vpop.xlane.xlu0 %1238
        %1240 = vmax.xlane.f32.xlu0 %v1202
        %v1241 = vpop.xlane.xlu0 %1240
        %1242 = vmax.xlane.f32.xlu0 %v1205
        %v1243 = vpop.xlane.xlu0 %1242
        %1244 = vmax.xlane.f32.xlu0 %v1207
        %v1245 = vpop.xlane.xlu0 %1244
        %1246 = vmax.xlane.f32.xlu0 %v1210
        %v1247 = vpop.xlane.xlu0 %1246
        %1248 = vmax.xlane.f32.xlu0 %v1212
        %v1249 = vpop.xlane.xlu0 %1248
        %1250 = vmax.xlane.f32.xlu0 %v1215
        %v1251 = vpop.xlane.xlu0 %1250
        %1252 = vmax.xlane.f32.xlu0 %v1217
        %v1253 = vpop.xlane.xlu0 %1252
        %1254 = vmax.xlane.f32.xlu0 %v1220
        %v1255 = vpop.xlane.xlu0 %1254
        %1256 = vmax.xlane.f32.xlu0 %v1222
        %v1257 = vpop.xlane.xlu0 %1256
        %1258 = vmax.xlane.f32.xlu0 %v1225
        %v1259 = vpop.xlane.xlu0 %1258
        %1260 = vmax.xlane.f32.xlu0 %v1227
        %v1261 = vpop.xlane.xlu0 %1260
        %1262 = vmax.xlane.f32.xlu0 %v1230
        %v1263 = vpop.xlane.xlu0 %1262
        %1264 = vmax.xlane.f32.xlu0 %v1232
        %v1265 = vpop.xlane.xlu0 %1264
        %v1266 = vsub.f32 %v1195, %v1235
        %v1267 = vsub.f32 %v1197, %v1237
        %v1268 = vsub.f32 %v1200, %v1239
        %v1269 = vsub.f32 %v1202, %v1241
        %v1270 = vsub.f32 %v1205, %v1243
        %v1271 = vsub.f32 %v1207, %v1245
        %v1272 = vsub.f32 %v1210, %v1247
        %v1273 = vsub.f32 %v1212, %v1249
        %v1274 = vsub.f32 %v1215, %v1251
        %v1275 = vsub.f32 %v1217, %v1253
        %v1276 = vsub.f32 %v1220, %v1255
        %v1277 = vsub.f32 %v1222, %v1257
        %v1278 = vsub.f32 %v1225, %v1259
        %v1279 = vsub.f32 %v1227, %v1261
        %v1280 = vsub.f32 %v1230, %v1263
        %v1281 = vsub.f32 %v1232, %v1265
        %v1282 = vmul.f32 %v1266, 1.442695
        %v1283 = vpow.pop %v1282
        %v1284 = vmul.f32 %v1267, 1.442695
        %v1285 = vpow.pop %v1284
        %v1286 = vmul.f32 %v1268, 1.442695
        %v1287 = vpow.pop %v1286
        %v1288 = vmul.f32 %v1269, 1.442695
        %v1289 = vpow.pop %v1288
        %v1290 = vmul.f32 %v1270, 1.442695
        %v1291 = vpow.pop %v1290
        %v1292 = vmul.f32 %v1271, 1.442695
        %v1293 = vpow.pop %v1292
        %v1294 = vmul.f32 %v1272, 1.442695
        %v1295 = vpow.pop %v1294
        %v1296 = vmul.f32 %v1273, 1.442695
        %v1297 = vpow.pop %v1296
        %v1298 = vmul.f32 %v1274, 1.442695
        %v1299 = vpow.pop %v1298
        %v1300 = vmul.f32 %v1275, 1.442695
        %v1301 = vpow.pop %v1300
        %v1302 = vmul.f32 %v1276, 1.442695
        %v1303 = vpow.pop %v1302
        %v1304 = vmul.f32 %v1277, 1.442695
        %v1305 = vpow.pop %v1304
        %v1306 = vmul.f32 %v1278, 1.442695
        %v1307 = vpow.pop %v1306
        %v1308 = vmul.f32 %v1279, 1.442695
        %v1309 = vpow.pop %v1308
        %v1310 = vmul.f32 %v1280, 1.442695
        %v1311 = vpow.pop %v1310
        %v1312 = vmul.f32 %v1281, 1.442695
        %v1313 = vpow.pop %v1312
        %1314 = vadd.xlane.f32.xlu0 %v1283
        %v1315 = vpop.xlane.xlu0 %1314
        %1316 = vadd.xlane.f32.xlu0 %v1285
        %v1317 = vpop.xlane.xlu0 %1316
        %1318 = vadd.xlane.f32.xlu0 %v1287
        %v1319 = vpop.xlane.xlu0 %1318
        %1320 = vadd.xlane.f32.xlu0 %v1289
        %v1321 = vpop.xlane.xlu0 %1320
        %1322 = vadd.xlane.f32.xlu0 %v1291
        %v1323 = vpop.xlane.xlu0 %1322
        %1324 = vadd.xlane.f32.xlu0 %v1293
        %v1325 = vpop.xlane.xlu0 %1324
        %1326 = vadd.xlane.f32.xlu0 %v1295
        %v1327 = vpop.xlane.xlu0 %1326
        %1328 = vadd.xlane.f32.xlu0 %v1297
        %v1329 = vpop.xlane.xlu0 %1328
        %1330 = vadd.xlane.f32.xlu0 %v1299
        %v1331 = vpop.xlane.xlu0 %1330
        %1332 = vadd.xlane.f32.xlu0 %v1301
        %v1333 = vpop.xlane.xlu0 %1332
        %1334 = vadd.xlane.f32.xlu0 %v1303
        %v1335 = vpop.xlane.xlu0 %1334
        %1336 = vadd.xlane.f32.xlu0 %v1305
        %v1337 = vpop.xlane.xlu0 %1336
        %1338 = vadd.xlane.f32.xlu0 %v1307
        %v1339 = vpop.xlane.xlu0 %1338
        %1340 = vadd.xlane.f32.xlu0 %v1309
        %v1341 = vpop.xlane.xlu0 %1340
        %1342 = vadd.xlane.f32.xlu0 %v1311
        %v1343 = vpop.xlane.xlu0 %1342
        %1344 = vadd.xlane.f32.xlu0 %v1313
        %v1345 = vpop.xlane.xlu0 %1344
        %v1346 = vrcp.pop %v1315
        %v1347 = vrcp.pop %v1317
        %v1348 = vrcp.pop %v1319
        %v1349 = vrcp.pop %v1321
        %v1350 = vrcp.pop %v1323
        %v1351 = vrcp.pop %v1325
        %v1352 = vrcp.pop %v1327
        %v1353 = vrcp.pop %v1329
        %v1354 = vrcp.pop %v1331
        %v1355 = vrcp.pop %v1333
        %v1356 = vrcp.pop %v1335
        %v1357 = vrcp.pop %v1337
        %v1358 = vrcp.pop %v1339
        %v1359 = vrcp.pop %v1341
        %v1360 = vrcp.pop %v1343
        %v1361 = vrcp.pop %v1345
        %v1362 = vmul.f32 %v1283, %v1346
        %v1363 = vmul.f32 %v1285, %v1347
        %v1364 = vmul.f32 %v1287, %v1348
        %v1365 = vmul.f32 %v1289, %v1349
        %v1366 = vmul.f32 %v1291, %v1350
        %v1367 = vmul.f32 %v1293, %v1351
        %v1368 = vmul.f32 %v1295, %v1352
        %v1369 = vmul.f32 %v1297, %v1353
        %v1370 = vmul.f32 %v1299, %v1354
        %v1371 = vmul.f32 %v1301, %v1355
        %v1372 = vmul.f32 %v1303, %v1356
        %v1373 = vmul.f32 %v1305, %v1357
        %v1374 = vmul.f32 %v1307, %v1358
        %v1375 = vmul.f32 %v1309, %v1359
        %v1376 = vmul.f32 %v1311, %v1360
        %v1377 = vmul.f32 %v1313, %v1361
        %v1378 = vpack.c.bf16 %v1363, %v1362
        %v1379 = vpack.c.bf16 %v1365, %v1364
        %v1380 = vpack.c.bf16 %v1367, %v1366
        %v1381 = vpack.c.bf16 %v1369, %v1368
        %v1382 = vpack.c.bf16 %v1371, %v1370
        %v1383 = vpack.c.bf16 %v1373, %v1372
        %v1384 = vpack.c.bf16 %v1375, %v1374
        %v1385 = vpack.c.bf16 %v1377, %v1376
        %1386 = vmatpush.bf16.msra.mxu0 %v1181
        %1387 = vmatpush.bf16.msra.mxu0 %v1180
        %1388 = vmatpush.bf16.msra.mxu0 %v1179
        %1389 = vmatpush.bf16.msra.mxu0 %v1178
        %1390 = vmatpush.bf16.msra.mxu0 %v1177
        %1391 = vmatpush.bf16.msra.mxu0 %v1176
        %1392 = vmatpush.bf16.msra.mxu0 %v1175
        %1393 = vmatpush.bf16.msra.mxu0 %v1174
        %1394 = vmatmul.bf16.gmra.mxu0 %v1378
        %v1395 = vpop.f32.mrf.mxu0
        %v1396 = vadd.f32 0.0, %v1395
        %v1397 = vpop.f32.mrf.mxu0
        %v1398 = vadd.f32 0.0, %v1397
        %1399 = vmatmul.bf16.gmra.mxu0 %v1379
        %v1400 = vpop.f32.mrf.mxu0
        %v1401 = vadd.f32 0.0, %v1400
        %v1402 = vpop.f32.mrf.mxu0
        %v1403 = vadd.f32 0.0, %v1402
        %1404 = vmatmul.bf16.gmra.mxu0 %v1380
        %v1405 = vpop.f32.mrf.mxu0
        %v1406 = vadd.f32 0.0, %v1405
        %v1407 = vpop.f32.mrf.mxu0
        %v1408 = vadd.f32 0.0, %v1407
        %1409 = vmatmul.bf16.gmra.mxu0 %v1381
        %v1410 = vpop.f32.mrf.mxu0
        %v1411 = vadd.f32 0.0, %v1410
        %v1412 = vpop.f32.mrf.mxu0
        %v1413 = vadd.f32 0.0, %v1412
        %1414 = vmatmul.bf16.gmra.mxu0 %v1382
        %v1415 = vpop.f32.mrf.mxu0
        %v1416 = vadd.f32 0.0, %v1415
        %v1417 = vpop.f32.mrf.mxu0
        %v1418 = vadd.f32 0.0, %v1417
        %1419 = vmatmul.bf16.gmra.mxu0 %v1383
        %v1420 = vpop.f32.mrf.mxu0
        %v1421 = vadd.f32 0.0, %v1420
        %v1422 = vpop.f32.mrf.mxu0
        %v1423 = vadd.f32 0.0, %v1422
        %1424 = vmatmul.bf16.gmra.mxu0 %v1384
        %v1425 = vpop.f32.mrf.mxu0
        %v1426 = vadd.f32 0.0, %v1425
        %v1427 = vpop.f32.mrf.mxu0
        %v1428 = vadd.f32 0.0, %v1427
        %1429 = vmatmul.bf16.gmra.mxu0 %v1385
        %v1430 = vpop.f32.mrf.mxu0
        %v1431 = vadd.f32 0.0, %v1430
        %v1432 = vpop.f32.mrf.mxu0
        %v1433 = vadd.f32 0.0, %v1432
        %1434 = vdwg.mxu0
        %v1435 = vpack.c.bf16 %v1398, %v1396
        %v1436 = vpack.c.bf16 %v1403, %v1401
        %v1437 = vpack.c.bf16 %v1408, %v1406
        %v1438 = vpack.c.bf16 %v1413, %v1411
        %v1439 = vpack.c.bf16 %v1418, %v1416
        %v1440 = vpack.c.bf16 %v1423, %v1421
        %v1441 = vpack.c.bf16 %v1428, %v1426
        %v1442 = vpack.c.bf16 %v1433, %v1431
        %v1443 = vld [vmem:[%s747] sm:$0xf]
        %v1444 = vld [vmem:[%s747 + $0x4] sm:$0xf]
        %v1445 = vld [vmem:[%s747 + $0x8] sm:$0xf]
        %v1446 = vld [vmem:[%s747 + $0xc] sm:$0xf]
        %v1447 = vld [vmem:[%s747 + $0x10] sm:$0xf]
        %v1448 = vld [vmem:[%s747 + $0x14] sm:$0xf]
        %v1449 = vld [vmem:[%s747 + $0x18] sm:$0xf]
        %v1450 = vld [vmem:[%s747 + $0x1c] sm:$0xf]
        %v1451 = vld [vmem:[%s747 + $0x20] sm:$0xf]
        %v1452 = vld [vmem:[%s747 + $0x24] sm:$0xf]
        %v1453 = vld [vmem:[%s747 + $0x28] sm:$0xf]
        %v1454 = vld [vmem:[%s747 + $0x2c] sm:$0xf]
        %v1455 = vld [vmem:[%s747 + $0x30] sm:$0xf]
        %v1456 = vld [vmem:[%s747 + $0x34] sm:$0xf]
        %v1457 = vld [vmem:[%s747 + $0x38] sm:$0xf]
        %v1458 = vld [vmem:[%s747 + $0x3c] sm:$0xf]
        %v1459 = vld [vmem:[%s614] sm:$0x1]
        %v1461 = vperm.slane %v1459, 0
        %v1479 = vunpack.c.l.b16 %v1443
        %v1480 = vunpack.c.l.b16 %v1444
        %v1481 = vunpack.c.l.b16 %v1445
        %v1482 = vunpack.c.l.b16 %v1446
        %v1483 = vunpack.c.l.b16 %v1447
        %v1484 = vunpack.c.l.b16 %v1448
        %v1485 = vunpack.c.l.b16 %v1449
        %v1486 = vunpack.c.l.b16 %v1450
        %v1487 = vunpack.c.l.b16 %v1451
        %v1488 = vunpack.c.l.b16 %v1452
        %v1489 = vunpack.c.l.b16 %v1453
        %v1490 = vunpack.c.l.b16 %v1454
        %v1491 = vunpack.c.l.b16 %v1455
        %v1492 = vunpack.c.l.b16 %v1456
        %v1493 = vunpack.c.l.b16 %v1457
        %v1494 = vunpack.c.l.b16 %v1458
        %v1495 = vpack.c.b16 %v1480, %v1479
        %v1496 = vpack.c.b16 %v1482, %v1481
        %v1497 = vpack.c.b16 %v1484, %v1483
        %v1498 = vpack.c.b16 %v1486, %v1485
        %v1499 = vpack.c.b16 %v1488, %v1487
        %v1500 = vpack.c.b16 %v1490, %v1489
        %v1501 = vpack.c.b16 %v1492, %v1491
        %v1502 = vpack.c.b16 %v1494, %v1493
        %1511 = vmatpush.bf16.msra.mxu0 %v1502
        %1512 = vmatpush.bf16.msra.mxu0 %v1501
        %1513 = vmatpush.bf16.msra.mxu0 %v1500
        %1514 = vmatpush.bf16.msra.mxu0 %v1499
        %1515 = vmatpush.bf16.msra.mxu0 %v1498
        %1516 = vmatpush.bf16.msra.mxu0 %v1497
        %1517 = vmatpush.bf16.msra.mxu0 %v1496
        %1518 = vmatpush.bf16.msra.mxu0 %v1495
        %1519 = vmatmul.bf16.gmra.mxu0 %v1435
        %v1520 = vpop.f32.mrf.mxu0
        %v1521 = vadd.f32 %v1461, %v1520
        %v1522 = vpop.f32.mrf.mxu0
        %v1523 = vadd.f32 %v1461, %v1522
        %1524 = vmatmul.bf16.gmra.mxu0 %v1436
        %v1525 = vpop.f32.mrf.mxu0
        %v1526 = vadd.f32 %v1461, %v1525
        %v1527 = vpop.f32.mrf.mxu0
        %v1528 = vadd.f32 %v1461, %v1527
        %1529 = vmatmul.bf16.gmra.mxu0 %v1437
        %v1530 = vpop.f32.mrf.mxu0
        %v1531 = vadd.f32 %v1461, %v1530
        %v1532 = vpop.f32.mrf.mxu0
        %v1533 = vadd.f32 %v1461, %v1532
        %1534 = vmatmul.bf16.gmra.mxu0 %v1438
        %v1535 = vpop.f32.mrf.mxu0
        %v1536 = vadd.f32 %v1461, %v1535
        %v1537 = vpop.f32.mrf.mxu0
        %v1538 = vadd.f32 %v1461, %v1537
        %1539 = vmatmul.bf16.gmra.mxu0 %v1439
        %v1540 = vpop.f32.mrf.mxu0
        %v1541 = vadd.f32 %v1461, %v1540
        %v1542 = vpop.f32.mrf.mxu0
        %v1543 = vadd.f32 %v1461, %v1542
        %1544 = vmatmul.bf16.gmra.mxu0 %v1440
        %v1545 = vpop.f32.mrf.mxu0
        %v1546 = vadd.f32 %v1461, %v1545
        %v1547 = vpop.f32.mrf.mxu0
        %v1548 = vadd.f32 %v1461, %v1547
        %1549 = vmatmul.bf16.gmra.mxu0 %v1441
        %v1550 = vpop.f32.mrf.mxu0
        %v1551 = vadd.f32 %v1461, %v1550
        %v1552 = vpop.f32.mrf.mxu0
        %v1553 = vadd.f32 %v1461, %v1552
        %1554 = vmatmul.bf16.gmra.mxu0 %v1442
        %v1555 = vpop.f32.mrf.mxu0
        %v1556 = vadd.f32 %v1461, %v1555
        %v1557 = vpop.f32.mrf.mxu0
        %v1558 = vadd.f32 %v1461, %v1557
        %1559 = vdwg.mxu0
        %v1560 = vld [vmem:[%s751] sm:$0x3]
        %v1561 = vadd.f32 %v818, %v1521
        %v1562 = vadd.f32 %v819, %v1523
        %v1563 = vadd.f32 %v820, %v1526
        %v1564 = vadd.f32 %v821, %v1528
        %v1565 = vadd.f32 %v822, %v1531
        %v1566 = vadd.f32 %v823, %v1533
        %v1567 = vadd.f32 %v824, %v1536
        %v1568 = vadd.f32 %v825, %v1538
        %v1569 = vadd.f32 %v826, %v1541
        %v1570 = vadd.f32 %v827, %v1543
        %v1571 = vadd.f32 %v828, %v1546
        %v1572 = vadd.f32 %v829, %v1548
        %v1573 = vadd.f32 %v830, %v1551
        %v1574 = vadd.f32 %v831, %v1553
        %v1575 = vadd.f32 %v832, %v1556
        %v1576 = vadd.f32 %v833, %v1558
        %1577 = vadd.xlane.f32.xlu0 %v1561
        %v1578 = vpop.xlane.xlu0 %1577
        %1579 = vadd.xlane.f32.xlu0 %v1562
        %v1580 = vpop.xlane.xlu0 %1579
        %1581 = vadd.xlane.f32.xlu0 %v1563
        %v1582 = vpop.xlane.xlu0 %1581
        %1583 = vadd.xlane.f32.xlu0 %v1564
        %v1584 = vpop.xlane.xlu0 %1583
        %1585 = vadd.xlane.f32.xlu0 %v1565
        %v1586 = vpop.xlane.xlu0 %1585
        %1587 = vadd.xlane.f32.xlu0 %v1566
        %v1588 = vpop.xlane.xlu0 %1587
        %1589 = vadd.xlane.f32.xlu0 %v1567
        %v1590 = vpop.xlane.xlu0 %1589
        %1591 = vadd.xlane.f32.xlu0 %v1568
        %v1592 = vpop.xlane.xlu0 %1591
        %1593 = vadd.xlane.f32.xlu0 %v1569
        %v1594 = vpop.xlane.xlu0 %1593
        %1595 = vadd.xlane.f32.xlu0 %v1570
        %v1596 = vpop.xlane.xlu0 %1595
        %1597 = vadd.xlane.f32.xlu0 %v1571
        %v1598 = vpop.xlane.xlu0 %1597
        %1599 = vadd.xlane.f32.xlu0 %v1572
        %v1600 = vpop.xlane.xlu0 %1599
        %1601 = vadd.xlane.f32.xlu0 %v1573
        %v1602 = vpop.xlane.xlu0 %1601
        %1603 = vadd.xlane.f32.xlu0 %v1574
        %v1604 = vpop.xlane.xlu0 %1603
        %1605 = vadd.xlane.f32.xlu0 %v1575
        %v1606 = vpop.xlane.xlu0 %1605
        %1607 = vadd.xlane.f32.xlu0 %v1576
        %v1608 = vpop.xlane.xlu0 %1607
        %v1609 = vrcp.pop 128.0
        %v1610 = vmul.f32 128.0, %v1609
        %v1611 = vsub.f32 1.0, %v1610
        %v1612 = vmul.f32 %v1609, %v1611
        %v1613 = vadd.f32 %v1609, %v1612
        %vm1614 = vweird.f32 %v1609
        %v1615 = vsel %vm1614, %v1609, %v1613
        %v1616 = vmul.f32 %v1578, %v1615
        %v1617 = vmul.f32 %v1580, %v1615
        %v1618 = vmul.f32 %v1582, %v1615
        %v1619 = vmul.f32 %v1584, %v1615
        %v1620 = vmul.f32 %v1586, %v1615
        %v1621 = vmul.f32 %v1588, %v1615
        %v1622 = vmul.f32 %v1590, %v1615
        %v1623 = vmul.f32 %v1592, %v1615
        %v1624 = vmul.f32 %v1594, %v1615
        %v1625 = vmul.f32 %v1596, %v1615
        %v1626 = vmul.f32 %v1598, %v1615
        %v1627 = vmul.f32 %v1600, %v1615
        %v1628 = vmul.f32 %v1602, %v1615
        %v1629 = vmul.f32 %v1604, %v1615
        %v1630 = vmul.f32 %v1606, %v1615
        %v1631 = vmul.f32 %v1608, %v1615
        %v1632 = vsub.f32 %v1561, %v1616
        %v1633 = vsub.f32 %v1562, %v1617
        %v1634 = vsub.f32 %v1563, %v1618
        %v1635 = vsub.f32 %v1564, %v1619
        %v1636 = vsub.f32 %v1565, %v1620
        %v1637 = vsub.f32 %v1566, %v1621
        %v1638 = vsub.f32 %v1567, %v1622
        %v1639 = vsub.f32 %v1568, %v1623
        %v1640 = vsub.f32 %v1569, %v1624
        %v1641 = vsub.f32 %v1570, %v1625
        %v1642 = vsub.f32 %v1571, %v1626
        %v1643 = vsub.f32 %v1572, %v1627
        %v1644 = vsub.f32 %v1573, %v1628
        %v1645 = vsub.f32 %v1574, %v1629
        %v1646 = vsub.f32 %v1575, %v1630
        %v1647 = vsub.f32 %v1576, %v1631
        %v1648 = vmul.f32 %v1632, %v1632
        %v1649 = vmul.f32 %v1633, %v1633
        %v1650 = vmul.f32 %v1634, %v1634
        %v1651 = vmul.f32 %v1635, %v1635
        %v1652 = vmul.f32 %v1636, %v1636
        %v1653 = vmul.f32 %v1637, %v1637
        %v1654 = vmul.f32 %v1638, %v1638
        %v1655 = vmul.f32 %v1639, %v1639
        %v1656 = vmul.f32 %v1640, %v1640
        %v1657 = vmul.f32 %v1641, %v1641
        %v1658 = vmul.f32 %v1642, %v1642
        %v1659 = vmul.f32 %v1643, %v1643
        %v1660 = vmul.f32 %v1644, %v1644
        %v1661 = vmul.f32 %v1645, %v1645
        %v1662 = vmul.f32 %v1646, %v1646
        %v1663 = vmul.f32 %v1647, %v1647
        %1664 = vadd.xlane.f32.xlu0 %v1648
        %v1665 = vpop.xlane.xlu0 %1664
        %1666 = vadd.xlane.f32.xlu0 %v1649
        %v1667 = vpop.xlane.xlu0 %1666
        %1668 = vadd.xlane.f32.xlu0 %v1650
        %v1669 = vpop.xlane.xlu0 %1668
        %1670 = vadd.xlane.f32.xlu0 %v1651
        %v1671 = vpop.xlane.xlu0 %1670
        %1672 = vadd.xlane.f32.xlu0 %v1652
        %v1673 = vpop.xlane.xlu0 %1672
        %1674 = vadd.xlane.f32.xlu0 %v1653
        %v1675 = vpop.xlane.xlu0 %1674
        %1676 = vadd.xlane.f32.xlu0 %v1654
        %v1677 = vpop.xlane.xlu0 %1676
        %1678 = vadd.xlane.f32.xlu0 %v1655
        %v1679 = vpop.xlane.xlu0 %1678
        %1680 = vadd.xlane.f32.xlu0 %v1656
        %v1681 = vpop.xlane.xlu0 %1680
        %1682 = vadd.xlane.f32.xlu0 %v1657
        %v1683 = vpop.xlane.xlu0 %1682
        %1684 = vadd.xlane.f32.xlu0 %v1658
        %v1685 = vpop.xlane.xlu0 %1684
        %1686 = vadd.xlane.f32.xlu0 %v1659
        %v1687 = vpop.xlane.xlu0 %1686
        %1688 = vadd.xlane.f32.xlu0 %v1660
        %v1689 = vpop.xlane.xlu0 %1688
        %1690 = vadd.xlane.f32.xlu0 %v1661
        %v1691 = vpop.xlane.xlu0 %1690
        %1692 = vadd.xlane.f32.xlu0 %v1662
        %v1693 = vpop.xlane.xlu0 %1692
        %1694 = vadd.xlane.f32.xlu0 %v1663
        %v1695 = vpop.xlane.xlu0 %1694
        %v1696 = vmul.f32 %v1665, %v1615
        %v1697 = vmul.f32 %v1667, %v1615
        %v1698 = vmul.f32 %v1669, %v1615
        %v1699 = vmul.f32 %v1671, %v1615
        %v1700 = vmul.f32 %v1673, %v1615
        %v1701 = vmul.f32 %v1675, %v1615
        %v1702 = vmul.f32 %v1677, %v1615
        %v1703 = vmul.f32 %v1679, %v1615
        %v1704 = vmul.f32 %v1681, %v1615
        %v1705 = vmul.f32 %v1683, %v1615
        %v1706 = vmul.f32 %v1685, %v1615
        %v1707 = vmul.f32 %v1687, %v1615
        %v1708 = vmul.f32 %v1689, %v1615
        %v1709 = vmul.f32 %v1691, %v1615
        %v1710 = vmul.f32 %v1693, %v1615
        %v1711 = vmul.f32 %v1695, %v1615
        %v1712 = vadd.f32 %v1696, 1e-07
        %v1713 = vadd.f32 %v1697, 1e-07
        %v1714 = vadd.f32 %v1698, 1e-07
        %v1715 = vadd.f32 %v1699, 1e-07
        %v1716 = vadd.f32 %v1700, 1e-07
        %v1717 = vadd.f32 %v1701, 1e-07
        %v1718 = vadd.f32 %v1702, 1e-07
        %v1719 = vadd.f32 %v1703, 1e-07
        %v1720 = vadd.f32 %v1704, 1e-07
        %v1721 = vadd.f32 %v1705, 1e-07
        %v1722 = vadd.f32 %v1706, 1e-07
        %v1723 = vadd.f32 %v1707, 1e-07
        %v1724 = vadd.f32 %v1708, 1e-07
        %v1725 = vadd.f32 %v1709, 1e-07
        %v1726 = vadd.f32 %v1710, 1e-07
        %v1727 = vadd.f32 %v1711, 1e-07
        %v1728 = vrsqrt.pop %v1712
        %v1729 = vmul.f32 %v1728, %v1712
        %v1730 = vmul.f32 %v1729, %v1728
        %v1731 = vmul.f32 0.5, %v1730
        %v1732 = vsub.f32 1.5, %v1731
        %v1733 = vmul.f32 %v1728, %v1732
        %vm1734 = vweird.f32 %v1712
        %vm1735 = vweird.f32 %v1728
        %vm1736 = vmor %vm1734, %vm1735
        %v1737 = vsel %vm1736, %v1728, %v1733
        %v1738 = vrsqrt.pop %v1713
        %v1739 = vmul.f32 %v1738, %v1713
        %v1740 = vmul.f32 %v1739, %v1738
        %v1741 = vmul.f32 0.5, %v1740
        %v1742 = vsub.f32 1.5, %v1741
        %v1743 = vmul.f32 %v1738, %v1742
        %vm1744 = vweird.f32 %v1713
        %vm1745 = vweird.f32 %v1738
        %vm1746 = vmor %vm1744, %vm1745
        %v1747 = vsel %vm1746, %v1738, %v1743
        %v1748 = vrsqrt.pop %v1714
        %v1749 = vmul.f32 %v1748, %v1714
        %v1750 = vmul.f32 %v1749, %v1748
        %v1751 = vmul.f32 0.5, %v1750
        %v1752 = vsub.f32 1.5, %v1751
        %v1753 = vmul.f32 %v1748, %v1752
        %vm1754 = vweird.f32 %v1714
        %vm1755 = vweird.f32 %v1748
        %vm1756 = vmor %vm1754, %vm1755
        %v1757 = vsel %vm1756, %v1748, %v1753
        %v1758 = vrsqrt.pop %v1715
        %v1759 = vmul.f32 %v1758, %v1715
        %v1760 = vmul.f32 %v1759, %v1758
        %v1761 = vmul.f32 0.5, %v1760
        %v1762 = vsub.f32 1.5, %v1761
        %v1763 = vmul.f32 %v1758, %v1762
        %vm1764 = vweird.f32 %v1715
        %vm1765 = vweird.f32 %v1758
        %vm1766 = vmor %vm1764, %vm1765
        %v1767 = vsel %vm1766, %v1758, %v1763
        %v1768 = vrsqrt.pop %v1716
        %v1769 = vmul.f32 %v1768, %v1716
        %v1770 = vmul.f32 %v1769, %v1768
        %v1771 = vmul.f32 0.5, %v1770
        %v1772 = vsub.f32 1.5, %v1771
        %v1773 = vmul.f32 %v1768, %v1772
        %vm1774 = vweird.f32 %v1716
        %vm1775 = vweird.f32 %v1768
        %vm1776 = vmor %vm1774, %vm1775
        %v1777 = vsel %vm1776, %v1768, %v1773
        %v1778 = vrsqrt.pop %v1717
        %v1779 = vmul.f32 %v1778, %v1717
        %v1780 = vmul.f32 %v1779, %v1778
        %v1781 = vmul.f32 0.5, %v1780
        %v1782 = vsub.f32 1.5, %v1781
        %v1783 = vmul.f32 %v1778, %v1782
        %vm1784 = vweird.f32 %v1717
        %vm1785 = vweird.f32 %v1778
        %vm1786 = vmor %vm1784, %vm1785
        %v1787 = vsel %vm1786, %v1778, %v1783
        %v1788 = vrsqrt.pop %v1718
        %v1789 = vmul.f32 %v1788, %v1718
        %v1790 = vmul.f32 %v1789, %v1788
        %v1791 = vmul.f32 0.5, %v1790
        %v1792 = vsub.f32 1.5, %v1791
        %v1793 = vmul.f32 %v1788, %v1792
        %vm1794 = vweird.f32 %v1718
        %vm1795 = vweird.f32 %v1788
        %vm1796 = vmor %vm1794, %vm1795
        %v1797 = vsel %vm1796, %v1788, %v1793
        %v1798 = vrsqrt.pop %v1719
        %v1799 = vmul.f32 %v1798, %v1719
        %v1800 = vmul.f32 %v1799, %v1798
        %v1801 = vmul.f32 0.5, %v1800
        %v1802 = vsub.f32 1.5, %v1801
        %v1803 = vmul.f32 %v1798, %v1802
        %vm1804 = vweird.f32 %v1719
        %vm1805 = vweird.f32 %v1798
        %vm1806 = vmor %vm1804, %vm1805
        %v1807 = vsel %vm1806, %v1798, %v1803
        %v1808 = vrsqrt.pop %v1720
        %v1809 = vmul.f32 %v1808, %v1720
        %v1810 = vmul.f32 %v1809, %v1808
        %v1811 = vmul.f32 0.5, %v1810
        %v1812 = vsub.f32 1.5, %v1811
        %v1813 = vmul.f32 %v1808, %v1812
        %vm1814 = vweird.f32 %v1720
        %vm1815 = vweird.f32 %v1808
        %vm1816 = vmor %vm1814, %vm1815
        %v1817 = vsel %vm1816, %v1808, %v1813
        %v1818 = vrsqrt.pop %v1721
        %v1819 = vmul.f32 %v1818, %v1721
        %v1820 = vmul.f32 %v1819, %v1818
        %v1821 = vmul.f32 0.5, %v1820
        %v1822 = vsub.f32 1.5, %v1821
        %v1823 = vmul.f32 %v1818, %v1822
        %vm1824 = vweird.f32 %v1721
        %vm1825 = vweird.f32 %v1818
        %vm1826 = vmor %vm1824, %vm1825
        %v1827 = vsel %vm1826, %v1818, %v1823
        %v1828 = vrsqrt.pop %v1722
        %v1829 = vmul.f32 %v1828, %v1722
        %v1830 = vmul.f32 %v1829, %v1828
        %v1831 = vmul.f32 0.5, %v1830
        %v1832 = vsub.f32 1.5, %v1831
        %v1833 = vmul.f32 %v1828, %v1832
        %vm1834 = vweird.f32 %v1722
        %vm1835 = vweird.f32 %v1828
        %vm1836 = vmor %vm1834, %vm1835
        %v1837 = vsel %vm1836, %v1828, %v1833
        %v1838 = vrsqrt.pop %v1723
        %v1839 = vmul.f32 %v1838, %v1723
        %v1840 = vmul.f32 %v1839, %v1838
        %v1841 = vmul.f32 0.5, %v1840
        %v1842 = vsub.f32 1.5, %v1841
        %v1843 = vmul.f32 %v1838, %v1842
        %vm1844 = vweird.f32 %v1723
        %vm1845 = vweird.f32 %v1838
        %vm1846 = vmor %vm1844, %vm1845
        %v1847 = vsel %vm1846, %v1838, %v1843
        %v1848 = vrsqrt.pop %v1724
        %v1849 = vmul.f32 %v1848, %v1724
        %v1850 = vmul.f32 %v1849, %v1848
        %v1851 = vmul.f32 0.5, %v1850
        %v1852 = vsub.f32 1.5, %v1851
        %v1853 = vmul.f32 %v1848, %v1852
        %vm1854 = vweird.f32 %v1724
        %vm1855 = vweird.f32 %v1848
        %vm1856 = vmor %vm1854, %vm1855
        %v1857 = vsel %vm1856, %v1848, %v1853
        %v1858 = vrsqrt.pop %v1725
        %v1859 = vmul.f32 %v1858, %v1725
        %v1860 = vmul.f32 %v1859, %v1858
        %v1861 = vmul.f32 0.5, %v1860
        %v1862 = vsub.f32 1.5, %v1861
        %v1863 = vmul.f32 %v1858, %v1862
        %vm1864 = vweird.f32 %v1725
        %vm1865 = vweird.f32 %v1858
        %vm1866 = vmor %vm1864, %vm1865
        %v1867 = vsel %vm1866, %v1858, %v1863
        %v1868 = vrsqrt.pop %v1726
        %v1869 = vmul.f32 %v1868, %v1726
        %v1870 = vmul.f32 %v1869, %v1868
        %v1871 = vmul.f32 0.5, %v1870
        %v1872 = vsub.f32 1.5, %v1871
        %v1873 = vmul.f32 %v1868, %v1872
        %vm1874 = vweird.f32 %v1726
        %vm1875 = vweird.f32 %v1868
        %vm1876 = vmor %vm1874, %vm1875
        %v1877 = vsel %vm1876, %v1868, %v1873
        %v1878 = vrsqrt.pop %v1727
        %v1879 = vmul.f32 %v1878, %v1727
        %v1880 = vmul.f32 %v1879, %v1878
        %v1881 = vmul.f32 0.5, %v1880
        %v1882 = vsub.f32 1.5, %v1881
        %v1883 = vmul.f32 %v1878, %v1882
        %vm1884 = vweird.f32 %v1727
        %vm1885 = vweird.f32 %v1878
        %vm1886 = vmor %vm1884, %vm1885
        %v1887 = vsel %vm1886, %v1878, %v1883
        %v1888 = vmul.f32 %v1632, %v1737
        %v1889 = vmul.f32 %v1633, %v1747
        %v1890 = vmul.f32 %v1634, %v1757
        %v1891 = vmul.f32 %v1635, %v1767
        %v1892 = vmul.f32 %v1636, %v1777
        %v1893 = vmul.f32 %v1637, %v1787
        %v1894 = vmul.f32 %v1638, %v1797
        %v1895 = vmul.f32 %v1639, %v1807
        %v1896 = vmul.f32 %v1640, %v1817
        %v1897 = vmul.f32 %v1641, %v1827
        %v1898 = vmul.f32 %v1642, %v1837
        %v1899 = vmul.f32 %v1643, %v1847
        %v1900 = vmul.f32 %v1644, %v1857
        %v1901 = vmul.f32 %v1645, %v1867
        %v1902 = vmul.f32 %v1646, %v1877
        %v1903 = vmul.f32 %v1647, %v1887
        %v1904 = vperm.slane %v1560, 0
        %v1905 = vmul.f32 %v1888, %v1904
        %v1906 = vmul.f32 %v1889, %v1904
        %v1907 = vmul.f32 %v1890, %v1904
        %v1908 = vmul.f32 %v1891, %v1904
        %v1909 = vmul.f32 %v1892, %v1904
        %v1910 = vmul.f32 %v1893, %v1904
        %v1911 = vmul.f32 %v1894, %v1904
        %v1912 = vmul.f32 %v1895, %v1904
        %v1913 = vmul.f32 %v1896, %v1904
        %v1914 = vmul.f32 %v1897, %v1904
        %v1915 = vmul.f32 %v1898, %v1904
        %v1916 = vmul.f32 %v1899, %v1904
        %v1917 = vmul.f32 %v1900, %v1904
        %v1918 = vmul.f32 %v1901, %v1904
        %v1919 = vmul.f32 %v1902, %v1904
        %v1920 = vmul.f32 %v1903, %v1904
        %v1921 = vperm.slane %v1560, 1
        %v1922 = vadd.f32 %v1905, %v1921
        %v1923 = vadd.f32 %v1906, %v1921
        %v1924 = vadd.f32 %v1907, %v1921
        %v1925 = vadd.f32 %v1908, %v1921
        %v1926 = vadd.f32 %v1909, %v1921
        %v1927 = vadd.f32 %v1910, %v1921
        %v1928 = vadd.f32 %v1911, %v1921
        %v1929 = vadd.f32 %v1912, %v1921
        %v1930 = vadd.f32 %v1913, %v1921
        %v1931 = vadd.f32 %v1914, %v1921
        %v1932 = vadd.f32 %v1915, %v1921
        %v1933 = vadd.f32 %v1916, %v1921
        %v1934 = vadd.f32 %v1917, %v1921
        %v1935 = vadd.f32 %v1918, %v1921
        %v1936 = vadd.f32 %v1919, %v1921
        %v1937 = vadd.f32 %v1920, %v1921
        %v1938 = vpack.c.bf16 %v1923, %v1922
        %v1939 = vpack.c.bf16 %v1925, %v1924
        %v1940 = vpack.c.bf16 %v1927, %v1926
        %v1941 = vpack.c.bf16 %v1929, %v1928
        %v1942 = vpack.c.bf16 %v1931, %v1930
        %v1943 = vpack.c.bf16 %v1933, %v1932
        %v1944 = vpack.c.bf16 %v1935, %v1934
        %v1945 = vpack.c.bf16 %v1937, %v1936
        %v1946 = vld [vmem:[%s756] sm:$0xff]
        %v1947 = vld [vmem:[%s756 + $0x8] sm:$0xff]
        %v1948 = vld [vmem:[%s756 + $0x10] sm:$0xff]
        %v1949 = vld [vmem:[%s756 + $0x18] sm:$0xff]
        %v1950 = vld [vmem:[%s756 + $0x20] sm:$0xff]
        %v1951 = vld [vmem:[%s756 + $0x28] sm:$0xff]
        %v1952 = vld [vmem:[%s756 + $0x30] sm:$0xff]
        %v1953 = vld [vmem:[%s756 + $0x38] sm:$0xff]
        %v1954 = vld [vmem:[%s756 + $0x40] sm:$0xff]
        %v1955 = vld [vmem:[%s756 + $0x48] sm:$0xff]
        %v1956 = vld [vmem:[%s756 + $0x50] sm:$0xff]
        %v1957 = vld [vmem:[%s756 + $0x58] sm:$0xff]
        %v1958 = vld [vmem:[%s756 + $0x60] sm:$0xff]
        %v1959 = vld [vmem:[%s756 + $0x68] sm:$0xff]
        %v1960 = vld [vmem:[%s756 + $0x70] sm:$0xff]
        %v1961 = vld [vmem:[%s756 + $0x78] sm:$0xff]
        %v1962 = vld [vmem:[%s756 + $0x80] sm:$0xff]
        %v1963 = vld [vmem:[%s756 + $0x88] sm:$0xff]
        %v1964 = vld [vmem:[%s756 + $0x90] sm:$0xff]
        %v1965 = vld [vmem:[%s756 + $0x98] sm:$0xff]
        %v1966 = vld [vmem:[%s756 + $0xa0] sm:$0xff]
        %v1967 = vld [vmem:[%s756 + $0xa8] sm:$0xff]
        %v1968 = vld [vmem:[%s756 + $0xb0] sm:$0xff]
        %v1969 = vld [vmem:[%s756 + $0xb8] sm:$0xff]
        %v1970 = vld [vmem:[%s756 + $0xc0] sm:$0xff]
        %v1971 = vld [vmem:[%s756 + $0xc8] sm:$0xff]
        %v1972 = vld [vmem:[%s756 + $0xd0] sm:$0xff]
        %v1973 = vld [vmem:[%s756 + $0xd8] sm:$0xff]
        %v1974 = vld [vmem:[%s756 + $0xe0] sm:$0xff]
        %v1975 = vld [vmem:[%s756 + $0xe8] sm:$0xff]
        %v1976 = vld [vmem:[%s756 + $0xf0] sm:$0xff]
        %v1977 = vld [vmem:[%s756 + $0xf8] sm:$0xff]
        %v1978 = vld [vmem:[%s760] sm:$0xf]
        %v1980 = vperm.slane %v1978, 0
        %v1981 = vperm.slane %v1978, 1
        %v1982 = vperm.slane %v1978, 2
        %v1983 = vperm.slane %v1978, 3
        %v2020 = vunpack.c.l.b16 %v1946
        %v2021 = vunpack.c.h.b16 %v1946
        %v2022 = vunpack.c.l.b16 %v1947
        %v2023 = vunpack.c.h.b16 %v1947
        %v2024 = vunpack.c.l.b16 %v1948
        %v2025 = vunpack.c.h.b16 %v1948
        %v2026 = vunpack.c.l.b16 %v1949
        %v2027 = vunpack.c.h.b16 %v1949
        %v2028 = vunpack.c.l.b16 %v1950
        %v2029 = vunpack.c.h.b16 %v1950
        %v2030 = vunpack.c.l.b16 %v1951
        %v2031 = vunpack.c.h.b16 %v1951
        %v2032 = vunpack.c.l.b16 %v1952
        %v2033 = vunpack.c.h.b16 %v1952
        %v2034 = vunpack.c.l.b16 %v1953
        %v2035 = vunpack.c.h.b16 %v1953
        %v2036 = vunpack.c.l.b16 %v1954
        %v2037 = vunpack.c.h.b16 %v1954
        %v2038 = vunpack.c.l.b16 %v1955
        %v2039 = vunpack.c.h.b16 %v1955
        %v2040 = vunpack.c.l.b16 %v1956
        %v2041 = vunpack.c.h.b16 %v1956
        %v2042 = vunpack.c.l.b16 %v1957
        %v2043 = vunpack.c.h.b16 %v1957
        %v2044 = vunpack.c.l.b16 %v1958
        %v2045 = vunpack.c.h.b16 %v1958
        %v2046 = vunpack.c.l.b16 %v1959
        %v2047 = vunpack.c.h.b16 %v1959
        %v2048 = vunpack.c.l.b16 %v1960
        %v2049 = vunpack.c.h.b16 %v1960
        %v2050 = vunpack.c.l.b16 %v1961
        %v2051 = vunpack.c.h.b16 %v1961
        %v2052 = vunpack.c.l.b16 %v1962
        %v2053 = vunpack.c.h.b16 %v1962
        %v2054 = vunpack.c.l.b16 %v1963
        %v2055 = vunpack.c.h.b16 %v1963
        %v2056 = vunpack.c.l.b16 %v1964
        %v2057 = vunpack.c.h.b16 %v1964
        %v2058 = vunpack.c.l.b16 %v1965
        %v2059 = vunpack.c.h.b16 %v1965
        %v2060 = vunpack.c.l.b16 %v1966
        %v2061 = vunpack.c.h.b16 %v1966
        %v2062 = vunpack.c.l.b16 %v1967
        %v2063 = vunpack.c.h.b16 %v1967
        %v2064 = vunpack.c.l.b16 %v1968
        %v2065 = vunpack.c.h.b16 %v1968
        %v2066 = vunpack.c.l.b16 %v1969
        %v2067 = vunpack.c.h.b16 %v1969
        %v2068 = vunpack.c.l.b16 %v1970
        %v2069 = vunpack.c.h.b16 %v1970
        %v2070 = vunpack.c.l.b16 %v1971
        %v2071 = vunpack.c.h.b16 %v1971
        %v2072 = vunpack.c.l.b16 %v1972
        %v2073 = vunpack.c.h.b16 %v1972
        %v2074 = vunpack.c.l.b16 %v1973
        %v2075 = vunpack.c.h.b16 %v1973
        %v2076 = vunpack.c.l.b16 %v1974
        %v2077 = vunpack.c.h.b16 %v1974
        %v2078 = vunpack.c.l.b16 %v1975
        %v2079 = vunpack.c.h.b16 %v1975
        %v2080 = vunpack.c.l.b16 %v1976
        %v2081 = vunpack.c.h.b16 %v1976
        %v2082 = vunpack.c.l.b16 %v1977
        %v2083 = vunpack.c.h.b16 %v1977
        %v2084 = vpack.c.b16 %v2024, %v2020
        %v2085 = vpack.c.b16 %v2025, %v2021
        %v2086 = vpack.c.b16 %v2026, %v2022
        %v2087 = vpack.c.b16 %v2027, %v2023
        %v2088 = vpack.c.b16 %v2032, %v2028
        %v2089 = vpack.c.b16 %v2033, %v2029
        %v2090 = vpack.c.b16 %v2034, %v2030
        %v2091 = vpack.c.b16 %v2035, %v2031
        %v2092 = vpack.c.b16 %v2040, %v2036
        %v2093 = vpack.c.b16 %v2041, %v2037
        %v2094 = vpack.c.b16 %v2042, %v2038
        %v2095 = vpack.c.b16 %v2043, %v2039
        %v2096 = vpack.c.b16 %v2048, %v2044
        %v2097 = vpack.c.b16 %v2049, %v2045
        %v2098 = vpack.c.b16 %v2050, %v2046
        %v2099 = vpack.c.b16 %v2051, %v2047
        %v2100 = vpack.c.b16 %v2056, %v2052
        %v2101 = vpack.c.b16 %v2057, %v2053
        %v2102 = vpack.c.b16 %v2058, %v2054
        %v2103 = vpack.c.b16 %v2059, %v2055
        %v2104 = vpack.c.b16 %v2064, %v2060
        %v2105 = vpack.c.b16 %v2065, %v2061
        %v2106 = vpack.c.b16 %v2066, %v2062
        %v2107 = vpack.c.b16 %v2067, %v2063
        %v2108 = vpack.c.b16 %v2072, %v2068
        %v2109 = vpack.c.b16 %v2073, %v2069
        %v2110 = vpack.c.b16 %v2074, %v2070
        %v2111 = vpack.c.b16 %v2075, %v2071
        %v2112 = vpack.c.b16 %v2080, %v2076
        %v2113 = vpack.c.b16 %v2081, %v2077
        %v2114 = vpack.c.b16 %v2082, %v2078
        %v2115 = vpack.c.b16 %v2083, %v2079
        %2148 = vmatpush.bf16.msra.mxu0 %v2112
        %2149 = vmatpush.bf16.msra.mxu0 %v2108
        %2150 = vmatpush.bf16.msra.mxu0 %v2104
        %2151 = vmatpush.bf16.msra.mxu0 %v2100
        %2152 = vmatpush.bf16.msra.mxu0 %v2096
        %2153 = vmatpush.bf16.msra.mxu0 %v2092
        %2154 = vmatpush.bf16.msra.mxu0 %v2088
        %2155 = vmatpush.bf16.msra.mxu0 %v2084
        %2156 = vmatmul.bf16.gmra.mxu0 %v1938
        %v2157 = vpop.f32.mrf.mxu0
        %v2158 = vadd.f32 %v1980, %v2157
        %v2159 = vpop.f32.mrf.mxu0
        %v2160 = vadd.f32 %v1980, %v2159
        %2161 = vmatmul.bf16.gmra.mxu0 %v1939
        %v2162 = vpop.f32.mrf.mxu0
        %v2163 = vadd.f32 %v1980, %v2162
        %v2164 = vpop.f32.mrf.mxu0
        %v2165 = vadd.f32 %v1980, %v2164
        %2166 = vmatmul.bf16.gmra.mxu0 %v1940
        %v2167 = vpop.f32.mrf.mxu0
        %v2168 = vadd.f32 %v1980, %v2167
        %v2169 = vpop.f32.mrf.mxu0
        %v2170 = vadd.f32 %v1980, %v2169
        %2171 = vmatmul.bf16.gmra.mxu0 %v1941
        %v2172 = vpop.f32.mrf.mxu0
        %v2173 = vadd.f32 %v1980, %v2172
        %v2174 = vpop.f32.mrf.mxu0
        %v2175 = vadd.f32 %v1980, %v2174
        %2176 = vmatmul.bf16.gmra.mxu0 %v1942
        %v2177 = vpop.f32.mrf.mxu0
        %v2178 = vadd.f32 %v1980, %v2177
        %v2179 = vpop.f32.mrf.mxu0
        %v2180 = vadd.f32 %v1980, %v2179
        %2181 = vmatmul.bf16.gmra.mxu0 %v1943
        %v2182 = vpop.f32.mrf.mxu0
        %v2183 = vadd.f32 %v1980, %v2182
        %v2184 = vpop.f32.mrf.mxu0
        %v2185 = vadd.f32 %v1980, %v2184
        %2186 = vmatmul.bf16.gmra.mxu0 %v1944
        %v2187 = vpop.f32.mrf.mxu0
        %v2188 = vadd.f32 %v1980, %v2187
        %v2189 = vpop.f32.mrf.mxu0
        %v2190 = vadd.f32 %v1980, %v2189
        %2191 = vmatmul.bf16.gmra.mxu0 %v1945
        %v2192 = vpop.f32.mrf.mxu0
        %v2193 = vadd.f32 %v1980, %v2192
        %v2194 = vpop.f32.mrf.mxu0
        %v2195 = vadd.f32 %v1980, %v2194
        %2196 = vdwg.mxu0
        %2197 = vmatpush.bf16.msra.mxu0 %v2113
        %2198 = vmatpush.bf16.msra.mxu0 %v2109
        %2199 = vmatpush.bf16.msra.mxu0 %v2105
        %2200 = vmatpush.bf16.msra.mxu0 %v2101
        %2201 = vmatpush.bf16.msra.mxu0 %v2097
        %2202 = vmatpush.bf16.msra.mxu0 %v2093
        %2203 = vmatpush.bf16.msra.mxu0 %v2089
        %2204 = vmatpush.bf16.msra.mxu0 %v2085
        %2205 = vmatmul.bf16.gmra.mxu0 %v1938
        %v2206 = vpop.f32.mrf.mxu0
        %v2207 = vadd.f32 %v1981, %v2206
        %v2208 = vpop.f32.mrf.mxu0
        %v2209 = vadd.f32 %v1981, %v2208
        %2210 = vmatmul.bf16.gmra.mxu0 %v1939
        %v2211 = vpop.f32.mrf.mxu0
        %v2212 = vadd.f32 %v1981, %v2211
        %v2213 = vpop.f32.mrf.mxu0
        %v2214 = vadd.f32 %v1981, %v2213
        %2215 = vmatmul.bf16.gmra.mxu0 %v1940
        %v2216 = vpop.f32.mrf.mxu0
        %v2217 = vadd.f32 %v1981, %v2216
        %v2218 = vpop.f32.mrf.mxu0
        %v2219 = vadd.f32 %v1981, %v2218
        %2220 = vmatmul.bf16.gmra.mxu0 %v1941
        %v2221 = vpop.f32.mrf.mxu0
        %v2222 = vadd.f32 %v1981, %v2221
        %v2223 = vpop.f32.mrf.mxu0
        %v2224 = vadd.f32 %v1981, %v2223
        %2225 = vmatmul.bf16.gmra.mxu0 %v1942
        %v2226 = vpop.f32.mrf.mxu0
        %v2227 = vadd.f32 %v1981, %v2226
        %v2228 = vpop.f32.mrf.mxu0
        %v2229 = vadd.f32 %v1981, %v2228
        %2230 = vmatmul.bf16.gmra.mxu0 %v1943
        %v2231 = vpop.f32.mrf.mxu0
        %v2232 = vadd.f32 %v1981, %v2231
        %v2233 = vpop.f32.mrf.mxu0
        %v2234 = vadd.f32 %v1981, %v2233
        %2235 = vmatmul.bf16.gmra.mxu0 %v1944
        %v2236 = vpop.f32.mrf.mxu0
        %v2237 = vadd.f32 %v1981, %v2236
        %v2238 = vpop.f32.mrf.mxu0
        %v2239 = vadd.f32 %v1981, %v2238
        %2240 = vmatmul.bf16.gmra.mxu0 %v1945
        %v2241 = vpop.f32.mrf.mxu0
        %v2242 = vadd.f32 %v1981, %v2241
        %v2243 = vpop.f32.mrf.mxu0
        %v2244 = vadd.f32 %v1981, %v2243
        %2245 = vdwg.mxu0
        %2246 = vmatpush.bf16.msra.mxu0 %v2114
        %2247 = vmatpush.bf16.msra.mxu0 %v2110
        %2248 = vmatpush.bf16.msra.mxu0 %v2106
        %2249 = vmatpush.bf16.msra.mxu0 %v2102
        %2250 = vmatpush.bf16.msra.mxu0 %v2098
        %2251 = vmatpush.bf16.msra.mxu0 %v2094
        %2252 = vmatpush.bf16.msra.mxu0 %v2090
        %2253 = vmatpush.bf16.msra.mxu0 %v2086
        %2254 = vmatmul.bf16.gmra.mxu0 %v1938
        %v2255 = vpop.f32.mrf.mxu0
        %v2256 = vadd.f32 %v1982, %v2255
        %v2257 = vpop.f32.mrf.mxu0
        %v2258 = vadd.f32 %v1982, %v2257
        %2259 = vmatmul.bf16.gmra.mxu0 %v1939
        %v2260 = vpop.f32.mrf.mxu0
        %v2261 = vadd.f32 %v1982, %v2260
        %v2262 = vpop.f32.mrf.mxu0
        %v2263 = vadd.f32 %v1982, %v2262
        %2264 = vmatmul.bf16.gmra.mxu0 %v1940
        %v2265 = vpop.f32.mrf.mxu0
        %v2266 = vadd.f32 %v1982, %v2265
        %v2267 = vpop.f32.mrf.mxu0
        %v2268 = vadd.f32 %v1982, %v2267
        %2269 = vmatmul.bf16.gmra.mxu0 %v1941
        %v2270 = vpop.f32.mrf.mxu0
        %v2271 = vadd.f32 %v1982, %v2270
        %v2272 = vpop.f32.mrf.mxu0
        %v2273 = vadd.f32 %v1982, %v2272
        %2274 = vmatmul.bf16.gmra.mxu0 %v1942
        %v2275 = vpop.f32.mrf.mxu0
        %v2276 = vadd.f32 %v1982, %v2275
        %v2277 = vpop.f32.mrf.mxu0
        %v2278 = vadd.f32 %v1982, %v2277
        %2279 = vmatmul.bf16.gmra.mxu0 %v1943
        %v2280 = vpop.f32.mrf.mxu0
        %v2281 = vadd.f32 %v1982, %v2280
        %v2282 = vpop.f32.mrf.mxu0
        %v2283 = vadd.f32 %v1982, %v2282
        %2284 = vmatmul.bf16.gmra.mxu0 %v1944
        %v2285 = vpop.f32.mrf.mxu0
        %v2286 = vadd.f32 %v1982, %v2285
        %v2287 = vpop.f32.mrf.mxu0
        %v2288 = vadd.f32 %v1982, %v2287
        %2289 = vmatmul.bf16.gmra.mxu0 %v1945
        %v2290 = vpop.f32.mrf.mxu0
        %v2291 = vadd.f32 %v1982, %v2290
        %v2292 = vpop.f32.mrf.mxu0
        %v2293 = vadd.f32 %v1982, %v2292
        %2294 = vdwg.mxu0
        %2295 = vmatpush.bf16.msra.mxu0 %v2115
        %2296 = vmatpush.bf16.msra.mxu0 %v2111
        %2297 = vmatpush.bf16.msra.mxu0 %v2107
        %2298 = vmatpush.bf16.msra.mxu0 %v2103
        %2299 = vmatpush.bf16.msra.mxu0 %v2099
        %2300 = vmatpush.bf16.msra.mxu0 %v2095
        %2301 = vmatpush.bf16.msra.mxu0 %v2091
        %2302 = vmatpush.bf16.msra.mxu0 %v2087
        %2303 = vmatmul.bf16.gmra.mxu0 %v1938
        %v2304 = vpop.f32.mrf.mxu0
        %v2305 = vadd.f32 %v1983, %v2304
        %v2306 = vpop.f32.mrf.mxu0
        %v2307 = vadd.f32 %v1983, %v2306
        %2308 = vmatmul.bf16.gmra.mxu0 %v1939
        %v2309 = vpop.f32.mrf.mxu0
        %v2310 = vadd.f32 %v1983, %v2309
        %v2311 = vpop.f32.mrf.mxu0
        %v2312 = vadd.f32 %v1983, %v2311
        %2313 = vmatmul.bf16.gmra.mxu0 %v1940
        %v2314 = vpop.f32.mrf.mxu0
        %v2315 = vadd.f32 %v1983, %v2314
        %v2316 = vpop.f32.mrf.mxu0
        %v2317 = vadd.f32 %v1983, %v2316
        %2318 = vmatmul.bf16.gmra.mxu0 %v1941
        %v2319 = vpop.f32.mrf.mxu0
        %v2320 = vadd.f32 %v1983, %v2319
        %v2321 = vpop.f32.mrf.mxu0
        %v2322 = vadd.f32 %v1983, %v2321
        %2323 = vmatmul.bf16.gmra.mxu0 %v1942
        %v2324 = vpop.f32.mrf.mxu0
        %v2325 = vadd.f32 %v1983, %v2324
        %v2326 = vpop.f32.mrf.mxu0
        %v2327 = vadd.f32 %v1983, %v2326
        %2328 = vmatmul.bf16.gmra.mxu0 %v1943
        %v2329 = vpop.f32.mrf.mxu0
        %v2330 = vadd.f32 %v1983, %v2329
        %v2331 = vpop.f32.mrf.mxu0
        %v2332 = vadd.f32 %v1983, %v2331
        %2333 = vmatmul.bf16.gmra.mxu0 %v1944
        %v2334 = vpop.f32.mrf.mxu0
        %v2335 = vadd.f32 %v1983, %v2334
        %v2336 = vpop.f32.mrf.mxu0
        %v2337 = vadd.f32 %v1983, %v2336
        %2338 = vmatmul.bf16.gmra.mxu0 %v1945
        %v2339 = vpop.f32.mrf.mxu0
        %v2340 = vadd.f32 %v1983, %v2339
        %v2341 = vpop.f32.mrf.mxu0
        %v2342 = vadd.f32 %v1983, %v2341
        %2343 = vdwg.mxu0
        %v2344 = vmul.f32 %v2158, 0.5
        %v2345 = vmul.f32 %v2207, 0.5
        %v2346 = vmul.f32 %v2256, 0.5
        %v2347 = vmul.f32 %v2305, 0.5
        %v2348 = vmul.f32 %v2160, 0.5
        %v2349 = vmul.f32 %v2209, 0.5
        %v2350 = vmul.f32 %v2258, 0.5
        %v2351 = vmul.f32 %v2307, 0.5
        %v2352 = vmul.f32 %v2163, 0.5
        %v2353 = vmul.f32 %v2212, 0.5
        %v2354 = vmul.f32 %v2261, 0.5
        %v2355 = vmul.f32 %v2310, 0.5
        %v2356 = vmul.f32 %v2165, 0.5
        %v2357 = vmul.f32 %v2214, 0.5
        %v2358 = vmul.f32 %v2263, 0.5
        %v2359 = vmul.f32 %v2312, 0.5
        %v2360 = vmul.f32 %v2168, 0.5
        %v2361 = vmul.f32 %v2217, 0.5
        %v2362 = vmul.f32 %v2266, 0.5
        %v2363 = vmul.f32 %v2315, 0.5
        %v2364 = vmul.f32 %v2170, 0.5
        %v2365 = vmul.f32 %v2219, 0.5
        %v2366 = vmul.f32 %v2268, 0.5
        %v2367 = vmul.f32 %v2317, 0.5
        %v2368 = vmul.f32 %v2173, 0.5
        %v2369 = vmul.f32 %v2222, 0.5
        %v2370 = vmul.f32 %v2271, 0.5
        %v2371 = vmul.f32 %v2320, 0.5
        %v2372 = vmul.f32 %v2175, 0.5
        %v2373 = vmul.f32 %v2224, 0.5
        %v2374 = vmul.f32 %v2273, 0.5
        %v2375 = vmul.f32 %v2322, 0.5
        %v2376 = vmul.f32 %v2178, 0.5
        %v2377 = vmul.f32 %v2227, 0.5
        %v2378 = vmul.f32 %v2276, 0.5
        %v2379 = vmul.f32 %v2325, 0.5
        %v2380 = vmul.f32 %v2180, 0.5
        %v2381 = vmul.f32 %v2229, 0.5
        %v2382 = vmul.f32 %v2278, 0.5
        %v2383 = vmul.f32 %v2327, 0.5
        %v2384 = vmul.f32 %v2183, 0.5
        %v2385 = vmul.f32 %v2232, 0.5
        %v2386 = vmul.f32 %v2281, 0.5
        %v2387 = vmul.f32 %v2330, 0.5
        %v2388 = vmul.f32 %v2185, 0.5
        %v2389 = vmul.f32 %v2234, 0.5
        %v2390 = vmul.f32 %v2283, 0.5
        %v2391 = vmul.f32 %v2332, 0.5
        %v2392 = vmul.f32 %v2188, 0.5
        %v2393 = vmul.f32 %v2237, 0.5
        %v2394 = vmul.f32 %v2286, 0.5
        %v2395 = vmul.f32 %v2335, 0.5
        %v2396 = vmul.f32 %v2190, 0.5
        %v2397 = vmul.f32 %v2239, 0.5
        %v2398 = vmul.f32 %v2288, 0.5
        %v2399 = vmul.f32 %v2337, 0.5
        %v2400 = vmul.f32 %v2193, 0.5
        %v2401 = vmul.f32 %v2242, 0.5
        %v2402 = vmul.f32 %v2291, 0.5
        %v2403 = vmul.f32 %v2340, 0.5
        %v2404 = vmul.f32 %v2195, 0.5
        %v2405 = vmul.f32 %v2244, 0.5
        %v2406 = vmul.f32 %v2293, 0.5
        %v2407 = vmul.f32 %v2342, 0.5
        %v2408 = vmul.f32 %v2158, 0.044715
        %v2409 = vmul.f32 %v2207, 0.044715
        %v2410 = vmul.f32 %v2256, 0.044715
        %v2411 = vmul.f32 %v2305, 0.044715
        %v2412 = vmul.f32 %v2160, 0.044715
        %v2413 = vmul.f32 %v2209, 0.044715
        %v2414 = vmul.f32 %v2258, 0.044715
        %v2415 = vmul.f32 %v2307, 0.044715
        %v2416 = vmul.f32 %v2163, 0.044715
        %v2417 = vmul.f32 %v2212, 0.044715
        %v2418 = vmul.f32 %v2261, 0.044715
        %v2419 = vmul.f32 %v2310, 0.044715
        %v2420 = vmul.f32 %v2165, 0.044715
        %v2421 = vmul.f32 %v2214, 0.044715
        %v2422 = vmul.f32 %v2263, 0.044715
        %v2423 = vmul.f32 %v2312, 0.044715
        %v2424 = vmul.f32 %v2168, 0.044715
        %v2425 = vmul.f32 %v2217, 0.044715
        %v2426 = vmul.f32 %v2266, 0.044715
        %v2427 = vmul.f32 %v2315, 0.044715
        %v2428 = vmul.f32 %v2170, 0.044715
        %v2429 = vmul.f32 %v2219, 0.044715
        %v2430 = vmul.f32 %v2268, 0.044715
        %v2431 = vmul.f32 %v2317, 0.044715
        %v2432 = vmul.f32 %v2173, 0.044715
        %v2433 = vmul.f32 %v2222, 0.044715
        %v2434 = vmul.f32 %v2271, 0.044715
        %v2435 = vmul.f32 %v2320, 0.044715
        %v2436 = vmul.f32 %v2175, 0.044715
        %v2437 = vmul.f32 %v2224, 0.044715
        %v2438 = vmul.f32 %v2273, 0.044715
        %v2439 = vmul.f32 %v2322, 0.044715
        %v2440 = vmul.f32 %v2178, 0.044715
        %v2441 = vmul.f32 %v2227, 0.044715
        %v2442 = vmul.f32 %v2276, 0.044715
        %v2443 = vmul.f32 %v2325, 0.044715
        %v2444 = vmul.f32 %v2180, 0.044715
        %v2445 = vmul.f32 %v2229, 0.044715
        %v2446 = vmul.f32 %v2278, 0.044715
        %v2447 = vmul.f32 %v2327, 0.044715
        %v2448 = vmul.f32 %v2183, 0.044715
        %v2449 = vmul.f32 %v2232, 0.044715
        %v2450 = vmul.f32 %v2281, 0.044715
        %v2451 = vmul.f32 %v2330, 0.044715
        %v2452 = vmul.f32 %v2185, 0.044715
        %v2453 = vmul.f32 %v2234, 0.044715
        %v2454 = vmul.f32 %v2283, 0.044715
        %v2455 = vmul.f32 %v2332, 0.044715
        %v2456 = vmul.f32 %v2188, 0.044715
        %v2457 = vmul.f32 %v2237, 0.044715
        %v2458 = vmul.f32 %v2286, 0.044715
        %v2459 = vmul.f32 %v2335, 0.044715
        %v2460 = vmul.f32 %v2190, 0.044715
        %v2461 = vmul.f32 %v2239, 0.044715
        %v2462 = vmul.f32 %v2288, 0.044715
        %v2463 = vmul.f32 %v2337, 0.044715
        %v2464 = vmul.f32 %v2193, 0.044715
        %v2465 = vmul.f32 %v2242, 0.044715
        %v2466 = vmul.f32 %v2291, 0.044715
        %v2467 = vmul.f32 %v2340, 0.044715
        %v2468 = vmul.f32 %v2195, 0.044715
        %v2469 = vmul.f32 %v2244, 0.044715
        %v2470 = vmul.f32 %v2293, 0.044715
        %v2471 = vmul.f32 %v2342, 0.044715
        %v2472 = vmul.f32 %v2408, %v2158
        %v2473 = vmul.f32 %v2409, %v2207
        %v2474 = vmul.f32 %v2410, %v2256
        %v2475 = vmul.f32 %v2411, %v2305
        %v2476 = vmul.f32 %v2412, %v2160
        %v2477 = vmul.f32 %v2413, %v2209
        %v2478 = vmul.f32 %v2414, %v2258
        %v2479 = vmul.f32 %v2415, %v2307
        %v2480 = vmul.f32 %v2416, %v2163
        %v2481 = vmul.f32 %v2417, %v2212
        %v2482 = vmul.f32 %v2418, %v2261
        %v2483 = vmul.f32 %v2419, %v2310
        %v2484 = vmul.f32 %v2420, %v2165
        %v2485 = vmul.f32 %v2421, %v2214
        %v2486 = vmul.f32 %v2422, %v2263
        %v2487 = vmul.f32 %v2423, %v2312
        %v2488 = vmul.f32 %v2424, %v2168
        %v2489 = vmul.f32 %v2425, %v2217
        %v2490 = vmul.f32 %v2426, %v2266
        %v2491 = vmul.f32 %v2427, %v2315
        %v2492 = vmul.f32 %v2428, %v2170
        %v2493 = vmul.f32 %v2429, %v2219
        %v2494 = vmul.f32 %v2430, %v2268
        %v2495 = vmul.f32 %v2431, %v2317
        %v2496 = vmul.f32 %v2432, %v2173
        %v2497 = vmul.f32 %v2433, %v2222
        %v2498 = vmul.f32 %v2434, %v2271
        %v2499 = vmul.f32 %v2435, %v2320
        %v2500 = vmul.f32 %v2436, %v2175
        %v2501 = vmul.f32 %v2437, %v2224
        %v2502 = vmul.f32 %v2438, %v2273
        %v2503 = vmul.f32 %v2439, %v2322
        %v2504 = vmul.f32 %v2440, %v2178
        %v2505 = vmul.f32 %v2441, %v2227
        %v2506 = vmul.f32 %v2442, %v2276
        %v2507 = vmul.f32 %v2443, %v2325
        %v2508 = vmul.f32 %v2444, %v2180
        %v2509 = vmul.f32 %v2445, %v2229
        %v2510 = vmul.f32 %v2446, %v2278
        %v2511 = vmul.f32 %v2447, %v2327
        %v2512 = vmul.f32 %v2448, %v2183
        %v2513 = vmul.f32 %v2449, %v2232
        %v2514 = vmul.f32 %v2450, %v2281
        %v2515 = vmul.f32 %v2451, %v2330
        %v2516 = vmul.f32 %v2452, %v2185
        %v2517 = vmul.f32 %v2453, %v2234
        %v2518 = vmul.f32 %v2454, %v2283
        %v2519 = vmul.f32 %v2455, %v2332
        %v2520 = vmul.f32 %v2456, %v2188
        %v2521 = vmul.f32 %v2457, %v2237
        %v2522 = vmul.f32 %v2458, %v2286
        %v2523 = vmul.f32 %v2459, %v2335
        %v2524 = vmul.f32 %v2460, %v2190
        %v2525 = vmul.f32 %v2461, %v2239
        %v2526 = vmul.f32 %v2462, %v2288
        %v2527 = vmul.f32 %v2463, %v2337
        %v2528 = vmul.f32 %v2464, %v2193
        %v2529 = vmul.f32 %v2465, %v2242
        %v2530 = vmul.f32 %v2466, %v2291
        %v2531 = vmul.f32 %v2467, %v2340
        %v2532 = vmul.f32 %v2468, %v2195
        %v2533 = vmul.f32 %v2469, %v2244
        %v2534 = vmul.f32 %v2470, %v2293
        %v2535 = vmul.f32 %v2471, %v2342
        %v2536 = vmul.f32 %v2472, %v2158
        %v2537 = vmul.f32 %v2473, %v2207
        %v2538 = vmul.f32 %v2474, %v2256
        %v2539 = vmul.f32 %v2475, %v2305
        %v2540 = vmul.f32 %v2476, %v2160
        %v2541 = vmul.f32 %v2477, %v2209
        %v2542 = vmul.f32 %v2478, %v2258
        %v2543 = vmul.f32 %v2479, %v2307
        %v2544 = vmul.f32 %v2480, %v2163
        %v2545 = vmul.f32 %v2481, %v2212
        %v2546 = vmul.f32 %v2482, %v2261
        %v2547 = vmul.f32 %v2483, %v2310
        %v2548 = vmul.f32 %v2484, %v2165
        %v2549 = vmul.f32 %v2485, %v2214
        %v2550 = vmul.f32 %v2486, %v2263
        %v2551 = vmul.f32 %v2487, %v2312
        %v2552 = vmul.f32 %v2488, %v2168
        %v2553 = vmul.f32 %v2489, %v2217
        %v2554 = vmul.f32 %v2490, %v2266
        %v2555 = vmul.f32 %v2491, %v2315
        %v2556 = vmul.f32 %v2492, %v2170
        %v2557 = vmul.f32 %v2493, %v2219
        %v2558 = vmul.f32 %v2494, %v2268
        %v2559 = vmul.f32 %v2495, %v2317
        %v2560 = vmul.f32 %v2496, %v2173
        %v2561 = vmul.f32 %v2497, %v2222
        %v2562 = vmul.f32 %v2498, %v2271
        %v2563 = vmul.f32 %v2499, %v2320
        %v2564 = vmul.f32 %v2500, %v2175
        %v2565 = vmul.f32 %v2501, %v2224
        %v2566 = vmul.f32 %v2502, %v2273
        %v2567 = vmul.f32 %v2503, %v2322
        %v2568 = vmul.f32 %v2504, %v2178
        %v2569 = vmul.f32 %v2505, %v2227
        %v2570 = vmul.f32 %v2506, %v2276
        %v2571 = vmul.f32 %v2507, %v2325
        %v2572 = vmul.f32 %v2508, %v2180
        %v2573 = vmul.f32 %v2509, %v2229
        %v2574 = vmul.f32 %v2510, %v2278
        %v2575 = vmul.f32 %v2511, %v2327
        %v2576 = vmul.f32 %v2512, %v2183
        %v2577 = vmul.f32 %v2513, %v2232
        %v2578 = vmul.f32 %v2514, %v2281
        %v2579 = vmul.f32 %v2515, %v2330
        %v2580 = vmul.f32 %v2516, %v2185
        %v2581 = vmul.f32 %v2517, %v2234
        %v2582 = vmul.f32 %v2518, %v2283
        %v2583 = vmul.f32 %v2519, %v2332
        %v2584 = vmul.f32 %v2520, %v2188
        %v2585 = vmul.f32 %v2521, %v2237
        %v2586 = vmul.f32 %v2522, %v2286
        %v2587 = vmul.f32 %v2523, %v2335
        %v2588 = vmul.f32 %v2524, %v2190
        %v2589 = vmul.f32 %v2525, %v2239
        %v2590 = vmul.f32 %v2526, %v2288
        %v2591 = vmul.f32 %v2527, %v2337
        %v2592 = vmul.f32 %v2528, %v2193
        %v2593 = vmul.f32 %v2529, %v2242
        %v2594 = vmul.f32 %v2530, %v2291
        %v2595 = vmul.f32 %v2531, %v2340
        %v2596 = vmul.f32 %v2532, %v2195
        %v2597 = vmul.f32 %v2533, %v2244
        %v2598 = vmul.f32 %v2534, %v2293
        %v2599 = vmul.f32 %v2535, %v2342
        %v2600 = vadd.f32 %v2158, %v2536
        %v2601 = vadd.f32 %v2207, %v2537
        %v2602 = vadd.f32 %v2256, %v2538
        %v2603 = vadd.f32 %v2305, %v2539
        %v2604 = vadd.f32 %v2160, %v2540
        %v2605 = vadd.f32 %v2209, %v2541
        %v2606 = vadd.f32 %v2258, %v2542
        %v2607 = vadd.f32 %v2307, %v2543
        %v2608 = vadd.f32 %v2163, %v2544
        %v2609 = vadd.f32 %v2212, %v2545
        %v2610 = vadd.f32 %v2261, %v2546
        %v2611 = vadd.f32 %v2310, %v2547
        %v2612 = vadd.f32 %v2165, %v2548
        %v2613 = vadd.f32 %v2214, %v2549
        %v2614 = vadd.f32 %v2263, %v2550
        %v2615 = vadd.f32 %v2312, %v2551
        %v2616 = vadd.f32 %v2168, %v2552
        %v2617 = vadd.f32 %v2217, %v2553
        %v2618 = vadd.f32 %v2266, %v2554
        %v2619 = vadd.f32 %v2315, %v2555
        %v2620 = vadd.f32 %v2170, %v2556
        %v2621 = vadd.f32 %v2219, %v2557
        %v2622 = vadd.f32 %v2268, %v2558
        %v2623 = vadd.f32 %v2317, %v2559
        %v2624 = vadd.f32 %v2173, %v2560
        %v2625 = vadd.f32 %v2222, %v2561
        %v2626 = vadd.f32 %v2271, %v2562
        %v2627 = vadd.f32 %v2320, %v2563
        %v2628 = vadd.f32 %v2175, %v2564
        %v2629 = vadd.f32 %v2224, %v2565
        %v2630 = vadd.f32 %v2273, %v2566
        %v2631 = vadd.f32 %v2322, %v2567
        %v2632 = vadd.f32 %v2178, %v2568
        %v2633 = vadd.f32 %v2227, %v2569
        %v2634 = vadd.f32 %v2276, %v2570
        %v2635 = vadd.f32 %v2325, %v2571
        %v2636 = vadd.f32 %v2180, %v2572
        %v2637 = vadd.f32 %v2229, %v2573
        %v2638 = vadd.f32 %v2278, %v2574
        %v2639 = vadd.f32 %v2327, %v2575
        %v2640 = vadd.f32 %v2183, %v2576
        %v2641 = vadd.f32 %v2232, %v2577
        %v2642 = vadd.f32 %v2281, %v2578
        %v2643 = vadd.f32 %v2330, %v2579
        %v2644 = vadd.f32 %v2185, %v2580
        %v2645 = vadd.f32 %v2234, %v2581
        %v2646 = vadd.f32 %v2283, %v2582
        %v2647 = vadd.f32 %v2332, %v2583
        %v2648 = vadd.f32 %v2188, %v2584
        %v2649 = vadd.f32 %v2237, %v2585
        %v2650 = vadd.f32 %v2286, %v2586
        %v2651 = vadd.f32 %v2335, %v2587
        %v2652 = vadd.f32 %v2190, %v2588
        %v2653 = vadd.f32 %v2239, %v2589
        %v2654 = vadd.f32 %v2288, %v2590
        %v2655 = vadd.f32 %v2337, %v2591
        %v2656 = vadd.f32 %v2193, %v2592
        %v2657 = vadd.f32 %v2242, %v2593
        %v2658 = vadd.f32 %v2291, %v2594
        %v2659 = vadd.f32 %v2340, %v2595
        %v2660 = vadd.f32 %v2195, %v2596
        %v2661 = vadd.f32 %v2244, %v2597
        %v2662 = vadd.f32 %v2293, %v2598
        %v2663 = vadd.f32 %v2342, %v2599
        %v2664 = vmul.f32 %v2600, 0.7978846
        %v2665 = vmul.f32 %v2601, 0.7978846
        %v2666 = vmul.f32 %v2602, 0.7978846
        %v2667 = vmul.f32 %v2603, 0.7978846
        %v2668 = vmul.f32 %v2604, 0.7978846
        %v2669 = vmul.f32 %v2605, 0.7978846
        %v2670 = vmul.f32 %v2606, 0.7978846
        %v2671 = vmul.f32 %v2607, 0.7978846
        %v2672 = vmul.f32 %v2608, 0.7978846
        %v2673 = vmul.f32 %v2609, 0.7978846
        %v2674 = vmul.f32 %v2610, 0.7978846
        %v2675 = vmul.f32 %v2611, 0.7978846
        %v2676 = vmul.f32 %v2612, 0.7978846
        %v2677 = vmul.f32 %v2613, 0.7978846
        %v2678 = vmul.f32 %v2614, 0.7978846
        %v2679 = vmul.f32 %v2615, 0.7978846
        %v2680 = vmul.f32 %v2616, 0.7978846
        %v2681 = vmul.f32 %v2617, 0.7978846
        %v2682 = vmul.f32 %v2618, 0.7978846
        %v2683 = vmul.f32 %v2619, 0.7978846
        %v2684 = vmul.f32 %v2620, 0.7978846
        %v2685 = vmul.f32 %v2621, 0.7978846
        %v2686 = vmul.f32 %v2622, 0.7978846
        %v2687 = vmul.f32 %v2623, 0.7978846
        %v2688 = vmul.f32 %v2624, 0.7978846
        %v2689 = vmul.f32 %v2625, 0.7978846
        %v2690 = vmul.f32 %v2626, 0.7978846
        %v2691 = vmul.f32 %v2627, 0.7978846
        %v2692 = vmul.f32 %v2628, 0.7978846
        %v2693 = vmul.f32 %v2629, 0.7978846
        %v2694 = vmul.f32 %v2630, 0.7978846
        %v2695 = vmul.f32 %v2631, 0.7978846
        %v2696 = vmul.f32 %v2632, 0.7978846
        %v2697 = vmul.f32 %v2633, 0.7978846
        %v2698 = vmul.f32 %v2634, 0.7978846
        %v2699 = vmul.f32 %v2635, 0.7978846
        %v2700 = vmul.f32 %v2636, 0.7978846
        %v2701 = vmul.f32 %v2637, 0.7978846
        %v2702 = vmul.f32 %v2638, 0.7978846
        %v2703 = vmul.f32 %v2639, 0.7978846
        %v2704 = vmul.f32 %v2640, 0.7978846
        %v2705 = vmul.f32 %v2641, 0.7978846
        %v2706 = vmul.f32 %v2642, 0.7978846
        %v2707 = vmul.f32 %v2643, 0.7978846
        %v2708 = vmul.f32 %v2644, 0.7978846
        %v2709 = vmul.f32 %v2645, 0.7978846
        %v2710 = vmul.f32 %v2646, 0.7978846
        %v2711 = vmul.f32 %v2647, 0.7978846
        %v2712 = vmul.f32 %v2648, 0.7978846
        %v2713 = vmul.f32 %v2649, 0.7978846
        %v2714 = vmul.f32 %v2650, 0.7978846
        %v2715 = vmul.f32 %v2651, 0.7978846
        %v2716 = vmul.f32 %v2652, 0.7978846
        %v2717 = vmul.f32 %v2653, 0.7978846
        %v2718 = vmul.f32 %v2654, 0.7978846
        %v2719 = vmul.f32 %v2655, 0.7978846
        %v2720 = vmul.f32 %v2656, 0.7978846
        %v2721 = vmul.f32 %v2657, 0.7978846
        %v2722 = vmul.f32 %v2658, 0.7978846
        %v2723 = vmul.f32 %v2659, 0.7978846
        %v2724 = vmul.f32 %v2660, 0.7978846
        %v2725 = vmul.f32 %v2661, 0.7978846
        %v2726 = vmul.f32 %v2662, 0.7978846
        %v2727 = vmul.f32 %v2663, 0.7978846
        %v2728 = vtanh.pop %v2664
        %v2729 = vtanh.pop %v2665
        %v2730 = vtanh.pop %v2666
        %v2731 = vtanh.pop %v2667
        %v2732 = vtanh.pop %v2668
        %v2733 = vtanh.pop %v2669
        %v2734 = vtanh.pop %v2670
        %v2735 = vtanh.pop %v2671
        %v2736 = vtanh.pop %v2672
        %v2737 = vtanh.pop %v2673
        %v2738 = vtanh.pop %v2674
        %v2739 = vtanh.pop %v2675
        %v2740 = vtanh.pop %v2676
        %v2741 = vtanh.pop %v2677
        %v2742 = vtanh.pop %v2678
        %v2743 = vtanh.pop %v2679
        %v2744 = vtanh.pop %v2680
        %v2745 = vtanh.pop %v2681
        %v2746 = vtanh.pop %v2682
        %v2747 = vtanh.pop %v2683
        %v2748 = vtanh.pop %v2684
        %v2749 = vtanh.pop %v2685
        %v2750 = vtanh.pop %v2686
        %v2751 = vtanh.pop %v2687
        %v2752 = vtanh.pop %v2688
        %v2753 = vtanh.pop %v2689
        %v2754 = vtanh.pop %v2690
        %v2755 = vtanh.pop %v2691
        %v2756 = vtanh.pop %v2692
        %v2757 = vtanh.pop %v2693
        %v2758 = vtanh.pop %v2694
        %v2759 = vtanh.pop %v2695
        %v2760 = vtanh.pop %v2696
        %v2761 = vtanh.pop %v2697
        %v2762 = vtanh.pop %v2698
        %v2763 = vtanh.pop %v2699
        %v2764 = vtanh.pop %v2700
        %v2765 = vtanh.pop %v2701
        %v2766 = vtanh.pop %v2702
        %v2767 = vtanh.pop %v2703
        %v2768 = vtanh.pop %v2704
        %v2769 = vtanh.pop %v2705
        %v2770 = vtanh.pop %v2706
        %v2771 = vtanh.pop %v2707
        %v2772 = vtanh.pop %v2708
        %v2773 = vtanh.pop %v2709
        %v2774 = vtanh.pop %v2710
        %v2775 = vtanh.pop %v2711
        %v2776 = vtanh.pop %v2712
        %v2777 = vtanh.pop %v2713
        %v2778 = vtanh.pop %v2714
        %v2779 = vtanh.pop %v2715
        %v2780 = vtanh.pop %v2716
        %v2781 = vtanh.pop %v2717
        %v2782 = vtanh.pop %v2718
        %v2783 = vtanh.pop %v2719
        %v2784 = vtanh.pop %v2720
        %v2785 = vtanh.pop %v2721
        %v2786 = vtanh.pop %v2722
        %v2787 = vtanh.pop %v2723
        %v2788 = vtanh.pop %v2724
        %v2789 = vtanh.pop %v2725
        %v2790 = vtanh.pop %v2726
        %v2791 = vtanh.pop %v2727
        %v2792 = vadd.f32 %v2728, 1.0
        %v2793 = vadd.f32 %v2729, 1.0
        %v2794 = vadd.f32 %v2730, 1.0
        %v2795 = vadd.f32 %v2731, 1.0
        %v2796 = vadd.f32 %v2732, 1.0
        %v2797 = vadd.f32 %v2733, 1.0
        %v2798 = vadd.f32 %v2734, 1.0
        %v2799 = vadd.f32 %v2735, 1.0
        %v2800 = vadd.f32 %v2736, 1.0
        %v2801 = vadd.f32 %v2737, 1.0
        %v2802 = vadd.f32 %v2738, 1.0
        %v2803 = vadd.f32 %v2739, 1.0
        %v2804 = vadd.f32 %v2740, 1.0
        %v2805 = vadd.f32 %v2741, 1.0
        %v2806 = vadd.f32 %v2742, 1.0
        %v2807 = vadd.f32 %v2743, 1.0
        %v2808 = vadd.f32 %v2744, 1.0
        %v2809 = vadd.f32 %v2745, 1.0
        %v2810 = vadd.f32 %v2746, 1.0
        %v2811 = vadd.f32 %v2747, 1.0
        %v2812 = vadd.f32 %v2748, 1.0
        %v2813 = vadd.f32 %v2749, 1.0
        %v2814 = vadd.f32 %v2750, 1.0
        %v2815 = vadd.f32 %v2751, 1.0
        %v2816 = vadd.f32 %v2752, 1.0
        %v2817 = vadd.f32 %v2753, 1.0
        %v2818 = vadd.f32 %v2754, 1.0
        %v2819 = vadd.f32 %v2755, 1.0
        %v2820 = vadd.f32 %v2756, 1.0
        %v2821 = vadd.f32 %v2757, 1.0
        %v2822 = vadd.f32 %v2758, 1.0
        %v2823 = vadd.f32 %v2759, 1.0
        %v2824 = vadd.f32 %v2760, 1.0
        %v2825 = vadd.f32 %v2761, 1.0
        %v2826 = vadd.f32 %v2762, 1.0
        %v2827 = vadd.f32 %v2763, 1.0
        %v2828 = vadd.f32 %v2764, 1.0
        %v2829 = vadd.f32 %v2765, 1.0
        %v2830 = vadd.f32 %v2766, 1.0
        %v2831 = vadd.f32 %v2767, 1.0
        %v2832 = vadd.f32 %v2768, 1.0
        %v2833 = vadd.f32 %v2769, 1.0
        %v2834 = vadd.f32 %v2770, 1.0
        %v2835 = vadd.f32 %v2771, 1.0
        %v2836 = vadd.f32 %v2772, 1.0
        %v2837 = vadd.f32 %v2773, 1.0
        %v2838 = vadd.f32 %v2774, 1.0
        %v2839 = vadd.f32 %v2775, 1.0
        %v2840 = vadd.f32 %v2776, 1.0
        %v2841 = vadd.f32 %v2777, 1.0
        %v2842 = vadd.f32 %v2778, 1.0
        %v2843 = vadd.f32 %v2779, 1.0
        %v2844 = vadd.f32 %v2780, 1.0
        %v2845 = vadd.f32 %v2781, 1.0
        %v2846 = vadd.f32 %v2782, 1.0
        %v2847 = vadd.f32 %v2783, 1.0
        %v2848 = vadd.f32 %v2784, 1.0
        %v2849 = vadd.f32 %v2785, 1.0
        %v2850 = vadd.f32 %v2786, 1.0
        %v2851 = vadd.f32 %v2787, 1.0
        %v2852 = vadd.f32 %v2788, 1.0
        %v2853 = vadd.f32 %v2789, 1.0
        %v2854 = vadd.f32 %v2790, 1.0
        %v2855 = vadd.f32 %v2791, 1.0
        %v2856 = vmul.f32 %v2344, %v2792
        %v2857 = vmul.f32 %v2345, %v2793
        %v2858 = vmul.f32 %v2346, %v2794
        %v2859 = vmul.f32 %v2347, %v2795
        %v2860 = vmul.f32 %v2348, %v2796
        %v2861 = vmul.f32 %v2349, %v2797
        %v2862 = vmul.f32 %v2350, %v2798
        %v2863 = vmul.f32 %v2351, %v2799
        %v2864 = vmul.f32 %v2352, %v2800
        %v2865 = vmul.f32 %v2353, %v2801
        %v2866 = vmul.f32 %v2354, %v2802
        %v2867 = vmul.f32 %v2355, %v2803
        %v2868 = vmul.f32 %v2356, %v2804
        %v2869 = vmul.f32 %v2357, %v2805
        %v2870 = vmul.f32 %v2358, %v2806
        %v2871 = vmul.f32 %v2359, %v2807
        %v2872 = vmul.f32 %v2360, %v2808
        %v2873 = vmul.f32 %v2361, %v2809
        %v2874 = vmul.f32 %v2362, %v2810
        %v2875 = vmul.f32 %v2363, %v2811
        %v2876 = vmul.f32 %v2364, %v2812
        %v2877 = vmul.f32 %v2365, %v2813
        %v2878 = vmul.f32 %v2366, %v2814
        %v2879 = vmul.f32 %v2367, %v2815
        %v2880 = vmul.f32 %v2368, %v2816
        %v2881 = vmul.f32 %v2369, %v2817
        %v2882 = vmul.f32 %v2370, %v2818
        %v2883 = vmul.f32 %v2371, %v2819
        %v2884 = vmul.f32 %v2372, %v2820
        %v2885 = vmul.f32 %v2373, %v2821
        %v2886 = vmul.f32 %v2374, %v2822
        %v2887 = vmul.f32 %v2375, %v2823
        %v2888 = vmul.f32 %v2376, %v2824
        %v2889 = vmul.f32 %v2377, %v2825
        %v2890 = vmul.f32 %v2378, %v2826
        %v2891 = vmul.f32 %v2379, %v2827
        %v2892 = vmul.f32 %v2380, %v2828
        %v2893 = vmul.f32 %v2381, %v2829
        %v2894 = vmul.f32 %v2382, %v2830
        %v2895 = vmul.f32 %v2383, %v2831
        %v2896 = vmul.f32 %v2384, %v2832
        %v2897 = vmul.f32 %v2385, %v2833
        %v2898 = vmul.f32 %v2386, %v2834
        %v2899 = vmul.f32 %v2387, %v2835
        %v2900 = vmul.f32 %v2388, %v2836
        %v2901 = vmul.f32 %v2389, %v2837
        %v2902 = vmul.f32 %v2390, %v2838
        %v2903 = vmul.f32 %v2391, %v2839
        %v2904 = vmul.f32 %v2392, %v2840
        %v2905 = vmul.f32 %v2393, %v2841
        %v2906 = vmul.f32 %v2394, %v2842
        %v2907 = vmul.f32 %v2395, %v2843
        %v2908 = vmul.f32 %v2396, %v2844
        %v2909 = vmul.f32 %v2397, %v2845
        %v2910 = vmul.f32 %v2398, %v2846
        %v2911 = vmul.f32 %v2399, %v2847
        %v2912 = vmul.f32 %v2400, %v2848
        %v2913 = vmul.f32 %v2401, %v2849
        %v2914 = vmul.f32 %v2402, %v2850
        %v2915 = vmul.f32 %v2403, %v2851
        %v2916 = vmul.f32 %v2404, %v2852
        %v2917 = vmul.f32 %v2405, %v2853
        %v2918 = vmul.f32 %v2406, %v2854
        %v2919 = vmul.f32 %v2407, %v2855
        %v2920 = vpack.c.bf16 %v2860, %v2856
        %v2921 = vpack.c.bf16 %v2861, %v2857
        %v2922 = vpack.c.bf16 %v2862, %v2858
        %v2923 = vpack.c.bf16 %v2863, %v2859
        %v2924 = vpack.c.bf16 %v2868, %v2864
        %v2925 = vpack.c.bf16 %v2869, %v2865
        %v2926 = vpack.c.bf16 %v2870, %v2866
        %v2927 = vpack.c.bf16 %v2871, %v2867
        %v2928 = vpack.c.bf16 %v2876, %v2872
        %v2929 = vpack.c.bf16 %v2877, %v2873
        %v2930 = vpack.c.bf16 %v2878, %v2874
        %v2931 = vpack.c.bf16 %v2879, %v2875
        %v2932 = vpack.c.bf16 %v2884, %v2880
        %v2933 = vpack.c.bf16 %v2885, %v2881
        %v2934 = vpack.c.bf16 %v2886, %v2882
        %v2935 = vpack.c.bf16 %v2887, %v2883
        %v2936 = vpack.c.bf16 %v2892, %v2888
        %v2937 = vpack.c.bf16 %v2893, %v2889
        %v2938 = vpack.c.bf16 %v2894, %v2890
        %v2939 = vpack.c.bf16 %v2895, %v2891
        %v2940 = vpack.c.bf16 %v2900, %v2896
        %v2941 = vpack.c.bf16 %v2901, %v2897
        %v2942 = vpack.c.bf16 %v2902, %v2898
        %v2943 = vpack.c.bf16 %v2903, %v2899
        %v2944 = vpack.c.bf16 %v2908, %v2904
        %v2945 = vpack.c.bf16 %v2909, %v2905
        %v2946 = vpack.c.bf16 %v2910, %v2906
        %v2947 = vpack.c.bf16 %v2911, %v2907
        %v2948 = vpack.c.bf16 %v2916, %v2912
        %v2949 = vpack.c.bf16 %v2917, %v2913
        %v2950 = vpack.c.bf16 %v2918, %v2914
        %v2951 = vpack.c.bf16 %v2919, %v2915
        %v2952 = vld [vmem:[%s765] sm:$0xf]
        %v2953 = vld [vmem:[%s765 + $0x4] sm:$0xf]
        %v2954 = vld [vmem:[%s765 + $0x8] sm:$0xf]
        %v2955 = vld [vmem:[%s765 + $0xc] sm:$0xf]
        %v2956 = vld [vmem:[%s765 + $0x10] sm:$0xf]
        %v2957 = vld [vmem:[%s765 + $0x14] sm:$0xf]
        %v2958 = vld [vmem:[%s765 + $0x18] sm:$0xf]
        %v2959 = vld [vmem:[%s765 + $0x1c] sm:$0xf]
        %v2960 = vld [vmem:[%s765 + $0x20] sm:$0xf]
        %v2961 = vld [vmem:[%s765 + $0x24] sm:$0xf]
        %v2962 = vld [vmem:[%s765 + $0x28] sm:$0xf]
        %v2963 = vld [vmem:[%s765 + $0x2c] sm:$0xf]
        %v2964 = vld [vmem:[%s765 + $0x30] sm:$0xf]
        %v2965 = vld [vmem:[%s765 + $0x34] sm:$0xf]
        %v2966 = vld [vmem:[%s765 + $0x38] sm:$0xf]
        %v2967 = vld [vmem:[%s765 + $0x3c] sm:$0xf]
        %v2968 = vld [vmem:[%s765 + $0x40] sm:$0xf]
        %v2969 = vld [vmem:[%s765 + $0x44] sm:$0xf]
        %v2970 = vld [vmem:[%s765 + $0x48] sm:$0xf]
        %v2971 = vld [vmem:[%s765 + $0x4c] sm:$0xf]
        %v2972 = vld [vmem:[%s765 + $0x50] sm:$0xf]
        %v2973 = vld [vmem:[%s765 + $0x54] sm:$0xf]
        %v2974 = vld [vmem:[%s765 + $0x58] sm:$0xf]
        %v2975 = vld [vmem:[%s765 + $0x5c] sm:$0xf]
        %v2976 = vld [vmem:[%s765 + $0x60] sm:$0xf]
        %v2977 = vld [vmem:[%s765 + $0x64] sm:$0xf]
        %v2978 = vld [vmem:[%s765 + $0x68] sm:$0xf]
        %v2979 = vld [vmem:[%s765 + $0x6c] sm:$0xf]
        %v2980 = vld [vmem:[%s765 + $0x70] sm:$0xf]
        %v2981 = vld [vmem:[%s765 + $0x74] sm:$0xf]
        %v2982 = vld [vmem:[%s765 + $0x78] sm:$0xf]
        %v2983 = vld [vmem:[%s765 + $0x7c] sm:$0xf]
        %v2984 = vld [vmem:[%s765 + $0x80] sm:$0xf]
        %v2985 = vld [vmem:[%s765 + $0x84] sm:$0xf]
        %v2986 = vld [vmem:[%s765 + $0x88] sm:$0xf]
        %v2987 = vld [vmem:[%s765 + $0x8c] sm:$0xf]
        %v2988 = vld [vmem:[%s765 + $0x90] sm:$0xf]
        %v2989 = vld [vmem:[%s765 + $0x94] sm:$0xf]
        %v2990 = vld [vmem:[%s765 + $0x98] sm:$0xf]
        %v2991 = vld [vmem:[%s765 + $0x9c] sm:$0xf]
        %v2992 = vld [vmem:[%s765 + $0xa0] sm:$0xf]
        %v2993 = vld [vmem:[%s765 + $0xa4] sm:$0xf]
        %v2994 = vld [vmem:[%s765 + $0xa8] sm:$0xf]
        %v2995 = vld [vmem:[%s765 + $0xac] sm:$0xf]
        %v2996 = vld [vmem:[%s765 + $0xb0] sm:$0xf]
        %v2997 = vld [vmem:[%s765 + $0xb4] sm:$0xf]
        %v2998 = vld [vmem:[%s765 + $0xb8] sm:$0xf]
        %v2999 = vld [vmem:[%s765 + $0xbc] sm:$0xf]
        %v3000 = vld [vmem:[%s765 + $0xc0] sm:$0xf]
        %v3001 = vld [vmem:[%s765 + $0xc4] sm:$0xf]
        %v3002 = vld [vmem:[%s765 + $0xc8] sm:$0xf]
        %v3003 = vld [vmem:[%s765 + $0xcc] sm:$0xf]
        %v3004 = vld [vmem:[%s765 + $0xd0] sm:$0xf]
        %v3005 = vld [vmem:[%s765 + $0xd4] sm:$0xf]
        %v3006 = vld [vmem:[%s765 + $0xd8] sm:$0xf]
        %v3007 = vld [vmem:[%s765 + $0xdc] sm:$0xf]
        %v3008 = vld [vmem:[%s765 + $0xe0] sm:$0xf]
        %v3009 = vld [vmem:[%s765 + $0xe4] sm:$0xf]
        %v3010 = vld [vmem:[%s765 + $0xe8] sm:$0xf]
        %v3011 = vld [vmem:[%s765 + $0xec] sm:$0xf]
        %v3012 = vld [vmem:[%s765 + $0xf0] sm:$0xf]
        %v3013 = vld [vmem:[%s765 + $0xf4] sm:$0xf]
        %v3014 = vld [vmem:[%s765 + $0xf8] sm:$0xf]
        %v3015 = vld [vmem:[%s765 + $0xfc] sm:$0xf]
        %v3016 = vld [vmem:[%s623] sm:$0x1]
        %v3018 = vperm.slane %v3016, 0
        %v3084 = vunpack.c.l.b16 %v2952
        %v3085 = vunpack.c.l.b16 %v2953
        %v3086 = vunpack.c.l.b16 %v2954
        %v3087 = vunpack.c.l.b16 %v2955
        %v3088 = vunpack.c.l.b16 %v2956
        %v3089 = vunpack.c.l.b16 %v2957
        %v3090 = vunpack.c.l.b16 %v2958
        %v3091 = vunpack.c.l.b16 %v2959
        %v3092 = vunpack.c.l.b16 %v2960
        %v3093 = vunpack.c.l.b16 %v2961
        %v3094 = vunpack.c.l.b16 %v2962
        %v3095 = vunpack.c.l.b16 %v2963
        %v3096 = vunpack.c.l.b16 %v2964
        %v3097 = vunpack.c.l.b16 %v2965
        %v3098 = vunpack.c.l.b16 %v2966
        %v3099 = vunpack.c.l.b16 %v2967
        %v3100 = vunpack.c.l.b16 %v2968
        %v3101 = vunpack.c.l.b16 %v2969
        %v3102 = vunpack.c.l.b16 %v2970
        %v3103 = vunpack.c.l.b16 %v2971
        %v3104 = vunpack.c.l.b16 %v2972
        %v3105 = vunpack.c.l.b16 %v2973
        %v3106 = vunpack.c.l.b16 %v2974
        %v3107 = vunpack.c.l.b16 %v2975
        %v3108 = vunpack.c.l.b16 %v2976
        %v3109 = vunpack.c.l.b16 %v2977
        %v3110 = vunpack.c.l.b16 %v2978
        %v3111 = vunpack.c.l.b16 %v2979
        %v3112 = vunpack.c.l.b16 %v2980
        %v3113 = vunpack.c.l.b16 %v2981
        %v3114 = vunpack.c.l.b16 %v2982
        %v3115 = vunpack.c.l.b16 %v2983
        %v3116 = vunpack.c.l.b16 %v2984
        %v3117 = vunpack.c.l.b16 %v2985
        %v3118 = vunpack.c.l.b16 %v2986
        %v3119 = vunpack.c.l.b16 %v2987
        %v3120 = vunpack.c.l.b16 %v2988
        %v3121 = vunpack.c.l.b16 %v2989
        %v3122 = vunpack.c.l.b16 %v2990
        %v3123 = vunpack.c.l.b16 %v2991
        %v3124 = vunpack.c.l.b16 %v2992
        %v3125 = vunpack.c.l.b16 %v2993
        %v3126 = vunpack.c.l.b16 %v2994
        %v3127 = vunpack.c.l.b16 %v2995
        %v3128 = vunpack.c.l.b16 %v2996
        %v3129 = vunpack.c.l.b16 %v2997
        %v3130 = vunpack.c.l.b16 %v2998
        %v3131 = vunpack.c.l.b16 %v2999
        %v3132 = vunpack.c.l.b16 %v3000
        %v3133 = vunpack.c.l.b16 %v3001
        %v3134 = vunpack.c.l.b16 %v3002
        %v3135 = vunpack.c.l.b16 %v3003
        %v3136 = vunpack.c.l.b16 %v3004
        %v3137 = vunpack.c.l.b16 %v3005
        %v3138 = vunpack.c.l.b16 %v3006
        %v3139 = vunpack.c.l.b16 %v3007
        %v3140 = vunpack.c.l.b16 %v3008
        %v3141 = vunpack.c.l.b16 %v3009
        %v3142 = vunpack.c.l.b16 %v3010
        %v3143 = vunpack.c.l.b16 %v3011
        %v3144 = vunpack.c.l.b16 %v3012
        %v3145 = vunpack.c.l.b16 %v3013
        %v3146 = vunpack.c.l.b16 %v3014
        %v3147 = vunpack.c.l.b16 %v3015
        %v3148 = vpack.c.b16 %v3085, %v3084
        %v3149 = vpack.c.b16 %v3087, %v3086
        %v3150 = vpack.c.b16 %v3089, %v3088
        %v3151 = vpack.c.b16 %v3091, %v3090
        %v3152 = vpack.c.b16 %v3093, %v3092
        %v3153 = vpack.c.b16 %v3095, %v3094
        %v3154 = vpack.c.b16 %v3097, %v3096
        %v3155 = vpack.c.b16 %v3099, %v3098
        %v3156 = vpack.c.b16 %v3101, %v3100
        %v3157 = vpack.c.b16 %v3103, %v3102
        %v3158 = vpack.c.b16 %v3105, %v3104
        %v3159 = vpack.c.b16 %v3107, %v3106
        %v3160 = vpack.c.b16 %v3109, %v3108
        %v3161 = vpack.c.b16 %v3111, %v3110
        %v3162 = vpack.c.b16 %v3113, %v3112
        %v3163 = vpack.c.b16 %v3115, %v3114
        %v3164 = vpack.c.b16 %v3117, %v3116
        %v3165 = vpack.c.b16 %v3119, %v3118
        %v3166 = vpack.c.b16 %v3121, %v3120
        %v3167 = vpack.c.b16 %v3123, %v3122
        %v3168 = vpack.c.b16 %v3125, %v3124
        %v3169 = vpack.c.b16 %v3127, %v3126
        %v3170 = vpack.c.b16 %v3129, %v3128
        %v3171 = vpack.c.b16 %v3131, %v3130
        %v3172 = vpack.c.b16 %v3133, %v3132
        %v3173 = vpack.c.b16 %v3135, %v3134
        %v3174 = vpack.c.b16 %v3137, %v3136
        %v3175 = vpack.c.b16 %v3139, %v3138
        %v3176 = vpack.c.b16 %v3141, %v3140
        %v3177 = vpack.c.b16 %v3143, %v3142
        %v3178 = vpack.c.b16 %v3145, %v3144
        %v3179 = vpack.c.b16 %v3147, %v3146
        %3212 = vmatpush.bf16.msra.mxu0 %v3155
        %3213 = vmatpush.bf16.msra.mxu0 %v3154
        %3214 = vmatpush.bf16.msra.mxu0 %v3153
        %3215 = vmatpush.bf16.msra.mxu0 %v3152
        %3216 = vmatpush.bf16.msra.mxu0 %v3151
        %3217 = vmatpush.bf16.msra.mxu0 %v3150
        %3218 = vmatpush.bf16.msra.mxu0 %v3149
        %3219 = vmatpush.bf16.msra.mxu0 %v3148
        %3220 = vmatmul.bf16.gmra.mxu0 %v2920
        %v3221 = vpop.f32.mrf.mxu0
        %v3222 = vadd.f32 %v3018, %v3221
        %v3223 = vpop.f32.mrf.mxu0
        %v3224 = vadd.f32 %v3018, %v3223
        %3225 = vmatmul.bf16.gmra.mxu0 %v2924
        %v3226 = vpop.f32.mrf.mxu0
        %v3227 = vadd.f32 %v3018, %v3226
        %v3228 = vpop.f32.mrf.mxu0
        %v3229 = vadd.f32 %v3018, %v3228
        %3230 = vmatmul.bf16.gmra.mxu0 %v2928
        %v3231 = vpop.f32.mrf.mxu0
        %v3232 = vadd.f32 %v3018, %v3231
        %v3233 = vpop.f32.mrf.mxu0
        %v3234 = vadd.f32 %v3018, %v3233
        %3235 = vmatmul.bf16.gmra.mxu0 %v2932
        %v3236 = vpop.f32.mrf.mxu0
        %v3237 = vadd.f32 %v3018, %v3236
        %v3238 = vpop.f32.mrf.mxu0
        %v3239 = vadd.f32 %v3018, %v3238
        %3240 = vmatmul.bf16.gmra.mxu0 %v2936
        %v3241 = vpop.f32.mrf.mxu0
        %v3242 = vadd.f32 %v3018, %v3241
        %v3243 = vpop.f32.mrf.mxu0
        %v3244 = vadd.f32 %v3018, %v3243
        %3245 = vmatmul.bf16.gmra.mxu0 %v2940
        %v3246 = vpop.f32.mrf.mxu0
        %v3247 = vadd.f32 %v3018, %v3246
        %v3248 = vpop.f32.mrf.mxu0
        %v3249 = vadd.f32 %v3018, %v3248
        %3250 = vmatmul.bf16.gmra.mxu0 %v2944
        %v3251 = vpop.f32.mrf.mxu0
        %v3252 = vadd.f32 %v3018, %v3251
        %v3253 = vpop.f32.mrf.mxu0
        %v3254 = vadd.f32 %v3018, %v3253
        %3255 = vmatmul.bf16.gmra.mxu0 %v2948
        %v3256 = vpop.f32.mrf.mxu0
        %v3257 = vadd.f32 %v3018, %v3256
        %v3258 = vpop.f32.mrf.mxu0
        %v3259 = vadd.f32 %v3018, %v3258
        %3260 = vdwg.mxu0
        %3261 = vmatpush.bf16.msra.mxu0 %v3163
        %3262 = vmatpush.bf16.msra.mxu0 %v3162
        %3263 = vmatpush.bf16.msra.mxu0 %v3161
        %3264 = vmatpush.bf16.msra.mxu0 %v3160
        %3265 = vmatpush.bf16.msra.mxu0 %v3159
        %3266 = vmatpush.bf16.msra.mxu0 %v3158
        %3267 = vmatpush.bf16.msra.mxu0 %v3157
        %3268 = vmatpush.bf16.msra.mxu0 %v3156
        %3269 = vmatmul.bf16.gmra.mxu0 %v2921
        %v3270 = vpop.f32.mrf.mxu0
        %v3271 = vadd.f32 %v3222, %v3270
        %v3272 = vpop.f32.mrf.mxu0
        %v3273 = vadd.f32 %v3224, %v3272
        %3274 = vmatmul.bf16.gmra.mxu0 %v2925
        %v3275 = vpop.f32.mrf.mxu0
        %v3276 = vadd.f32 %v3227, %v3275
        %v3277 = vpop.f32.mrf.mxu0
        %v3278 = vadd.f32 %v3229, %v3277
        %3279 = vmatmul.bf16.gmra.mxu0 %v2929
        %v3280 = vpop.f32.mrf.mxu0
        %v3281 = vadd.f32 %v3232, %v3280
        %v3282 = vpop.f32.mrf.mxu0
        %v3283 = vadd.f32 %v3234, %v3282
        %3284 = vmatmul.bf16.gmra.mxu0 %v2933
        %v3285 = vpop.f32.mrf.mxu0
        %v3286 = vadd.f32 %v3237, %v3285
        %v3287 = vpop.f32.mrf.mxu0
        %v3288 = vadd.f32 %v3239, %v3287
        %3289 = vmatmul.bf16.gmra.mxu0 %v2937
        %v3290 = vpop.f32.mrf.mxu0
        %v3291 = vadd.f32 %v3242, %v3290
        %v3292 = vpop.f32.mrf.mxu0
        %v3293 = vadd.f32 %v3244, %v3292
        %3294 = vmatmul.bf16.gmra.mxu0 %v2941
        %v3295 = vpop.f32.mrf.mxu0
        %v3296 = vadd.f32 %v3247, %v3295
        %v3297 = vpop.f32.mrf.mxu0
        %v3298 = vadd.f32 %v3249, %v3297
        %3299 = vmatmul.bf16.gmra.mxu0 %v2945
        %v3300 = vpop.f32.mrf.mxu0
        %v3301 = vadd.f32 %v3252, %v3300
        %v3302 = vpop.f32.mrf.mxu0
        %v3303 = vadd.f32 %v3254, %v3302
        %3304 = vmatmul.bf16.gmra.mxu0 %v2949
        %v3305 = vpop.f32.mrf.mxu0
        %v3306 = vadd.f32 %v3257, %v3305
        %v3307 = vpop.f32.mrf.mxu0
        %v3308 = vadd.f32 %v3259, %v3307
        %3309 = vdwg.mxu0
        %3310 = vmatpush.bf16.msra.mxu0 %v3171
        %3311 = vmatpush.bf16.msra.mxu0 %v3170
        %3312 = vmatpush.bf16.msra.mxu0 %v3169
        %3313 = vmatpush.bf16.msra.mxu0 %v3168
        %3314 = vmatpush.bf16.msra.mxu0 %v3167
        %3315 = vmatpush.bf16.msra.mxu0 %v3166
        %3316 = vmatpush.bf16.msra.mxu0 %v3165
        %3317 = vmatpush.bf16.msra.mxu0 %v3164
        %3318 = vmatmul.bf16.gmra.mxu0 %v2922
        %v3319 = vpop.f32.mrf.mxu0
        %v3320 = vadd.f32 %v3271, %v3319
        %v3321 = vpop.f32.mrf.mxu0
        %v3322 = vadd.f32 %v3273, %v3321
        %3323 = vmatmul.bf16.gmra.mxu0 %v2926
        %v3324 = vpop.f32.mrf.mxu0
        %v3325 = vadd.f32 %v3276, %v3324
        %v3326 = vpop.f32.mrf.mxu0
        %v3327 = vadd.f32 %v3278, %v3326
        %3328 = vmatmul.bf16.gmra.mxu0 %v2930
        %v3329 = vpop.f32.mrf.mxu0
        %v3330 = vadd.f32 %v3281, %v3329
        %v3331 = vpop.f32.mrf.mxu0
        %v3332 = vadd.f32 %v3283, %v3331
        %3333 = vmatmul.bf16.gmra.mxu0 %v2934
        %v3334 = vpop.f32.mrf.mxu0
        %v3335 = vadd.f32 %v3286, %v3334
        %v3336 = vpop.f32.mrf.mxu0
        %v3337 = vadd.f32 %v3288, %v3336
        %3338 = vmatmul.bf16.gmra.mxu0 %v2938
        %v3339 = vpop.f32.mrf.mxu0
        %v3340 = vadd.f32 %v3291, %v3339
        %v3341 = vpop.f32.mrf.mxu0
        %v3342 = vadd.f32 %v3293, %v3341
        %3343 = vmatmul.bf16.gmra.mxu0 %v2942
        %v3344 = vpop.f32.mrf.mxu0
        %v3345 = vadd.f32 %v3296, %v3344
        %v3346 = vpop.f32.mrf.mxu0
        %v3347 = vadd.f32 %v3298, %v3346
        %3348 = vmatmul.bf16.gmra.mxu0 %v2946
        %v3349 = vpop.f32.mrf.mxu0
        %v3350 = vadd.f32 %v3301, %v3349
        %v3351 = vpop.f32.mrf.mxu0
        %v3352 = vadd.f32 %v3303, %v3351
        %3353 = vmatmul.bf16.gmra.mxu0 %v2950
        %v3354 = vpop.f32.mrf.mxu0
        %v3355 = vadd.f32 %v3306, %v3354
        %v3356 = vpop.f32.mrf.mxu0
        %v3357 = vadd.f32 %v3308, %v3356
        %3358 = vdwg.mxu0
        %3359 = vmatpush.bf16.msra.mxu0 %v3179
        %3360 = vmatpush.bf16.msra.mxu0 %v3178
        %3361 = vmatpush.bf16.msra.mxu0 %v3177
        %3362 = vmatpush.bf16.msra.mxu0 %v3176
        %3363 = vmatpush.bf16.msra.mxu0 %v3175
        %3364 = vmatpush.bf16.msra.mxu0 %v3174
        %3365 = vmatpush.bf16.msra.mxu0 %v3173
        %3366 = vmatpush.bf16.msra.mxu0 %v3172
        %3367 = vmatmul.bf16.gmra.mxu0 %v2923
        %v3368 = vpop.f32.mrf.mxu0
        %v3369 = vadd.f32 %v3320, %v3368
        %v3370 = vpop.f32.mrf.mxu0
        %v3371 = vadd.f32 %v3322, %v3370
        %3372 = vmatmul.bf16.gmra.mxu0 %v2927
        %v3373 = vpop.f32.mrf.mxu0
        %v3374 = vadd.f32 %v3325, %v3373
        %v3375 = vpop.f32.mrf.mxu0
        %v3376 = vadd.f32 %v3327, %v3375
        %3377 = vmatmul.bf16.gmra.mxu0 %v2931
        %v3378 = vpop.f32.mrf.mxu0
        %v3379 = vadd.f32 %v3330, %v3378
        %v3380 = vpop.f32.mrf.mxu0
        %v3381 = vadd.f32 %v3332, %v3380
        %3382 = vmatmul.bf16.gmra.mxu0 %v2935
        %v3383 = vpop.f32.mrf.mxu0
        %v3384 = vadd.f32 %v3335, %v3383
        %v3385 = vpop.f32.mrf.mxu0
        %v3386 = vadd.f32 %v3337, %v3385
        %3387 = vmatmul.bf16.gmra.mxu0 %v2939
        %v3388 = vpop.f32.mrf.mxu0
        %v3389 = vadd.f32 %v3340, %v3388
        %v3390 = vpop.f32.mrf.mxu0
        %v3391 = vadd.f32 %v3342, %v3390
        %3392 = vmatmul.bf16.gmra.mxu0 %v2943
        %v3393 = vpop.f32.mrf.mxu0
        %v3394 = vadd.f32 %v3345, %v3393
        %v3395 = vpop.f32.mrf.mxu0
        %v3396 = vadd.f32 %v3347, %v3395
        %3397 = vmatmul.bf16.gmra.mxu0 %v2947
        %v3398 = vpop.f32.mrf.mxu0
        %v3399 = vadd.f32 %v3350, %v3398
        %v3400 = vpop.f32.mrf.mxu0
        %v3401 = vadd.f32 %v3352, %v3400
        %3402 = vmatmul.bf16.gmra.mxu0 %v2951
        %v3403 = vpop.f32.mrf.mxu0
        %v3404 = vadd.f32 %v3355, %v3403
        %v3405 = vpop.f32.mrf.mxu0
        %v3406 = vadd.f32 %v3357, %v3405
        %3407 = vdwg.mxu0
        %v3408 = vadd.f32 %v1922, %v3369
        %v3409 = vadd.f32 %v1923, %v3371
        %v3410 = vadd.f32 %v1924, %v3374
        %v3411 = vadd.f32 %v1925, %v3376
        %v3412 = vadd.f32 %v1926, %v3379
        %v3413 = vadd.f32 %v1927, %v3381
        %v3414 = vadd.f32 %v1928, %v3384
        %v3415 = vadd.f32 %v1929, %v3386
        %v3416 = vadd.f32 %v1930, %v3389
        %v3417 = vadd.f32 %v1931, %v3391
        %v3418 = vadd.f32 %v1932, %v3394
        %v3419 = vadd.f32 %v1933, %v3396
        %v3420 = vadd.f32 %v1934, %v3399
        %v3421 = vadd.f32 %v1935, %v3401
        %v3422 = vadd.f32 %v1936, %v3404
        %v3423 = vadd.f32 %v1937, %v3406
        %v3424 = vld [vmem:[%s633] sm:$0x3]
        %3425 = vadd.xlane.f32.xlu0 %v3408
        %v3426 = vpop.xlane.xlu0 %3425
        %3427 = vadd.xlane.f32.xlu0 %v3409
        %v3428 = vpop.xlane.xlu0 %3427
        %3429 = vadd.xlane.f32.xlu0 %v3410
        %v3430 = vpop.xlane.xlu0 %3429
        %3431 = vadd.xlane.f32.xlu0 %v3411
        %v3432 = vpop.xlane.xlu0 %3431
        %3433 = vadd.xlane.f32.xlu0 %v3412
        %v3434 = vpop.xlane.xlu0 %3433
        %3435 = vadd.xlane.f32.xlu0 %v3413
        %v3436 = vpop.xlane.xlu0 %3435
        %3437 = vadd.xlane.f32.xlu0 %v3414
        %v3438 = vpop.xlane.xlu0 %3437
        %3439 = vadd.xlane.f32.xlu0 %v3415
        %v3440 = vpop.xlane.xlu0 %3439
        %3441 = vadd.xlane.f32.xlu0 %v3416
        %v3442 = vpop.xlane.xlu0 %3441
        %3443 = vadd.xlane.f32.xlu0 %v3417
        %v3444 = vpop.xlane.xlu0 %3443
        %3445 = vadd.xlane.f32.xlu0 %v3418
        %v3446 = vpop.xlane.xlu0 %3445
        %3447 = vadd.xlane.f32.xlu0 %v3419
        %v3448 = vpop.xlane.xlu0 %3447
        %3449 = vadd.xlane.f32.xlu0 %v3420
        %v3450 = vpop.xlane.xlu0 %3449
        %3451 = vadd.xlane.f32.xlu0 %v3421
        %v3452 = vpop.xlane.xlu0 %3451
        %3453 = vadd.xlane.f32.xlu0 %v3422
        %v3454 = vpop.xlane.xlu0 %3453
        %3455 = vadd.xlane.f32.xlu0 %v3423
        %v3456 = vpop.xlane.xlu0 %3455
        %v3457 = vmul.f32 %v3426, %v1615
        %v3458 = vmul.f32 %v3428, %v1615
        %v3459 = vmul.f32 %v3430, %v1615
        %v3460 = vmul.f32 %v3432, %v1615
        %v3461 = vmul.f32 %v3434, %v1615
        %v3462 = vmul.f32 %v3436, %v1615
        %v3463 = vmul.f32 %v3438, %v1615
        %v3464 = vmul.f32 %v3440, %v1615
        %v3465 = vmul.f32 %v3442, %v1615
        %v3466 = vmul.f32 %v3444, %v1615
        %v3467 = vmul.f32 %v3446, %v1615
        %v3468 = vmul.f32 %v3448, %v1615
        %v3469 = vmul.f32 %v3450, %v1615
        %v3470 = vmul.f32 %v3452, %v1615
        %v3471 = vmul.f32 %v3454, %v1615
        %v3472 = vmul.f32 %v3456, %v1615
        %v3473 = vsub.f32 %v3408, %v3457
        %v3474 = vsub.f32 %v3409, %v3458
        %v3475 = vsub.f32 %v3410, %v3459
        %v3476 = vsub.f32 %v3411, %v3460
        %v3477 = vsub.f32 %v3412, %v3461
        %v3478 = vsub.f32 %v3413, %v3462
        %v3479 = vsub.f32 %v3414, %v3463
        %v3480 = vsub.f32 %v3415, %v3464
        %v3481 = vsub.f32 %v3416, %v3465
        %v3482 = vsub.f32 %v3417, %v3466
        %v3483 = vsub.f32 %v3418, %v3467
        %v3484 = vsub.f32 %v3419, %v3468
        %v3485 = vsub.f32 %v3420, %v3469
        %v3486 = vsub.f32 %v3421, %v3470
        %v3487 = vsub.f32 %v3422, %v3471
        %v3488 = vsub.f32 %v3423, %v3472
        %v3489 = vmul.f32 %v3473, %v3473
        %v3490 = vmul.f32 %v3474, %v3474
        %v3491 = vmul.f32 %v3475, %v3475
        %v3492 = vmul.f32 %v3476, %v3476
        %v3493 = vmul.f32 %v3477, %v3477
        %v3494 = vmul.f32 %v3478, %v3478
        %v3495 = vmul.f32 %v3479, %v3479
        %v3496 = vmul.f32 %v3480, %v3480
        %v3497 = vmul.f32 %v3481, %v3481
        %v3498 = vmul.f32 %v3482, %v3482
        %v3499 = vmul.f32 %v3483, %v3483
        %v3500 = vmul.f32 %v3484, %v3484
        %v3501 = vmul.f32 %v3485, %v3485
        %v3502 = vmul.f32 %v3486, %v3486
        %v3503 = vmul.f32 %v3487, %v3487
        %v3504 = vmul.f32 %v3488, %v3488
        %3505 = vadd.xlane.f32.xlu0 %v3489
        %v3506 = vpop.xlane.xlu0 %3505
        %3507 = vadd.xlane.f32.xlu0 %v3490
        %v3508 = vpop.xlane.xlu0 %3507
        %3509 = vadd.xlane.f32.xlu0 %v3491
        %v3510 = vpop.xlane.xlu0 %3509
        %3511 = vadd.xlane.f32.xlu0 %v3492
        %v3512 = vpop.xlane.xlu0 %3511
        %3513 = vadd.xlane.f32.xlu0 %v3493
        %v3514 = vpop.xlane.xlu0 %3513
        %3515 = vadd.xlane.f32.xlu0 %v3494
        %v3516 = vpop.xlane.xlu0 %3515
        %3517 = vadd.xlane.f32.xlu0 %v3495
        %v3518 = vpop.xlane.xlu0 %3517
        %3519 = vadd.xlane.f32.xlu0 %v3496
        %v3520 = vpop.xlane.xlu0 %3519
        %3521 = vadd.xlane.f32.xlu0 %v3497
        %v3522 = vpop.xlane.xlu0 %3521
        %3523 = vadd.xlane.f32.xlu0 %v3498
        %v3524 = vpop.xlane.xlu0 %3523
        %3525 = vadd.xlane.f32.xlu0 %v3499
        %v3526 = vpop.xlane.xlu0 %3525
        %3527 = vadd.xlane.f32.xlu0 %v3500
        %v3528 = vpop.xlane.xlu0 %3527
        %3529 = vadd.xlane.f32.xlu0 %v3501
        %v3530 = vpop.xlane.xlu0 %3529
        %3531 = vadd.xlane.f32.xlu0 %v3502
        %v3532 = vpop.xlane.xlu0 %3531
        %3533 = vadd.xlane.f32.xlu0 %v3503
        %v3534 = vpop.xlane.xlu0 %3533
        %3535 = vadd.xlane.f32.xlu0 %v3504
        %v3536 = vpop.xlane.xlu0 %3535
        %v3537 = vmul.f32 %v3506, %v1615
        %v3538 = vmul.f32 %v3508, %v1615
        %v3539 = vmul.f32 %v3510, %v1615
        %v3540 = vmul.f32 %v3512, %v1615
        %v3541 = vmul.f32 %v3514, %v1615
        %v3542 = vmul.f32 %v3516, %v1615
        %v3543 = vmul.f32 %v3518, %v1615
        %v3544 = vmul.f32 %v3520, %v1615
        %v3545 = vmul.f32 %v3522, %v1615
        %v3546 = vmul.f32 %v3524, %v1615
        %v3547 = vmul.f32 %v3526, %v1615
        %v3548 = vmul.f32 %v3528, %v1615
        %v3549 = vmul.f32 %v3530, %v1615
        %v3550 = vmul.f32 %v3532, %v1615
        %v3551 = vmul.f32 %v3534, %v1615
        %v3552 = vmul.f32 %v3536, %v1615
        %v3553 = vadd.f32 %v3537, 1e-07
        %v3554 = vadd.f32 %v3538, 1e-07
        %v3555 = vadd.f32 %v3539, 1e-07
        %v3556 = vadd.f32 %v3540, 1e-07
        %v3557 = vadd.f32 %v3541, 1e-07
        %v3558 = vadd.f32 %v3542, 1e-07
        %v3559 = vadd.f32 %v3543, 1e-07
        %v3560 = vadd.f32 %v3544, 1e-07
        %v3561 = vadd.f32 %v3545, 1e-07
        %v3562 = vadd.f32 %v3546, 1e-07
        %v3563 = vadd.f32 %v3547, 1e-07
        %v3564 = vadd.f32 %v3548, 1e-07
        %v3565 = vadd.f32 %v3549, 1e-07
        %v3566 = vadd.f32 %v3550, 1e-07
        %v3567 = vadd.f32 %v3551, 1e-07
        %v3568 = vadd.f32 %v3552, 1e-07
        %v3569 = vrsqrt.pop %v3553
        %v3570 = vmul.f32 %v3569, %v3553
        %v3571 = vmul.f32 %v3570, %v3569
        %v3572 = vmul.f32 0.5, %v3571
        %v3573 = vsub.f32 1.5, %v3572
        %v3574 = vmul.f32 %v3569, %v3573
        %vm3575 = vweird.f32 %v3553
        %vm3576 = vweird.f32 %v3569
        %vm3577 = vmor %vm3575, %vm3576
        %v3578 = vsel %vm3577, %v3569, %v3574
        %v3579 = vrsqrt.pop %v3554
        %v3580 = vmul.f32 %v3579, %v3554
        %v3581 = vmul.f32 %v3580, %v3579
        %v3582 = vmul.f32 0.5, %v3581
        %v3583 = vsub.f32 1.5, %v3582
        %v3584 = vmul.f32 %v3579, %v3583
        %vm3585 = vweird.f32 %v3554
        %vm3586 = vweird.f32 %v3579
        %vm3587 = vmor %vm3585, %vm3586
        %v3588 = vsel %vm3587, %v3579, %v3584
        %v3589 = vrsqrt.pop %v3555
        %v3590 = vmul.f32 %v3589, %v3555
        %v3591 = vmul.f32 %v3590, %v3589
        %v3592 = vmul.f32 0.5, %v3591
        %v3593 = vsub.f32 1.5, %v3592
        %v3594 = vmul.f32 %v3589, %v3593
        %vm3595 = vweird.f32 %v3555
        %vm3596 = vweird.f32 %v3589
        %vm3597 = vmor %vm3595, %vm3596
        %v3598 = vsel %vm3597, %v3589, %v3594
        %v3599 = vrsqrt.pop %v3556
        %v3600 = vmul.f32 %v3599, %v3556
        %v3601 = vmul.f32 %v3600, %v3599
        %v3602 = vmul.f32 0.5, %v3601
        %v3603 = vsub.f32 1.5, %v3602
        %v3604 = vmul.f32 %v3599, %v3603
        %vm3605 = vweird.f32 %v3556
        %vm3606 = vweird.f32 %v3599
        %vm3607 = vmor %vm3605, %vm3606
        %v3608 = vsel %vm3607, %v3599, %v3604
        %v3609 = vrsqrt.pop %v3557
        %v3610 = vmul.f32 %v3609, %v3557
        %v3611 = vmul.f32 %v3610, %v3609
        %v3612 = vmul.f32 0.5, %v3611
        %v3613 = vsub.f32 1.5, %v3612
        %v3614 = vmul.f32 %v3609, %v3613
        %vm3615 = vweird.f32 %v3557
        %vm3616 = vweird.f32 %v3609
        %vm3617 = vmor %vm3615, %vm3616
        %v3618 = vsel %vm3617, %v3609, %v3614
        %v3619 = vrsqrt.pop %v3558
        %v3620 = vmul.f32 %v3619, %v3558
        %v3621 = vmul.f32 %v3620, %v3619
        %v3622 = vmul.f32 0.5, %v3621
        %v3623 = vsub.f32 1.5, %v3622
        %v3624 = vmul.f32 %v3619, %v3623
        %vm3625 = vweird.f32 %v3558
        %vm3626 = vweird.f32 %v3619
        %vm3627 = vmor %vm3625, %vm3626
        %v3628 = vsel %vm3627, %v3619, %v3624
        %v3629 = vrsqrt.pop %v3559
        %v3630 = vmul.f32 %v3629, %v3559
        %v3631 = vmul.f32 %v3630, %v3629
        %v3632 = vmul.f32 0.5, %v3631
        %v3633 = vsub.f32 1.5, %v3632
        %v3634 = vmul.f32 %v3629, %v3633
        %vm3635 = vweird.f32 %v3559
        %vm3636 = vweird.f32 %v3629
        %vm3637 = vmor %vm3635, %vm3636
        %v3638 = vsel %vm3637, %v3629, %v3634
        %v3639 = vrsqrt.pop %v3560
        %v3640 = vmul.f32 %v3639, %v3560
        %v3641 = vmul.f32 %v3640, %v3639
        %v3642 = vmul.f32 0.5, %v3641
        %v3643 = vsub.f32 1.5, %v3642
        %v3644 = vmul.f32 %v3639, %v3643
        %vm3645 = vweird.f32 %v3560
        %vm3646 = vweird.f32 %v3639
        %vm3647 = vmor %vm3645, %vm3646
        %v3648 = vsel %vm3647, %v3639, %v3644
        %v3649 = vrsqrt.pop %v3561
        %v3650 = vmul.f32 %v3649, %v3561
        %v3651 = vmul.f32 %v3650, %v3649
        %v3652 = vmul.f32 0.5, %v3651
        %v3653 = vsub.f32 1.5, %v3652
        %v3654 = vmul.f32 %v3649, %v3653
        %vm3655 = vweird.f32 %v3561
        %vm3656 = vweird.f32 %v3649
        %vm3657 = vmor %vm3655, %vm3656
        %v3658 = vsel %vm3657, %v3649, %v3654
        %v3659 = vrsqrt.pop %v3562
        %v3660 = vmul.f32 %v3659, %v3562
        %v3661 = vmul.f32 %v3660, %v3659
        %v3662 = vmul.f32 0.5, %v3661
        %v3663 = vsub.f32 1.5, %v3662
        %v3664 = vmul.f32 %v3659, %v3663
        %vm3665 = vweird.f32 %v3562
        %vm3666 = vweird.f32 %v3659
        %vm3667 = vmor %vm3665, %vm3666
        %v3668 = vsel %vm3667, %v3659, %v3664
        %v3669 = vrsqrt.pop %v3563
        %v3670 = vmul.f32 %v3669, %v3563
        %v3671 = vmul.f32 %v3670, %v3669
        %v3672 = vmul.f32 0.5, %v3671
        %v3673 = vsub.f32 1.5, %v3672
        %v3674 = vmul.f32 %v3669, %v3673
        %vm3675 = vweird.f32 %v3563
        %vm3676 = vweird.f32 %v3669
        %vm3677 = vmor %vm3675, %vm3676
        %v3678 = vsel %vm3677, %v3669, %v3674
        %v3679 = vrsqrt.pop %v3564
        %v3680 = vmul.f32 %v3679, %v3564
        %v3681 = vmul.f32 %v3680, %v3679
        %v3682 = vmul.f32 0.5, %v3681
        %v3683 = vsub.f32 1.5, %v3682
        %v3684 = vmul.f32 %v3679, %v3683
        %vm3685 = vweird.f32 %v3564
        %vm3686 = vweird.f32 %v3679
        %vm3687 = vmor %vm3685, %vm3686
        %v3688 = vsel %vm3687, %v3679, %v3684
        %v3689 = vrsqrt.pop %v3565
        %v3690 = vmul.f32 %v3689, %v3565
        %v3691 = vmul.f32 %v3690, %v3689
        %v3692 = vmul.f32 0.5, %v3691
        %v3693 = vsub.f32 1.5, %v3692
        %v3694 = vmul.f32 %v3689, %v3693
        %vm3695 = vweird.f32 %v3565
        %vm3696 = vweird.f32 %v3689
        %vm3697 = vmor %vm3695, %vm3696
        %v3698 = vsel %vm3697, %v3689, %v3694
        %v3699 = vrsqrt.pop %v3566
        %v3700 = vmul.f32 %v3699, %v3566
        %v3701 = vmul.f32 %v3700, %v3699
        %v3702 = vmul.f32 0.5, %v3701
        %v3703 = vsub.f32 1.5, %v3702
        %v3704 = vmul.f32 %v3699, %v3703
        %vm3705 = vweird.f32 %v3566
        %vm3706 = vweird.f32 %v3699
        %vm3707 = vmor %vm3705, %vm3706
        %v3708 = vsel %vm3707, %v3699, %v3704
        %v3709 = vrsqrt.pop %v3567
        %v3710 = vmul.f32 %v3709, %v3567
        %v3711 = vmul.f32 %v3710, %v3709
        %v3712 = vmul.f32 0.5, %v3711
        %v3713 = vsub.f32 1.5, %v3712
        %v3714 = vmul.f32 %v3709, %v3713
        %vm3715 = vweird.f32 %v3567
        %vm3716 = vweird.f32 %v3709
        %vm3717 = vmor %vm3715, %vm3716
        %v3718 = vsel %vm3717, %v3709, %v3714
        %v3719 = vrsqrt.pop %v3568
        %v3720 = vmul.f32 %v3719, %v3568
        %v3721 = vmul.f32 %v3720, %v3719
        %v3722 = vmul.f32 0.5, %v3721
        %v3723 = vsub.f32 1.5, %v3722
        %v3724 = vmul.f32 %v3719, %v3723
        %vm3725 = vweird.f32 %v3568
        %vm3726 = vweird.f32 %v3719
        %vm3727 = vmor %vm3725, %vm3726
        %v3728 = vsel %vm3727, %v3719, %v3724
        %v3729 = vmul.f32 %v3473, %v3578
        %v3730 = vmul.f32 %v3474, %v3588
        %v3731 = vmul.f32 %v3475, %v3598
        %v3732 = vmul.f32 %v3476, %v3608
        %v3733 = vmul.f32 %v3477, %v3618
        %v3734 = vmul.f32 %v3478, %v3628
        %v3735 = vmul.f32 %v3479, %v3638
        %v3736 = vmul.f32 %v3480, %v3648
        %v3737 = vmul.f32 %v3481, %v3658
        %v3738 = vmul.f32 %v3482, %v3668
        %v3739 = vmul.f32 %v3483, %v3678
        %v3740 = vmul.f32 %v3484, %v3688
        %v3741 = vmul.f32 %v3485, %v3698
        %v3742 = vmul.f32 %v3486, %v3708
        %v3743 = vmul.f32 %v3487, %v3718
        %v3744 = vmul.f32 %v3488, %v3728
        %v3745 = vperm.slane %v3424, 0
        %v3746 = vmul.f32 %v3729, %v3745
        %v3747 = vmul.f32 %v3730, %v3745
        %v3748 = vmul.f32 %v3731, %v3745
        %v3749 = vmul.f32 %v3732, %v3745
        %v3750 = vmul.f32 %v3733, %v3745
        %v3751 = vmul.f32 %v3734, %v3745
        %v3752 = vmul.f32 %v3735, %v3745
        %v3753 = vmul.f32 %v3736, %v3745
        %v3754 = vmul.f32 %v3737, %v3745
        %v3755 = vmul.f32 %v3738, %v3745
        %v3756 = vmul.f32 %v3739, %v3745
        %v3757 = vmul.f32 %v3740, %v3745
        %v3758 = vmul.f32 %v3741, %v3745
        %v3759 = vmul.f32 %v3742, %v3745
        %v3760 = vmul.f32 %v3743, %v3745
        %v3761 = vmul.f32 %v3744, %v3745
        %v3762 = vperm.slane %v3424, 1
        %v3763 = vadd.f32 %v3746, %v3762
        %v3764 = vadd.f32 %v3747, %v3762
        %v3765 = vadd.f32 %v3748, %v3762
        %v3766 = vadd.f32 %v3749, %v3762
        %v3767 = vadd.f32 %v3750, %v3762
        %v3768 = vadd.f32 %v3751, %v3762
        %v3769 = vadd.f32 %v3752, %v3762
        %v3770 = vadd.f32 %v3753, %v3762
        %v3771 = vadd.f32 %v3754, %v3762
        %v3772 = vadd.f32 %v3755, %v3762
        %v3773 = vadd.f32 %v3756, %v3762
        %v3774 = vadd.f32 %v3757, %v3762
        %v3775 = vadd.f32 %v3758, %v3762
        %v3776 = vadd.f32 %v3759, %v3762
        %v3777 = vadd.f32 %v3760, %v3762
        %v3778 = vadd.f32 %v3761, %v3762
        %3779 = vst [vmem:[#allocation2] sm:$0xff] %v3763
        %3780 = vst [vmem:[#allocation2 + $0x8] sm:$0xff] %v3764
        %3781 = vst [vmem:[#allocation2 + $0x10] sm:$0xff] %v3765
        %3782 = vst [vmem:[#allocation2 + $0x18] sm:$0xff] %v3766
        %3783 = vst [vmem:[#allocation2 + $0x20] sm:$0xff] %v3767
        %3784 = vst [vmem:[#allocation2 + $0x28] sm:$0xff] %v3768
        %3785 = vst [vmem:[#allocation2 + $0x30] sm:$0xff] %v3769
        %3786 = vst [vmem:[#allocation2 + $0x38] sm:$0xff] %v3770
        %3787 = vst [vmem:[#allocation2 + $0x40] sm:$0xff] %v3771
        %3788 = vst [vmem:[#allocation2 + $0x48] sm:$0xff] %v3772
        %3789 = vst [vmem:[#allocation2 + $0x50] sm:$0xff] %v3773
        %3790 = vst [vmem:[#allocation2 + $0x58] sm:$0xff] %v3774
        %3791 = vst [vmem:[#allocation2 + $0x60] sm:$0xff] %v3775
        %3792 = vst [vmem:[#allocation2 + $0x68] sm:$0xff] %v3776
        %3793 = vst [vmem:[#allocation2 + $0x70] sm:$0xff] %v3777
        %3794 = vst [vmem:[#allocation2 + $0x78] sm:$0xff] %v3778
        %p3795 = scmp.eq.s32.totalorder %s42, 1
        // Predicated region
        $region101: #{custom_model_forward.1} parent=75 // pred_check
          %p3796 = pneg %p3795
        $region102: #{custom_model_forward.1} parent=75 // pred_check_branch
          %3798 = sbr.rel (%p3796) target = $region104
        $region103: #{custom_model_forward.1} parent=75 // pred_region
          %v3799 = vpack.c.bf16 %v3763, %v3763
          %v3800 = vld [vmem:[#allocation11] sm:$0xf]
          %v3801 = vld [vmem:[#allocation11 + $0x4] sm:$0xf]
          %v3802 = vld [vmem:[#allocation11 + $0x8] sm:$0xf]
          %v3803 = vld [vmem:[#allocation11 + $0xc] sm:$0xf]
          %v3804 = vld [vmem:[#allocation11 + $0x10] sm:$0xf]
          %v3805 = vld [vmem:[#allocation11 + $0x14] sm:$0xf]
          %v3806 = vld [vmem:[#allocation11 + $0x18] sm:$0xf]
          %v3807 = vld [vmem:[#allocation11 + $0x1c] sm:$0xf]
          %v3808 = vld [vmem:[#allocation11 + $0x20] sm:$0xf]
          %v3809 = vld [vmem:[#allocation11 + $0x24] sm:$0xf]
          %v3810 = vld [vmem:[#allocation11 + $0x28] sm:$0xf]
          %v3811 = vld [vmem:[#allocation11 + $0x2c] sm:$0xf]
          %v3812 = vld [vmem:[#allocation11 + $0x30] sm:$0xf]
          %v3813 = vld [vmem:[#allocation11 + $0x34] sm:$0xf]
          %v3814 = vld [vmem:[#allocation11 + $0x38] sm:$0xf]
          %v3815 = vld [vmem:[#allocation11 + $0x3c] sm:$0xf]
          %v3816 = vld [vmem:[%s13] sm:$0x1]
          %v3833 = vunpack.c.l.b16 %v3800
          %v3834 = vunpack.c.l.b16 %v3801
          %v3835 = vunpack.c.l.b16 %v3802
          %v3836 = vunpack.c.l.b16 %v3803
          %v3837 = vunpack.c.l.b16 %v3804
          %v3838 = vunpack.c.l.b16 %v3805
          %v3839 = vunpack.c.l.b16 %v3806
          %v3840 = vunpack.c.l.b16 %v3807
          %v3841 = vunpack.c.l.b16 %v3808
          %v3842 = vunpack.c.l.b16 %v3809
          %v3843 = vunpack.c.l.b16 %v3810
          %v3844 = vunpack.c.l.b16 %v3811
          %v3845 = vunpack.c.l.b16 %v3812
          %v3846 = vunpack.c.l.b16 %v3813
          %v3847 = vunpack.c.l.b16 %v3814
          %v3848 = vunpack.c.l.b16 %v3815
          %v3849 = vpack.c.b16 %v3834, %v3833
          %v3850 = vpack.c.b16 %v3836, %v3835
          %v3851 = vpack.c.b16 %v3838, %v3837
          %v3852 = vpack.c.b16 %v3840, %v3839
          %v3853 = vpack.c.b16 %v3842, %v3841
          %v3854 = vpack.c.b16 %v3844, %v3843
          %v3855 = vpack.c.b16 %v3846, %v3845
          %v3856 = vpack.c.b16 %v3848, %v3847
          %3865 = vmatpush.bf16.msra.mxu0 %v3856
          %3866 = vmatpush.bf16.msra.mxu0 %v3855
          %3867 = vmatpush.bf16.msra.mxu0 %v3854
          %3868 = vmatpush.bf16.msra.mxu0 %v3853
          %3869 = vmatpush.bf16.msra.mxu0 %v3852
          %3870 = vmatpush.bf16.msra.mxu0 %v3851
          %3871 = vmatpush.bf16.msra.mxu0 %v3850
          %3872 = vmatpush.bf16.msra.mxu0 %v3849
          %3873 = vmatmul.bf16.gmra.mxu0 %v3799
          %v3874 = vpop.f32.mrf.mxu0
          %v3875 = vadd.f32 %v3816, %v3874
          %v3876 = vpop.f32.mrf.mxu0
          %3877 = vdwg.mxu0
          %vm3878 = vcmask 1040384
          %v3879 = vsel %vm3878, %v3875, -inf
          %3880 = vmax.xlane.f32.xlu0 %v3879
          %v3881 = vpop.xlane.xlu0 %3880
          %v3882 = vsub.f32 %v3875, %v3881
          %v3883 = vmul.f32 %v3882, 1.442695
          %v3884 = vpow.pop %v3883
          %v3885 = vsel %vm3878, %v3884, 0.0
          %3886 = vadd.xlane.f32.xlu0 %v3885
          %v3887 = vpop.xlane.xlu0 %3886
          %v3888 = vrcp.pop %v3887
          %v3889 = vmul.f32 %v3887, %v3888
          %v3890 = vsub.f32 1.0, %v3889
          %v3891 = vmul.f32 %v3888, %v3890
          %v3892 = vadd.f32 %v3888, %v3891
          %vm3893 = vweird.f32 %v3887
          %vm3894 = vweird.f32 %v3888
          %vm3895 = vmor %vm3893, %vm3894
          %v3896 = vsel %vm3895, %v3888, %v3892
          %v3897 = vand.u32 2147483647, %v3887
          %vm3898 = vcmp.eq.f32.partialorder %v3897, 8.507059e+37
          %v3899 = vand.u32 %v3887, 2147483648
          %v3900 = vor.u32 1.1754944e-38, %v3899
          %v3901 = vsel %vm3898, %v3900, %v3896
          %v3902 = vmul.f32 %v3884, %v3901
          %3903 = vst [vmem:[%s730] sm:$0x1] %v3902
        $region104: #{custom_model_forward.1} parent=75 // pred_fallthru
          _
        %s3904 = sand.u32 %s411, 1
        %s3905 = scalar_lea.sflag [#allocation5], %s3904
        %s3906 = sand.u32 %s411, 1
        %s3907 = scalar_lea.vmem [#allocation12], %s3906
        // Predicated region
        $region105: #{custom_model_forward.1} parent=75 // pred_check
          %p3908 = pneg %p421
        $region106: #{custom_model_forward.1} parent=75 // pred_check_branch
          %3910 = sbr.rel (%p3908) target = $region108
        $region107: #{custom_model_forward.1} parent=75 // pred_region
          %3912 = vsyncadd %s3905, 0
          %s3913 = scalar_lea.hbm %s14, %s41
          %s3915 = sshll.u32 %s3907, 4
          %s3916 = int_to_ptr.vmem [resolvable:$true] %s3915
          %s3917 = sshll.u32 %s3913, 4
          %s3918 = int_to_ptr.hbm [resolvable:$true] %s3917
          %3920 = dma.vmem_to_hbm [thread:$0]  %s3916, 16, %s3918, %s3905
        $region108: #{custom_model_forward.1} parent=75 // pred_fallthru
          _
      $region76: #{custom_model_forward.1} parent=5 // pred_fallthru
        _
      %p3921 = scmp.le.s32.totalorder 2, %s32
      // Predicated region
      $region109: #{custom_model_forward.1} parent=5 // pred_check
        %p3922 = pneg %p3921
      $region110: #{custom_model_forward.1} parent=5 // pred_check_branch
        %3924 = sbr.rel (%p3922) target = $region112
      $region111: #{custom_model_forward.1} parent=5 // pred_region
        %s3925 = ssub.s32 %s32, 2
        // Predicated region
        $region113: #{custom_model_forward.1} parent=111 // pred_check
          %p3926 = pneg %p427
        $region114: #{custom_model_forward.1} parent=111 // pred_check_branch
          %3928 = sbr.rel (%p3926) target = $region116
        $region115: #{custom_model_forward.1} parent=111 // pred_region
          %s3929 = sand.u32 %s412, 1
          %s3930 = scalar_lea.sflag [#allocation5], %s3929
          %s3931 = sand.u32 %s412, 1
          %s3932 = scalar_lea.vmem [#allocation12], %s3931
          %3934 = dma.done %s3930, 16
        $region116: #{custom_model_forward.1} parent=111 // pred_fallthru
          _
      $region112: #{custom_model_forward.1} parent=5 // pred_fallthru
        _
    $region6: #{custom_model_forward.1} parent=1 // loop_footer
      %s36 = sadd.s32 1, %s32
    $region7: #{custom_model_forward.1} parent=1 // loop_footer_branch
      %31 = sbr.rel target = $region3
    $region8: #{custom_model_forward.1} parent=1 // loop_exit
      _
    %3935 = vsyncpa [#allocation4], 1
    %s3936 = scalar_lea.sflag [#allocation4], 1
    %3937 = vsyncpa %s3936, 1
    %3938 = vsyncpa [#allocation7], 1
    %s3939 = scalar_lea.sflag [#allocation7], 1
    %3940 = vsyncpa %s3939, 1
    %3941 = vsyncpa [#allocation10], 1
    %s3942 = scalar_lea.sflag [#allocation10], 1
    %3943 = vsyncpa %s3942, 1
    %3944 = vsyncpa [#allocation5], 1
    %s3945 = scalar_lea.sflag [#allocation5], 1
    %3946 = vsyncpa %s3945, 1

</llo_original>
